<compile_context>
chip_gen: v6e
topology: v6e:2x2x1
jax: 0.10.0
libtpu: 0.0.40
codegen_flags: <defaults>
</compile_context>

<pallas_src>
import functools

import numpy as np

import jax
import jax.numpy as jnp
from jax import lax
from jax.experimental import pallas as pl
from jax.experimental.pallas import tpu as pltpu

EPS = 1e-5
NEG_SLOPE = 0.2
K = 4   # conv kernel size
S = 2   # conv stride


# ----------------------------- fused Pallas kernel ----------------------------- #

def _disc_kernel(batch, oh1, ow1, mh, mw, oh2, ow2,
                 p1_ref, m1_ref, w1_ref, g1_ref, bt1_ref,
                 w2_ref, g2_ref, bt2_ref, w3_ref, agg_ref, b3_ref,
                 o_ref, p2_ref):
    c1 = w1_ref.shape[1]          # hidden_dim
    seg = mh * mw                 # rows per (sample, parity) segment of layer-1 output

    # ---------------- layer 1: conv GEMM + BN(batch stats) + LeakyReLU ------------
    y1 = jnp.dot(p1_ref[...], w1_ref[...], preferred_element_type=jnp.float32)
    m = m1_ref[...]                                   # (R1p, 1): 1 = valid row, 0 = pad
    cnt1 = float(batch * oh1 * ow1)
    mean1 = jnp.sum(y1 * m, axis=0, keepdims=True) / cnt1
    d1 = (y1 - mean1) * m
    var1 = jnp.sum(d1 * d1, axis=0, keepdims=True) / cnt1
    scale1 = g1_ref[...] * lax.rsqrt(var1 + EPS)
    shift1 = bt1_ref[...] - mean1 * scale1            # conv bias dropped: BN cancels it
    a1 = y1 * scale1 + shift1
    a1 = jnp.where(a1 >= 0.0, a1, NEG_SLOPE * a1)     # (R1p, c1)

    # ------------- layer-2 im2col assembled entirely in VMEM (no HBM) -------------
    # a1 rows are ordered (n, rh, rw, h//2, w//2) with h1 = 2*mhalf + rh,
    # w1 = 2*whalf + rw.  The stride-2 4x4 tap (kh, kw) = (2*qh+rh, 2*qw+rw) at
    # output (oh, ow) is then the contiguous slice mhalf = oh+qh, whalf in
    # [ow+qw, ow+qw+OW2): only static slices and stores, no strided access.
    r2 = oh2 * ow2
    for kh in range(K):
        qh, rh = divmod(kh, S)
        for kw in range(K):
            qw, rw = divmod(kw, S)
            col = (kh * K + kw) * c1
            for b in range(batch):
                s0 = (b * 4 + rh * 2 + rw) * seg
                for i in range(oh2):
                    src = s0 + (qh + i) * mw + qw
                    dst = b * r2 + i * ow2
                    p2_ref[dst:dst + ow2, col:col + c1] = a1[src:src + ow2, :]

    # ---------------- layer 2: conv GEMM + BN(batch stats) + LeakyReLU ------------
    y2 = jnp.dot(p2_ref[...], w2_ref[...], preferred_element_type=jnp.float32)
    cnt2 = float(batch * r2)
    mean2 = jnp.sum(y2, axis=0, keepdims=True) / cnt2
    d2 = y2 - mean2
    var2 = jnp.sum(d2 * d2, axis=0, keepdims=True) / cnt2
    scale2 = g2_ref[...] * lax.rsqrt(var2 + EPS)
    shift2 = bt2_ref[...] - mean2 * scale2
    a2 = y2 * scale2 + shift2
    a2 = jnp.where(a2 >= 0.0, a2, NEG_SLOPE * a2)     # (batch*r2, c2)

    # ---- layer 3: Conv2d(c2, 1, 4, 2) on the oh2 x ow2 map (1x1 output) == matvec ----
    prod = a2 * w3_ref[...]                           # weight spread over 5x5 map, zero-padded
    per_sample = jnp.dot(agg_ref[...], prod,
                         preferred_element_type=jnp.float32)      # (batch, c2)
    o_ref[...] = jnp.sum(per_sample, axis=1, keepdims=True) + b3_ref[...]


# --------------------------------- JAX glue ------------------------------------ #

def _layer1_patches(image, oh1, ow1, mh, mw):
    """Parity-split im2col patches for layer 1 + valid-row mask.

    Rows ordered (n, h1%2, w1%2, h1//2, w1//2); columns ordered (c, kh, kw),
    matching the in-kernel slicing scheme and the reshaped OIHW conv weight.
    """
    n, cin, h, w = image.shape
    rh, rw, mhh, mww = np.meshgrid(np.arange(2), np.arange(2),
                                   np.arange(mh), np.arange(mw), indexing="ij")
    h1 = (2 * mhh + rh).reshape(-1)
    w1 = (2 * mww + rw).reshape(-1)
    valid = ((h1 < oh1) & (w1 < ow1)).astype(np.float32)          # (rows,)
    kh, kw = np.meshgrid(np.arange(K), np.arange(K), indexing="ij")
    hin = np.clip(S * h1[:, None] + kh.reshape(-1)[None, :], 0, h - 1)   # (rows, K*K)
    win = np.clip(S * w1[:, None] + kw.reshape(-1)[None, :], 0, w - 1)
    rows = h1.shape[0]
    p1 = image[:, :, hin, win]                                    # (n, cin, rows, K*K)
    p1 = jnp.transpose(p1, (0, 2, 1, 3)).reshape(n, rows, cin * K * K)
    p1 = (p1 * jnp.asarray(valid)[None, :, None]).reshape(n * rows, cin * K * K)
    mask = jnp.tile(jnp.asarray(valid).reshape(rows, 1), (n, 1))  # (n*rows, 1)
    return p1, mask


def init_params(key, im_chan=1, hidden_dim=16):
    """PyTorch-default-style init (uniform +-1/sqrt(fan_in)); BN gamma=1, beta=0."""
    params = {}
    dims = [(im_chan, hidden_dim), (hidden_dim, hidden_dim * 2), (hidden_dim * 2, 1)]
    for li, (cin, cout) in enumerate(dims):
        key, kw_, kb_ = jax.random.split(key, 3)
        bound = 1.0 / float(np.sqrt(cin * K * K))
        params[f"w{li}"] = jax.random.uniform(kw_, (cout, cin, K, K), jnp.float32,
                                              -bound, bound)
        params[f"b{li}"] = jax.random.uniform(kb_, (cout,), jnp.float32, -bound, bound)
        if li < 2:
            params[f"gamma{li}"] = jnp.ones((cout,), jnp.float32)
            params[f"beta{li}"] = jnp.zeros((cout,), jnp.float32)
    return params


@jax.jit
def discriminator_forward(params, image):
    """image: (N, im_chan, H, W) NCHW -> (N, 1) logits (PyTorch .view(N, -1))."""
    n, cin, h, w = image.shape
    c1 = params["w0"].shape[0]
    c2 = params["w1"].shape[0]
    oh1, ow1 = (h - K) // S + 1, (w - K) // S + 1
    oh2, ow2 = (oh1 - K) // S + 1, (ow1 - K) // S + 1
    oh3, ow3 = (oh2 - K) // S + 1, (ow2 - K) // S + 1
    assert oh3 == 1 and ow3 == 1, "fused kernel assumes a 1x1 final feature map"
    # TODO(synk): generalize the fused final-layer matvec to spatial outputs > 1x1.
    mh, mw = (oh1 + 1) // 2, (ow1 + 1) // 2
    r2 = oh2 * ow2

    p1, mask = _layer1_patches(image, oh1, ow1, mh, mw)
    w1k = params["w0"].reshape(c1, cin * K * K).T                       # cols (c,kh,kw)
    w2k = params["w1"].transpose(2, 3, 1, 0).reshape(K * K * c1, c2)    # rows (kh,kw,c)
    g1 = params["gamma0"].reshape(1, c1)
    bt1 = params["beta0"].reshape(1, c1)
    g2 = params["gamma1"].reshape(1, c2)
    bt2 = params["beta1"].reshape(1, c2)
    # Final conv weight spread over the (oh2, ow2) map; taps beyond the 4x4 window = 0.
    w3sp = jnp.zeros((oh2, ow2, c2), jnp.float32).at[:K, :K, :].set(
        jnp.transpose(params["w2"][0], (1, 2, 0)))
    w3sp = jnp.tile(w3sp.reshape(r2, c2), (n, 1))                       # (n*r2, c2)
    agg = jnp.asarray(np.kron(np.eye(n), np.ones((1, r2))), jnp.float32)  # (n, n*r2)
    b3 = params["b2"].reshape(1, 1)

    kernel = functools.partial(_disc_kernel, n, oh1, ow1, mh, mw, oh2, ow2)
    flops = 2 * (p1.shape[0] * p1.shape[1] * c1
                 + n * r2 * (K * K * c1) * c2
                 + n * (n * r2) * c2)
    bytes_accessed = 4 * (p1.size + mask.size + w1k.size + w2k.size + w3sp.size
                          + agg.size + 2 * (c1 + c2) + 1 + n)

    out = pl.pallas_call(
        kernel,
        out_shape=jax.ShapeDtypeStruct((n, 1), jnp.float32),
        in_specs=[pl.BlockSpec(memory_space=pltpu.MemorySpace.VMEM)] * 11,
        out_specs=pl.BlockSpec(memory_space=pltpu.MemorySpace.VMEM),
        scratch_shapes=[pltpu.VMEM((n * r2, K * K * c1), jnp.float32)],
        cost_estimate=pl.CostEstimate(flops=flops, transcendentals=c1 + c2,
                                      bytes_accessed=bytes_accessed),
    )(p1, mask, w1k, g1, bt1, w2k, g2, bt2, w3sp, agg, b3)
    return out


# ------------------------------ pure-JAX reference ------------------------------ #

def _reference_forward(params, image):
    def conv(x, w_, b_):
        y = lax.conv_general_dilated(x, w_, window_strides=(S, S), padding="VALID",
                                     dimension_numbers=("NCHW", "OIHW", "NCHW"))
        return y + b_.reshape(1, -1, 1, 1)

    def bn_lrelu(y, g, b):
        mean = jnp.mean(y, axis=(0, 2, 3), keepdims=True)
        var = jnp.mean((y - mean) ** 2, axis=(0, 2, 3), keepdims=True)
        yh = (y - mean) * lax.rsqrt(var + EPS)
        yh = yh * g.reshape(1, -1, 1, 1) + b.reshape(1, -1, 1, 1)
        return jnp.where(yh >= 0, yh, NEG_SLOPE * yh)

    x = bn_lrelu(conv(image, params["w0"], params["b0"]),
                 params["gamma0"], params["beta0"])
    x = bn_lrelu(conv(x, params["w1"], params["b1"]),
                 params["gamma1"], params["beta1"])
    x = conv(x, params["w2"], params["b2"])
    return x.reshape(image.shape[0], -1)


# ------------------------------------ main --------------------------------------- #

if __name__ == "__main__":
    key = jax.random.PRNGKey(0)
    key, kimg = jax.random.split(key)

    # MNIST-like input: batch=2, im_chan=1, 28x28 (NCHW).
    image = jax.random.normal(kimg, (2, 1, 28, 28), dtype=jnp.float32)
    params = init_params(key, im_chan=1, hidden_dim=16)

    out = discriminator_forward(params, image)
    out = jax.block_until_ready(out)
    assert out.shape == (2, 1), f"unexpected output shape {out.shape}"

    ref = _reference_forward(params, image)
    assert jnp.allclose(out, ref, rtol=1e-3, atol=1e-3), (
        f"mismatch vs reference: {out} vs {ref}")

    print("KERNEL_OK")
</pallas_src>

<mosaic_0001>
module attributes {stable_mosaic.version = 11 : i64} {
  func.func @_disc_kernel(%arg0: memref<392x16xf32, #tpu.memory_space<vmem>>, %arg1: memref<392x1xf32, #tpu.memory_space<vmem>>, %arg2: memref<16x16xf32, #tpu.memory_space<vmem>>, %arg3: memref<1x16xf32, #tpu.memory_space<vmem>>, %arg4: memref<1x16xf32, #tpu.memory_space<vmem>>, %arg5: memref<256x32xf32, #tpu.memory_space<vmem>>, %arg6: memref<1x32xf32, #tpu.memory_space<vmem>>, %arg7: memref<1x32xf32, #tpu.memory_space<vmem>>, %arg8: memref<50x32xf32, #tpu.memory_space<vmem>>, %arg9: memref<2x50xf32, #tpu.memory_space<vmem>>, %arg10: memref<1x1xf32, #tpu.memory_space<vmem>>, %arg11: memref<2x1xf32, #tpu.memory_space<vmem>>, %arg12: memref<50x256xf32, #tpu.memory_space<vmem>>) attributes {dimension_semantics = [], scalar_prefetch = 0 : i64, scratch_operands = 1 : i64, tpu.core_type = #tpu.core_type<tc>} {
    %c0 = arith.constant 0 : index
    %c0_0 = arith.constant 0 : index
    %0 = vector.load %arg0[%c0, %c0_0] : memref<392x16xf32, #tpu.memory_space<vmem>>, vector<392x16xf32>
    %c0_1 = arith.constant 0 : index
    %c0_2 = arith.constant 0 : index
    %1 = vector.load %arg2[%c0_1, %c0_2] : memref<16x16xf32, #tpu.memory_space<vmem>>, vector<16x16xf32>
    %cst = arith.constant dense<0.000000e+00> : vector<392x16xf32>
    %2 = tpu.matmul %0, %1, %cst {dimension_numbers = #tpu.dot_dimension_numbers<[1], [0], [0], [1], [0, 0, 1, 1], [], []>} : vector<392x16xf32>, vector<16x16xf32>, vector<392x16xf32> -> vector<392x16xf32>
    %c0_3 = arith.constant 0 : index
    %c0_4 = arith.constant 0 : index
    %3 = vector.load %arg1[%c0_3, %c0_4] : memref<392x1xf32, #tpu.memory_space<vmem>>, vector<392x1xf32>
    %4 = vector.broadcast %3 : vector<392x1xf32> to vector<392x16xf32>
    %5 = arith.mulf %2, %4 : vector<392x16xf32>
    %cst_5 = arith.constant dense<0.000000e+00> : vector<16xf32>
    %6 = vector.multi_reduction <add>, %5, %cst_5 [0] : vector<392x16xf32> to vector<16xf32>
    %7 = vector.shape_cast %6 : vector<16xf32> to vector<1x16xf32>
    %cst_6 = arith.constant 3.380000e+02 : f32
    %8 = vector.broadcast %cst_6 : f32 to vector<1x16xf32>
    %9 = arith.divf %7, %8 : vector<1x16xf32>
    %10 = vector.broadcast %9 : vector<1x16xf32> to vector<392x16xf32>
    %11 = arith.subf %2, %10 : vector<392x16xf32>
    %12 = vector.broadcast %3 : vector<392x1xf32> to vector<392x16xf32>
    %13 = arith.mulf %11, %12 : vector<392x16xf32>
    %14 = arith.mulf %13, %13 : vector<392x16xf32>
    %cst_7 = arith.constant dense<0.000000e+00> : vector<16xf32>
    %15 = vector.multi_reduction <add>, %14, %cst_7 [0] : vector<392x16xf32> to vector<16xf32>
    %16 = vector.shape_cast %15 : vector<16xf32> to vector<1x16xf32>
    %cst_8 = arith.constant 3.380000e+02 : f32
    %17 = vector.broadcast %cst_8 : f32 to vector<1x16xf32>
    %18 = arith.divf %16, %17 : vector<1x16xf32>
    %c0_9 = arith.constant 0 : index
    %c0_10 = arith.constant 0 : index
    %19 = vector.load %arg3[%c0_9, %c0_10] : memref<1x16xf32, #tpu.memory_space<vmem>>, vector<1x16xf32>
    %cst_11 = arith.constant 9.99999974E-6 : f32
    %20 = vector.broadcast %cst_11 : f32 to vector<1x16xf32>
    %21 = arith.addf %18, %20 : vector<1x16xf32>
    %22 = math.rsqrt %21 : vector<1x16xf32>
    %23 = arith.mulf %19, %22 : vector<1x16xf32>
    %c0_12 = arith.constant 0 : index
    %c0_13 = arith.constant 0 : index
    %24 = vector.load %arg4[%c0_12, %c0_13] : memref<1x16xf32, #tpu.memory_space<vmem>>, vector<1x16xf32>
    %25 = arith.mulf %9, %23 : vector<1x16xf32>
    %26 = arith.subf %24, %25 : vector<1x16xf32>
    %27 = vector.broadcast %23 : vector<1x16xf32> to vector<392x16xf32>
    %28 = arith.mulf %2, %27 : vector<392x16xf32>
    %29 = vector.broadcast %26 : vector<1x16xf32> to vector<392x16xf32>
    %30 = arith.addf %28, %29 : vector<392x16xf32>
    %cst_14 = arith.constant 0.000000e+00 : f32
    %31 = vector.broadcast %cst_14 : f32 to vector<392x16xf32>
    %32 = arith.cmpf oge, %30, %31 : vector<392x16xf32>
    %cst_15 = arith.constant 2.000000e-01 : f32
    %33 = vector.broadcast %cst_15 : f32 to vector<392x16xf32>
    %34 = arith.mulf %33, %30 : vector<392x16xf32>
    %35 = arith.select %32, %30, %34 : vector<392x16xi1>, vector<392x16xf32>
    %36 = vector.extract_strided_slice %35 {offsets = [0, 0], sizes = [5, 16], strides = [1, 1]} : vector<392x16xf32> to vector<5x16xf32>
    %c0_16 = arith.constant 0 : index
    %c0_17 = arith.constant 0 : index
    %37 = vector.load %arg12[%c0_16, %c0_17] : memref<50x256xf32, #tpu.memory_space<vmem>>, vector<5x16xf32>
    tpu.vector_store %arg12[%c0_16, %c0_17], %36 {strides = array<i32>} : memref<50x256xf32, #tpu.memory_space<vmem>>, vector<5x16xf32>,
    %38 = vector.extract_strided_slice %35 {offsets = [7, 0], sizes = [5, 16], strides = [1, 1]} : vector<392x16xf32> to vector<5x16xf32>
    %c5 = arith.constant 5 : index
    %c0_18 = arith.constant 0 : index
    %39 = vector.load %arg12[%c5, %c0_18] : memref<50x256xf32, #tpu.memory_space<vmem>>, vector<5x16xf32>
    tpu.vector_store %arg12[%c5, %c0_18], %38 {strides = array<i32>} : memref<50x256xf32, #tpu.memory_space<vmem>>, vector<5x16xf32>,
    %40 = vector.extract_strided_slice %35 {offsets = [14, 0], sizes = [5, 16], strides = [1, 1]} : vector<392x16xf32> to vector<5x16xf32>
    %c10 = arith.constant 10 : index
    %c0_19 = arith.constant 0 : index
    %41 = vector.load %arg12[%c10, %c0_19] : memref<50x256xf32, #tpu.memory_space<vmem>>, vector<5x16xf32>
    tpu.vector_store %arg12[%c10, %c0_19], %40 {strides = array<i32>} : memref<50x256xf32, #tpu.memory_space<vmem>>, vector<5x16xf32>,
    %42 = vector.extract_strided_slice %35 {offsets = [21, 0], sizes = [5, 16], strides = [1, 1]} : vector<392x16xf32> to vector<5x16xf32>
    %c15 = arith.constant 15 : index
    %c0_20 = arith.constant 0 : index
    %43 = vector.load %arg12[%c15, %c0_20] : memref<50x256xf32, #tpu.memory_space<vmem>>, vector<5x16xf32>
    tpu.vector_store %arg12[%c15, %c0_20], %42 {strides = array<i32>} : memref<50x256xf32, #tpu.memory_space<vmem>>, vector<5x16xf32>,
    %44 = vector.extract_strided_slice %35 {offsets = [28, 0], sizes = [5, 16], strides = [1, 1]} : vector<392x16xf32> to vector<5x16xf32>
    %c20 = arith.constant 20 : index
    %c0_21 = arith.constant 0 : index
    %45 = vector.load %arg12[%c20, %c0_21] : memref<50x256xf32, #tpu.memory_space<vmem>>, vector<5x16xf32>
    tpu.vector_store %arg12[%c20, %c0_21], %44 {strides = array<i32>} : memref<50x256xf32, #tpu.memory_space<vmem>>, vector<5x16xf32>,
    %46 = vector.extract_strided_slice %35 {offsets = [196, 0], sizes = [5, 16], strides = [1, 1]} : vector<392x16xf32> to vector<5x16xf32>
    %c25 = arith.constant 25 : index
    %c0_22 = arith.constant 0 : index
    %47 = vector.load %arg12[%c25, %c0_22] : memref<50x256xf32, #tpu.memory_space<vmem>>, vector<5x16xf32>
    tpu.vector_store %arg12[%c25, %c0_22], %46 {strides = array<i32>} : memref<50x256xf32, #tpu.memory_space<vmem>>, vector<5x16xf32>,
    %48 = vector.extract_strided_slice %35 {offsets = [203, 0], sizes = [5, 16], strides = [1, 1]} : vector<392x16xf32> to vector<5x16xf32>
    %c30 = arith.constant 30 : index
    %c0_23 = arith.constant 0 : index
    %49 = vector.load %arg12[%c30, %c0_23] : memref<50x256xf32, #tpu.memory_space<vmem>>, vector<5x16xf32>
    tpu.vector_store %arg12[%c30, %c0_23], %48 {strides = array<i32>} : memref<50x256xf32, #tpu.memory_space<vmem>>, vector<5x16xf32>,
    %50 = vector.extract_strided_slice %35 {offsets = [210, 0], sizes = [5, 16], strides = [1, 1]} : vector<392x16xf32> to vector<5x16xf32>
    %c35 = arith.constant 35 : index
    %c0_24 = arith.constant 0 : index
    %51 = vector.load %arg12[%c35, %c0_24] : memref<50x256xf32, #tpu.memory_space<vmem>>, vector<5x16xf32>
    tpu.vector_store %arg12[%c35, %c0_24], %50 {strides = array<i32>} : memref<50x256xf32, #tpu.memory_space<vmem>>, vector<5x16xf32>,
    %52 = vector.extract_strided_slice %35 {offsets = [217, 0], sizes = [5, 16], strides = [1, 1]} : vector<392x16xf32> to vector<5x16xf32>
    %c40 = arith.constant 40 : index
    %c0_25 = arith.constant 0 : index
    %53 = vector.load %arg12[%c40, %c0_25] : memref<50x256xf32, #tpu.memory_space<vmem>>, vector<5x16xf32>
    tpu.vector_store %arg12[%c40, %c0_25], %52 {strides = array<i32>} : memref<50x256xf32, #tpu.memory_space<vmem>>, vector<5x16xf32>,
    %54 = vector.extract_strided_slice %35 {offsets = [224, 0], sizes = [5, 16], strides = [1, 1]} : vector<392x16xf32> to vector<5x16xf32>
    %c45 = arith.constant 45 : index
    %c0_26 = arith.constant 0 : index
    %55 = vector.load %arg12[%c45, %c0_26] : memref<50x256xf32, #tpu.memory_space<vmem>>, vector<5x16xf32>
    tpu.vector_store %arg12[%c45, %c0_26], %54 {strides = array<i32>} : memref<50x256xf32, #tpu.memory_space<vmem>>, vector<5x16xf32>,
    %56 = vector.extract_strided_slice %35 {offsets = [49, 0], sizes = [5, 16], strides = [1, 1]} : vector<392x16xf32> to vector<5x16xf32>
    %c0_27 = arith.constant 0 : index
    %c16 = arith.constant 16 : index
    %57 = vector.load %arg12[%c0_27, %c16] : memref<50x256xf32, #tpu.memory_space<vmem>>, vector<5x16xf32>
    tpu.vector_store %arg12[%c0_27, %c16], %56 {strides = array<i32>} : memref<50x256xf32, #tpu.memory_space<vmem>>, vector<5x16xf32>,
    %58 = vector.extract_strided_slice %35 {offsets = [56, 0], sizes = [5, 16], strides = [1, 1]} : vector<392x16xf32> to vector<5x16xf32>
    %c5_28 = arith.constant 5 : index
    %c16_29 = arith.constant 16 : index
    %59 = vector.load %arg12[%c5_28, %c16_29] : memref<50x256xf32, #tpu.memory_space<vmem>>, vector<5x16xf32>
    tpu.vector_store %arg12[%c5_28, %c16_29], %58 {strides = array<i32>} : memref<50x256xf32, #tpu.memory_space<vmem>>, vector<5x16xf32>,
    %60 = vector.extract_strided_slice %35 {offsets = [63, 0], sizes = [5, 16], strides = [1, 1]} : vector<392x16xf32> to vector<5x16xf32>
    %c10_30 = arith.constant 10 : index
    %c16_31 = arith.constant 16 : index
    %61 = vector.load %arg12[%c10_30, %c16_31] : memref<50x256xf32, #tpu.memory_space<vmem>>, vector<5x16xf32>
    tpu.vector_store %arg12[%c10_30, %c16_31], %60 {strides = array<i32>} : memref<50x256xf32, #tpu.memory_space<vmem>>, vector<5x16xf32>,
    %62 = vector.extract_strided_slice %35 {offsets = [70, 0], sizes = [5, 16], strides = [1, 1]} : vector<392x16xf32> to vector<5x16xf32>
    %c15_32 = arith.constant 15 : index
    %c16_33 = arith.constant 16 : index
    %63 = vector.load %arg12[%c15_32, %c16_33] : memref<50x256xf32, #tpu.memory_space<vmem>>, vector<5x16xf32>
    tpu.vector_store %arg12[%c15_32, %c16_33], %62 {strides = array<i32>} : memref<50x256xf32, #tpu.memory_space<vmem>>, vector<5x16xf32>,
    %64 = vector.extract_strided_slice %35 {offsets = [77, 0], sizes = [5, 16], strides = [1, 1]} : vector<392x16xf32> to vector<5x16xf32>
    %c20_34 = arith.constant 20 : index
    %c16_35 = arith.constant 16 : index
    %65 = vector.load %arg12[%c20_34, %c16_35] : memref<50x256xf32, #tpu.memory_space<vmem>>, vector<5x16xf32>
    tpu.vector_store %arg12[%c20_34, %c16_35], %64 {strides = array<i32>} : memref<50x256xf32, #tpu.memory_space<vmem>>, vector<5x16xf32>,
    %66 = vector.extract_strided_slice %35 {offsets = [245, 0], sizes = [5, 16], strides = [1, 1]} : vector<392x16xf32> to vector<5x16xf32>
    %c25_36 = arith.constant 25 : index
    %c16_37 = arith.constant 16 : index
    %67 = vector.load %arg12[%c25_36, %c16_37] : memref<50x256xf32, #tpu.memory_space<vmem>>, vector<5x16xf32>
    tpu.vector_store %arg12[%c25_36, %c16_37], %66 {strides = array<i32>} : memref<50x256xf32, #tpu.memory_space<vmem>>, vector<5x16xf32>,
    %68 = vector.extract_strided_slice %35 {offsets = [252, 0], sizes = [5, 16], strides = [1, 1]} : vector<392x16xf32> to vector<5x16xf32>
    %c30_38 = arith.constant 30 : index
    %c16_39 = arith.constant 16 : index
    %69 = vector.load %arg12[%c30_38, %c16_39] : memref<50x256xf32, #tpu.memory_space<vmem>>, vector<5x16xf32>
    tpu.vector_store %arg12[%c30_38, %c16_39], %68 {strides = array<i32>} : memref<50x256xf32, #tpu.memory_space<vmem>>, vector<5x16xf32>,
    %70 = vector.extract_strided_slice %35 {offsets = [259, 0], sizes = [5, 16], strides = [1, 1]} : vector<392x16xf32> to vector<5x16xf32>
    %c35_40 = arith.constant 35 : index
    %c16_41 = arith.constant 16 : index
    %71 = vector.load %arg12[%c35_40, %c16_41] : memref<50x256xf32, #tpu.memory_space<vmem>>, vector<5x16xf32>
    tpu.vector_store %arg12[%c35_40, %c16_41], %70 {strides = array<i32>} : memref<50x256xf32, #tpu.memory_space<vmem>>, vector<5x16xf32>,
    %72 = vector.extract_strided_slice %35 {offsets = [266, 0], sizes = [5, 16], strides = [1, 1]} : vector<392x16xf32> to vector<5x16xf32>
    %c40_42 = arith.constant 40 : index
    %c16_43 = arith.constant 16 : index
    %73 = vector.load %arg12[%c40_42, %c16_43] : memref<50x256xf32, #tpu.memory_space<vmem>>, vector<5x16xf32>
    tpu.vector_store %arg12[%c40_42, %c16_43], %72 {strides = array<i32>} : memref<50x256xf32, #tpu.memory_space<vmem>>, vector<5x16xf32>,
    %74 = vector.extract_strided_slice %35 {offsets = [273, 0], sizes = [5, 16], strides = [1, 1]} : vector<392x16xf32> to vector<5x16xf32>
    %c45_44 = arith.constant 45 : index
    %c16_45 = arith.constant 16 : index
    %75 = vector.load %arg12[%c45_44, %c16_45] : memref<50x256xf32, #tpu.memory_space<vmem>>, vector<5x16xf32>
    tpu.vector_store %arg12[%c45_44, %c16_45], %74 {strides = array<i32>} : memref<50x256xf32, #tpu.memory_space<vmem>>, vector<5x16xf32>,
    %76 = vector.extract_strided_slice %35 {offsets = [1, 0], sizes = [5, 16], strides = [1, 1]} : vector<392x16xf32> to vector<5x16xf32>
    %c0_46 = arith.constant 0 : index
    %c32 = arith.constant 32 : index
    %77 = vector.load %arg12[%c0_46, %c32] : memref<50x256xf32, #tpu.memory_space<vmem>>, vector<5x16xf32>
    tpu.vector_store %arg12[%c0_46, %c32], %76 {strides = array<i32>} : memref<50x256xf32, #tpu.memory_space<vmem>>, vector<5x16xf32>,
    %78 = vector.extract_strided_slice %35 {offsets = [8, 0], sizes = [5, 16], strides = [1, 1]} : vector<392x16xf32> to vector<5x16xf32>
    %c5_47 = arith.constant 5 : index
    %c32_48 = arith.constant 32 : index
    %79 = vector.load %arg12[%c5_47, %c32_48] : memref<50x256xf32, #tpu.memory_space<vmem>>, vector<5x16xf32>
    tpu.vector_store %arg12[%c5_47, %c32_48], %78 {strides = array<i32>} : memref<50x256xf32, #tpu.memory_space<vmem>>, vector<5x16xf32>,
    %80 = vector.extract_strided_slice %35 {offsets = [15, 0], sizes = [5, 16], strides = [1, 1]} : vector<392x16xf32> to vector<5x16xf32>
    %c10_49 = arith.constant 10 : index
    %c32_50 = arith.constant 32 : index
    %81 = vector.load %arg12[%c10_49, %c32_50] : memref<50x256xf32, #tpu.memory_space<vmem>>, vector<5x16xf32>
    tpu.vector_store %arg12[%c10_49, %c32_50], %80 {strides = array<i32>} : memref<50x256xf32, #tpu.memory_space<vmem>>, vector<5x16xf32>,
    %82 = vector.extract_strided_slice %35 {offsets = [22, 0], sizes = [5, 16], strides = [1, 1]} : vector<392x16xf32> to vector<5x16xf32>
    %c15_51 = arith.constant 15 : index
    %c32_52 = arith.constant 32 : index
    %83 = vector.load %arg12[%c15_51, %c32_52] : memref<50x256xf32, #tpu.memory_space<vmem>>, vector<5x16xf32>
    tpu.vector_store %arg12[%c15_51, %c32_52], %82 {strides = array<i32>} : memref<50x256xf32, #tpu.memory_space<vmem>>, vector<5x16xf32>,
    %84 = vector.extract_strided_slice %35 {offsets = [29, 0], sizes = [5, 16], strides = [1, 1]} : vector<392x16xf32> to vector<5x16xf32>
    %c20_53 = arith.constant 20 : index
    %c32_54 = arith.constant 32 : index
    %85 = vector.load %arg12[%c20_53, %c32_54] : memref<50x256xf32, #tpu.memory_space<vmem>>, vector<5x16xf32>
    tpu.vector_store %arg12[%c20_53, %c32_54], %84 {strides = array<i32>} : memref<50x256xf32, #tpu.memory_space<vmem>>, vector<5x16xf32>,
    %86 = vector.extract_strided_slice %35 {offsets = [197, 0], sizes = [5, 16], strides = [1, 1]} : vector<392x16xf32> to vector<5x16xf32>
    %c25_55 = arith.constant 25 : index
    %c32_56 = arith.constant 32 : index
    %87 = vector.load %arg12[%c25_55, %c32_56] : memref<50x256xf32, #tpu.memory_space<vmem>>, vector<5x16xf32>
    tpu.vector_store %arg12[%c25_55, %c32_56], %86 {strides = array<i32>} : memref<50x256xf32, #tpu.memory_space<vmem>>, vector<5x16xf32>,
    %88 = vector.extract_strided_slice %35 {offsets = [204, 0], sizes = [5, 16], strides = [1, 1]} : vector<392x16xf32> to vector<5x16xf32>
    %c30_57 = arith.constant 30 : index
    %c32_58 = arith.constant 32 : index
    %89 = vector.load %arg12[%c30_57, %c32_58] : memref<50x256xf32, #tpu.memory_space<vmem>>, vector<5x16xf32>
    tpu.vector_store %arg12[%c30_57, %c32_58], %88 {strides = array<i32>} : memref<50x256xf32, #tpu.memory_space<vmem>>, vector<5x16xf32>,
    %90 = vector.extract_strided_slice %35 {offsets = [211, 0], sizes = [5, 16], strides = [1, 1]} : vector<392x16xf32> to vector<5x16xf32>
    %c35_59 = arith.constant 35 : index
    %c32_60 = arith.constant 32 : index
    %91 = vector.load %arg12[%c35_59, %c32_60] : memref<50x256xf32, #tpu.memory_space<vmem>>, vector<5x16xf32>
    tpu.vector_store %arg12[%c35_59, %c32_60], %90 {strides = array<i32>} : memref<50x256xf32, #tpu.memory_space<vmem>>, vector<5x16xf32>,
    %92 = vector.extract_strided_slice %35 {offsets = [218, 0], sizes = [5, 16], strides = [1, 1]} : vector<392x16xf32> to vector<5x16xf32>
    %c40_61 = arith.constant 40 : index
    %c32_62 = arith.constant 32 : index
    %93 = vector.load %arg12[%c40_61, %c32_62] : memref<50x256xf32, #tpu.memory_space<vmem>>, vector<5x16xf32>
    tpu.vector_store %arg12[%c40_61, %c32_62], %92 {strides = array<i32>} : memref<50x256xf32, #tpu.memory_space<vmem>>, vector<5x16xf32>,
    %94 = vector.extract_strided_slice %35 {offsets = [225, 0], sizes = [5, 16], strides = [1, 1]} : vector<392x16xf32> to vector<5x16xf32>
    %c45_63 = arith.constant 45 : index
    %c32_64 = arith.constant 32 : index
    %95 = vector.load %arg12[%c45_63, %c32_64] : memref<50x256xf32, #tpu.memory_space<vmem>>, vector<5x16xf32>
    tpu.vector_store %arg12[%c45_63, %c32_64], %94 {strides = array<i32>} : memref<50x256xf32, #tpu.memory_space<vmem>>, vector<5x16xf32>,
    %96 = vector.extract_strided_slice %35 {offsets = [50, 0], sizes = [5, 16], strides = [1, 1]} : vector<392x16xf32> to vector<5x16xf32>
    %c0_65 = arith.constant 0 : index
    %c48 = arith.constant 48 : index
    %97 = vector.load %arg12[%c0_65, %c48] : memref<50x256xf32, #tpu.memory_space<vmem>>, vector<5x16xf32>
    tpu.vector_store %arg12[%c0_65, %c48], %96 {strides = array<i32>} : memref<50x256xf32, #tpu.memory_space<vmem>>, vector<5x16xf32>,
    %98 = vector.extract_strided_slice %35 {offsets = [57, 0], sizes = [5, 16], strides = [1, 1]} : vector<392x16xf32> to vector<5x16xf32>
    %c5_66 = arith.constant 5 : index
    %c48_67 = arith.constant 48 : index
    %99 = vector.load %arg12[%c5_66, %c48_67] : memref<50x256xf32, #tpu.memory_space<vmem>>, vector<5x16xf32>
    tpu.vector_store %arg12[%c5_66, %c48_67], %98 {strides = array<i32>} : memref<50x256xf32, #tpu.memory_space<vmem>>, vector<5x16xf32>,
    %100 = vector.extract_strided_slice %35 {offsets = [64, 0], sizes = [5, 16], strides = [1, 1]} : vector<392x16xf32> to vector<5x16xf32>
    %c10_68 = arith.constant 10 : index
    %c48_69 = arith.constant 48 : index
    %101 = vector.load %arg12[%c10_68, %c48_69] : memref<50x256xf32, #tpu.memory_space<vmem>>, vector<5x16xf32>
    tpu.vector_store %arg12[%c10_68, %c48_69], %100 {strides = array<i32>} : memref<50x256xf32, #tpu.memory_space<vmem>>, vector<5x16xf32>,
    %102 = vector.extract_strided_slice %35 {offsets = [71, 0], sizes = [5, 16], strides = [1, 1]} : vector<392x16xf32> to vector<5x16xf32>
    %c15_70 = arith.constant 15 : index
    %c48_71 = arith.constant 48 : index
    %103 = vector.load %arg12[%c15_70, %c48_71] : memref<50x256xf32, #tpu.memory_space<vmem>>, vector<5x16xf32>
    tpu.vector_store %arg12[%c15_70, %c48_71], %102 {strides = array<i32>} : memref<50x256xf32, #tpu.memory_space<vmem>>, vector<5x16xf32>,
    %104 = vector.extract_strided_slice %35 {offsets = [78, 0], sizes = [5, 16], strides = [1, 1]} : vector<392x16xf32> to vector<5x16xf32>
    %c20_72 = arith.constant 20 : index
    %c48_73 = arith.constant 48 : index
    %105 = vector.load %arg12[%c20_72, %c48_73] : memref<50x256xf32, #tpu.memory_space<vmem>>, vector<5x16xf32>
    tpu.vector_store %arg12[%c20_72, %c48_73], %104 {strides = array<i32>} : memref<50x256xf32, #tpu.memory_space<vmem>>, vector<5x16xf32>,
    %106 = vector.extract_strided_slice %35 {offsets = [246, 0], sizes = [5, 16], strides = [1, 1]} : vector<392x16xf32> to vector<5x16xf32>
    %c25_74 = arith.constant 25 : index
    %c48_75 = arith.constant 48 : index
    %107 = vector.load %arg12[%c25_74, %c48_75] : memref<50x256xf32, #tpu.memory_space<vmem>>, vector<5x16xf32>
    tpu.vector_store %arg12[%c25_74, %c48_75], %106 {strides = array<i32>} : memref<50x256xf32, #tpu.memory_space<vmem>>, vector<5x16xf32>,
    %108 = vector.extract_strided_slice %35 {offsets = [253, 0], sizes = [5, 16], strides = [1, 1]} : vector<392x16xf32> to vector<5x16xf32>
    %c30_76 = arith.constant 30 : index
    %c48_77 = arith.constant 48 : index
    %109 = vector.load %arg12[%c30_76, %c48_77] : memref<50x256xf32, #tpu.memory_space<vmem>>, vector<5x16xf32>
    tpu.vector_store %arg12[%c30_76, %c48_77], %108 {strides = array<i32>} : memref<50x256xf32, #tpu.memory_space<vmem>>, vector<5x16xf32>,
    %110 = vector.extract_strided_slice %35 {offsets = [260, 0], sizes = [5, 16], strides = [1, 1]} : vector<392x16xf32> to vector<5x16xf32>
    %c35_78 = arith.constant 35 : index
    %c48_79 = arith.constant 48 : index
    %111 = vector.load %arg12[%c35_78, %c48_79] : memref<50x256xf32, #tpu.memory_space<vmem>>, vector<5x16xf32>
    tpu.vector_store %arg12[%c35_78, %c48_79], %110 {strides = array<i32>} : memref<50x256xf32, #tpu.memory_space<vmem>>, vector<5x16xf32>,
    %112 = vector.extract_strided_slice %35 {offsets = [267, 0], sizes = [5, 16], strides = [1, 1]} : vector<392x16xf32> to vector<5x16xf32>
    %c40_80 = arith.constant 40 : index
    %c48_81 = arith.constant 48 : index
    %113 = vector.load %arg12[%c40_80, %c48_81] : memref<50x256xf32, #tpu.memory_space<vmem>>, vector<5x16xf32>
    tpu.vector_store %arg12[%c40_80, %c48_81], %112 {strides = array<i32>} : memref<50x256xf32, #tpu.memory_space<vmem>>, vector<5x16xf32>,
    %114 = vector.extract_strided_slice %35 {offsets = [274, 0], sizes = [5, 16], strides = [1, 1]} : vector<392x16xf32> to vector<5x16xf32>
    %c45_82 = arith.constant 45 : index
    %c48_83 = arith.constant 48 : index
    %115 = vector.load %arg12[%c45_82, %c48_83] : memref<50x256xf32, #tpu.memory_space<vmem>>, vector<5x16xf32>
    tpu.vector_store %arg12[%c45_82, %c48_83], %114 {strides = array<i32>} : memref<50x256xf32, #tpu.memory_space<vmem>>, vector<5x16xf32>,
    %116 = vector.extract_strided_slice %35 {offsets = [98, 0], sizes = [5, 16], strides = [1, 1]} : vector<392x16xf32> to vector<5x16xf32>
    %c0_84 = arith.constant 0 : index
    %c64 = arith.constant 64 : index
    %117 = vector.load %arg12[%c0_84, %c64] : memref<50x256xf32, #tpu.memory_space<vmem>>, vector<5x16xf32>
    tpu.vector_store %arg12[%c0_84, %c64], %116 {strides = array<i32>} : memref<50x256xf32, #tpu.memory_space<vmem>>, vector<5x16xf32>,
    %118 = vector.extract_strided_slice %35 {offsets = [105, 0], sizes = [5, 16], strides = [1, 1]} : vector<392x16xf32> to vector<5x16xf32>
    %c5_85 = arith.constant 5 : index
    %c64_86 = arith.constant 64 : index
    %119 = vector.load %arg12[%c5_85, %c64_86] : memref<50x256xf32, #tpu.memory_space<vmem>>, vector<5x16xf32>
    tpu.vector_store %arg12[%c5_85, %c64_86], %118 {strides = array<i32>} : memref<50x256xf32, #tpu.memory_space<vmem>>, vector<5x16xf32>,
    %120 = vector.extract_strided_slice %35 {offsets = [112, 0], sizes = [5, 16], strides = [1, 1]} : vector<392x16xf32> to vector<5x16xf32>
    %c10_87 = arith.constant 10 : index
    %c64_88 = arith.constant 64 : index
    %121 = vector.load %arg12[%c10_87, %c64_88] : memref<50x256xf32, #tpu.memory_space<vmem>>, vector<5x16xf32>
    tpu.vector_store %arg12[%c10_87, %c64_88], %120 {strides = array<i32>} : memref<50x256xf32, #tpu.memory_space<vmem>>, vector<5x16xf32>,
    %122 = vector.extract_strided_slice %35 {offsets = [119, 0], sizes = [5, 16], strides = [1, 1]} : vector<392x16xf32> to vector<5x16xf32>
    %c15_89 = arith.constant 15 : index
    %c64_90 = arith.constant 64 : index
    %123 = vector.load %arg12[%c15_89, %c64_90] : memref<50x256xf32, #tpu.memory_space<vmem>>, vector<5x16xf32>
    tpu.vector_store %arg12[%c15_89, %c64_90], %122 {strides = array<i32>} : memref<50x256xf32, #tpu.memory_space<vmem>>, vector<5x16xf32>,
    %124 = vector.extract_strided_slice %35 {offsets = [126, 0], sizes = [5, 16], strides = [1, 1]} : vector<392x16xf32> to vector<5x16xf32>
    %c20_91 = arith.constant 20 : index
    %c64_92 = arith.constant 64 : index
    %125 = vector.load %arg12[%c20_91, %c64_92] : memref<50x256xf32, #tpu.memory_space<vmem>>, vector<5x16xf32>
    tpu.vector_store %arg12[%c20_91, %c64_92], %124 {strides = array<i32>} : memref<50x256xf32, #tpu.memory_space<vmem>>, vector<5x16xf32>,
    %126 = vector.extract_strided_slice %35 {offsets = [294, 0], sizes = [5, 16], strides = [1, 1]} : vector<392x16xf32> to vector<5x16xf32>
    %c25_93 = arith.constant 25 : index
    %c64_94 = arith.constant 64 : index
    %127 = vector.load %arg12[%c25_93, %c64_94] : memref<50x256xf32, #tpu.memory_space<vmem>>, vector<5x16xf32>
    tpu.vector_store %arg12[%c25_93, %c64_94], %126 {strides = array<i32>} : memref<50x256xf32, #tpu.memory_space<vmem>>, vector<5x16xf32>,
    %128 = vector.extract_strided_slice %35 {offsets = [301, 0], sizes = [5, 16], strides = [1, 1]} : vector<392x16xf32> to vector<5x16xf32>
    %c30_95 = arith.constant 30 : index
    %c64_96 = arith.constant 64 : index
    %129 = vector.load %arg12[%c30_95, %c64_96] : memref<50x256xf32, #tpu.memory_space<vmem>>, vector<5x16xf32>
    tpu.vector_store %arg12[%c30_95, %c64_96], %128 {strides = array<i32>} : memref<50x256xf32, #tpu.memory_space<vmem>>, vector<5x16xf32>,
    %130 = vector.extract_strided_slice %35 {offsets = [308, 0], sizes = [5, 16], strides = [1, 1]} : vector<392x16xf32> to vector<5x16xf32>
    %c35_97 = arith.constant 35 : index
    %c64_98 = arith.constant 64 : index
    %131 = vector.load %arg12[%c35_97, %c64_98] : memref<50x256xf32, #tpu.memory_space<vmem>>, vector<5x16xf32>
    tpu.vector_store %arg12[%c35_97, %c64_98], %130 {strides = array<i32>} : memref<50x256xf32, #tpu.memory_space<vmem>>, vector<5x16xf32>,
    %132 = vector.extract_strided_slice %35 {offsets = [315, 0], sizes = [5, 16], strides = [1, 1]} : vector<392x16xf32> to vector<5x16xf32>
    %c40_99 = arith.constant 40 : index
    %c64_100 = arith.constant 64 : index
    %133 = vector.load %arg12[%c40_99, %c64_100] : memref<50x256xf32, #tpu.memory_space<vmem>>, vector<5x16xf32>
    tpu.vector_store %arg12[%c40_99, %c64_100], %132 {strides = array<i32>} : memref<50x256xf32, #tpu.memory_space<vmem>>, vector<5x16xf32>,
    %134 = vector.extract_strided_slice %35 {offsets = [322, 0], sizes = [5, 16], strides = [1, 1]} : vector<392x16xf32> to vector<5x16xf32>
    %c45_101 = arith.constant 45 : index
    %c64_102 = arith.constant 64 : index
    %135 = vector.load %arg12[%c45_101, %c64_102] : memref<50x256xf32, #tpu.memory_space<vmem>>, vector<5x16xf32>
    tpu.vector_store %arg12[%c45_101, %c64_102], %134 {strides = array<i32>} : memref<50x256xf32, #tpu.memory_space<vmem>>, vector<5x16xf32>,
    %136 = vector.extract_strided_slice %35 {offsets = [147, 0], sizes = [5, 16], strides = [1, 1]} : vector<392x16xf32> to vector<5x16xf32>
    %c0_103 = arith.constant 0 : index
    %c80 = arith.constant 80 : index
    %137 = vector.load %arg12[%c0_103, %c80] : memref<50x256xf32, #tpu.memory_space<vmem>>, vector<5x16xf32>
    tpu.vector_store %arg12[%c0_103, %c80], %136 {strides = array<i32>} : memref<50x256xf32, #tpu.memory_space<vmem>>, vector<5x16xf32>,
    %138 = vector.extract_strided_slice %35 {offsets = [154, 0], sizes = [5, 16], strides = [1, 1]} : vector<392x16xf32> to vector<5x16xf32>
    %c5_104 = arith.constant 5 : index
    %c80_105 = arith.constant 80 : index
    %139 = vector.load %arg12[%c5_104, %c80_105] : memref<50x256xf32, #tpu.memory_space<vmem>>, vector<5x16xf32>
    tpu.vector_store %arg12[%c5_104, %c80_105], %138 {strides = array<i32>} : memref<50x256xf32, #tpu.memory_space<vmem>>, vector<5x16xf32>,
    %140 = vector.extract_strided_slice %35 {offsets = [161, 0], sizes = [5, 16], strides = [1, 1]} : vector<392x16xf32> to vector<5x16xf32>
    %c10_106 = arith.constant 10 : index
    %c80_107 = arith.constant 80 : index
    %141 = vector.load %arg12[%c10_106, %c80_107] : memref<50x256xf32, #tpu.memory_space<vmem>>, vector<5x16xf32>
    tpu.vector_store %arg12[%c10_106, %c80_107], %140 {strides = array<i32>} : memref<50x256xf32, #tpu.memory_space<vmem>>, vector<5x16xf32>,
    %142 = vector.extract_strided_slice %35 {offsets = [168, 0], sizes = [5, 16], strides = [1, 1]} : vector<392x16xf32> to vector<5x16xf32>
    %c15_108 = arith.constant 15 : index
    %c80_109 = arith.constant 80 : index
    %143 = vector.load %arg12[%c15_108, %c80_109] : memref<50x256xf32, #tpu.memory_space<vmem>>, vector<5x16xf32>
    tpu.vector_store %arg12[%c15_108, %c80_109], %142 {strides = array<i32>} : memref<50x256xf32, #tpu.memory_space<vmem>>, vector<5x16xf32>,
    %144 = vector.extract_strided_slice %35 {offsets = [175, 0], sizes = [5, 16], strides = [1, 1]} : vector<392x16xf32> to vector<5x16xf32>
    %c20_110 = arith.constant 20 : index
    %c80_111 = arith.constant 80 : index
    %145 = vector.load %arg12[%c20_110, %c80_111] : memref<50x256xf32, #tpu.memory_space<vmem>>, vector<5x16xf32>
    tpu.vector_store %arg12[%c20_110, %c80_111], %144 {strides = array<i32>} : memref<50x256xf32, #tpu.memory_space<vmem>>, vector<5x16xf32>,
    %146 = vector.extract_strided_slice %35 {offsets = [343, 0], sizes = [5, 16], strides = [1, 1]} : vector<392x16xf32> to vector<5x16xf32>
    %c25_112 = arith.constant 25 : index
    %c80_113 = arith.constant 80 : index
    %147 = vector.load %arg12[%c25_112, %c80_113] : memref<50x256xf32, #tpu.memory_space<vmem>>, vector<5x16xf32>
    tpu.vector_store %arg12[%c25_112, %c80_113], %146 {strides = array<i32>} : memref<50x256xf32, #tpu.memory_space<vmem>>, vector<5x16xf32>,
    %148 = vector.extract_strided_slice %35 {offsets = [350, 0], sizes = [5, 16], strides = [1, 1]} : vector<392x16xf32> to vector<5x16xf32>
    %c30_114 = arith.constant 30 : index
    %c80_115 = arith.constant 80 : index
    %149 = vector.load %arg12[%c30_114, %c80_115] : memref<50x256xf32, #tpu.memory_space<vmem>>, vector<5x16xf32>
    tpu.vector_store %arg12[%c30_114, %c80_115], %148 {strides = array<i32>} : memref<50x256xf32, #tpu.memory_space<vmem>>, vector<5x16xf32>,
    %150 = vector.extract_strided_slice %35 {offsets = [357, 0], sizes = [5, 16], strides = [1, 1]} : vector<392x16xf32> to vector<5x16xf32>
    %c35_116 = arith.constant 35 : index
    %c80_117 = arith.constant 80 : index
    %151 = vector.load %arg12[%c35_116, %c80_117] : memref<50x256xf32, #tpu.memory_space<vmem>>, vector<5x16xf32>
    tpu.vector_store %arg12[%c35_116, %c80_117], %150 {strides = array<i32>} : memref<50x256xf32, #tpu.memory_space<vmem>>, vector<5x16xf32>,
    %152 = vector.extract_strided_slice %35 {offsets = [364, 0], sizes = [5, 16], strides = [1, 1]} : vector<392x16xf32> to vector<5x16xf32>
    %c40_118 = arith.constant 40 : index
    %c80_119 = arith.constant 80 : index
    %153 = vector.load %arg12[%c40_118, %c80_119] : memref<50x256xf32, #tpu.memory_space<vmem>>, vector<5x16xf32>
    tpu.vector_store %arg12[%c40_118, %c80_119], %152 {strides = array<i32>} : memref<50x256xf32, #tpu.memory_space<vmem>>, vector<5x16xf32>,
    %154 = vector.extract_strided_slice %35 {offsets = [371, 0], sizes = [5, 16], strides = [1, 1]} : vector<392x16xf32> to vector<5x16xf32>
    %c45_120 = arith.constant 45 : index
    %c80_121 = arith.constant 80 : index
    %155 = vector.load %arg12[%c45_120, %c80_121] : memref<50x256xf32, #tpu.memory_space<vmem>>, vector<5x16xf32>
    tpu.vector_store %arg12[%c45_120, %c80_121], %154 {strides = array<i32>} : memref<50x256xf32, #tpu.memory_space<vmem>>, vector<5x16xf32>,
    %156 = vector.extract_strided_slice %35 {offsets = [99, 0], sizes = [5, 16], strides = [1, 1]} : vector<392x16xf32> to vector<5x16xf32>
    %c0_122 = arith.constant 0 : index
    %c96 = arith.constant 96 : index
    %157 = vector.load %arg12[%c0_122, %c96] : memref<50x256xf32, #tpu.memory_space<vmem>>, vector<5x16xf32>
    tpu.vector_store %arg12[%c0_122, %c96], %156 {strides = array<i32>} : memref<50x256xf32, #tpu.memory_space<vmem>>, vector<5x16xf32>,
    %158 = vector.extract_strided_slice %35 {offsets = [106, 0], sizes = [5, 16], strides = [1, 1]} : vector<392x16xf32> to vector<5x16xf32>
    %c5_123 = arith.constant 5 : index
    %c96_124 = arith.constant 96 : index
    %159 = vector.load %arg12[%c5_123, %c96_124] : memref<50x256xf32, #tpu.memory_space<vmem>>, vector<5x16xf32>
    tpu.vector_store %arg12[%c5_123, %c96_124], %158 {strides = array<i32>} : memref<50x256xf32, #tpu.memory_space<vmem>>, vector<5x16xf32>,
    %160 = vector.extract_strided_slice %35 {offsets = [113, 0], sizes = [5, 16], strides = [1, 1]} : vector<392x16xf32> to vector<5x16xf32>
    %c10_125 = arith.constant 10 : index
    %c96_126 = arith.constant 96 : index
    %161 = vector.load %arg12[%c10_125, %c96_126] : memref<50x256xf32, #tpu.memory_space<vmem>>, vector<5x16xf32>
    tpu.vector_store %arg12[%c10_125, %c96_126], %160 {strides = array<i32>} : memref<50x256xf32, #tpu.memory_space<vmem>>, vector<5x16xf32>,
    %162 = vector.extract_strided_slice %35 {offsets = [120, 0], sizes = [5, 16], strides = [1, 1]} : vector<392x16xf32> to vector<5x16xf32>
    %c15_127 = arith.constant 15 : index
    %c96_128 = arith.constant 96 : index
    %163 = vector.load %arg12[%c15_127, %c96_128] : memref<50x256xf32, #tpu.memory_space<vmem>>, vector<5x16xf32>
    tpu.vector_store %arg12[%c15_127, %c96_128], %162 {strides = array<i32>} : memref<50x256xf32, #tpu.memory_space<vmem>>, vector<5x16xf32>,
    %164 = vector.extract_strided_slice %35 {offsets = [127, 0], sizes = [5, 16], strides = [1, 1]} : vector<392x16xf32> to vector<5x16xf32>
    %c20_129 = arith.constant 20 : index
    %c96_130 = arith.constant 96 : index
    %165 = vector.load %arg12[%c20_129, %c96_130] : memref<50x256xf32, #tpu.memory_space<vmem>>, vector<5x16xf32>
    tpu.vector_store %arg12[%c20_129, %c96_130], %164 {strides = array<i32>} : memref<50x256xf32, #tpu.memory_space<vmem>>, vector<5x16xf32>,
    %166 = vector.extract_strided_slice %35 {offsets = [295, 0], sizes = [5, 16], strides = [1, 1]} : vector<392x16xf32> to vector<5x16xf32>
    %c25_131 = arith.constant 25 : index
    %c96_132 = arith.constant 96 : index
    %167 = vector.load %arg12[%c25_131, %c96_132] : memref<50x256xf32, #tpu.memory_space<vmem>>, vector<5x16xf32>
    tpu.vector_store %arg12[%c25_131, %c96_132], %166 {strides = array<i32>} : memref<50x256xf32, #tpu.memory_space<vmem>>, vector<5x16xf32>,
    %168 = vector.extract_strided_slice %35 {offsets = [302, 0], sizes = [5, 16], strides = [1, 1]} : vector<392x16xf32> to vector<5x16xf32>
    %c30_133 = arith.constant 30 : index
    %c96_134 = arith.constant 96 : index
    %169 = vector.load %arg12[%c30_133, %c96_134] : memref<50x256xf32, #tpu.memory_space<vmem>>, vector<5x16xf32>
    tpu.vector_store %arg12[%c30_133, %c96_134], %168 {strides = array<i32>} : memref<50x256xf32, #tpu.memory_space<vmem>>, vector<5x16xf32>,
    %170 = vector.extract_strided_slice %35 {offsets = [309, 0], sizes = [5, 16], strides = [1, 1]} : vector<392x16xf32> to vector<5x16xf32>
    %c35_135 = arith.constant 35 : index
    %c96_136 = arith.constant 96 : index
    %171 = vector.load %arg12[%c35_135, %c96_136] : memref<50x256xf32, #tpu.memory_space<vmem>>, vector<5x16xf32>
    tpu.vector_store %arg12[%c35_135, %c96_136], %170 {strides = array<i32>} : memref<50x256xf32, #tpu.memory_space<vmem>>, vector<5x16xf32>,
    %172 = vector.extract_strided_slice %35 {offsets = [316, 0], sizes = [5, 16], strides = [1, 1]} : vector<392x16xf32> to vector<5x16xf32>
    %c40_137 = arith.constant 40 : index
    %c96_138 = arith.constant 96 : index
    %173 = vector.load %arg12[%c40_137, %c96_138] : memref<50x256xf32, #tpu.memory_space<vmem>>, vector<5x16xf32>
    tpu.vector_store %arg12[%c40_137, %c96_138], %172 {strides = array<i32>} : memref<50x256xf32, #tpu.memory_space<vmem>>, vector<5x16xf32>,
    %174 = vector.extract_strided_slice %35 {offsets = [323, 0], sizes = [5, 16], strides = [1, 1]} : vector<392x16xf32> to vector<5x16xf32>
    %c45_139 = arith.constant 45 : index
    %c96_140 = arith.constant 96 : index
    %175 = vector.load %arg12[%c45_139, %c96_140] : memref<50x256xf32, #tpu.memory_space<vmem>>, vector<5x16xf32>
    tpu.vector_store %arg12[%c45_139, %c96_140], %174 {strides = array<i32>} : memref<50x256xf32, #tpu.memory_space<vmem>>, vector<5x16xf32>,
    %176 = vector.extract_strided_slice %35 {offsets = [148, 0], sizes = [5, 16], strides = [1, 1]} : vector<392x16xf32> to vector<5x16xf32>
    %c0_141 = arith.constant 0 : index
    %c112 = arith.constant 112 : index
    %177 = vector.load %arg12[%c0_141, %c112] : memref<50x256xf32, #tpu.memory_space<vmem>>, vector<5x16xf32>
    tpu.vector_store %arg12[%c0_141, %c112], %176 {strides = array<i32>} : memref<50x256xf32, #tpu.memory_space<vmem>>, vector<5x16xf32>,
    %178 = vector.extract_strided_slice %35 {offsets = [155, 0], sizes = [5, 16], strides = [1, 1]} : vector<392x16xf32> to vector<5x16xf32>
    %c5_142 = arith.constant 5 : index
    %c112_143 = arith.constant 112 : index
    %179 = vector.load %arg12[%c5_142, %c112_143] : memref<50x256xf32, #tpu.memory_space<vmem>>, vector<5x16xf32>
    tpu.vector_store %arg12[%c5_142, %c112_143], %178 {strides = array<i32>} : memref<50x256xf32, #tpu.memory_space<vmem>>, vector<5x16xf32>,
    %180 = vector.extract_strided_slice %35 {offsets = [162, 0], sizes = [5, 16], strides = [1, 1]} : vector<392x16xf32> to vector<5x16xf32>
    %c10_144 = arith.constant 10 : index
    %c112_145 = arith.constant 112 : index
    %181 = vector.load %arg12[%c10_144, %c112_145] : memref<50x256xf32, #tpu.memory_space<vmem>>, vector<5x16xf32>
    tpu.vector_store %arg12[%c10_144, %c112_145], %180 {strides = array<i32>} : memref<50x256xf32, #tpu.memory_space<vmem>>, vector<5x16xf32>,
    %182 = vector.extract_strided_slice %35 {offsets = [169, 0], sizes = [5, 16], strides = [1, 1]} : vector<392x16xf32> to vector<5x16xf32>
    %c15_146 = arith.constant 15 : index
    %c112_147 = arith.constant 112 : index
    %183 = vector.load %arg12[%c15_146, %c112_147] : memref<50x256xf32, #tpu.memory_space<vmem>>, vector<5x16xf32>
    tpu.vector_store %arg12[%c15_146, %c112_147], %182 {strides = array<i32>} : memref<50x256xf32, #tpu.memory_space<vmem>>, vector<5x16xf32>,
    %184 = vector.extract_strided_slice %35 {offsets = [176, 0], sizes = [5, 16], strides = [1, 1]} : vector<392x16xf32> to vector<5x16xf32>
    %c20_148 = arith.constant 20 : index
    %c112_149 = arith.constant 112 : index
    %185 = vector.load %arg12[%c20_148, %c112_149] : memref<50x256xf32, #tpu.memory_space<vmem>>, vector<5x16xf32>
    tpu.vector_store %arg12[%c20_148, %c112_149], %184 {strides = array<i32>} : memref<50x256xf32, #tpu.memory_space<vmem>>, vector<5x16xf32>,
    %186 = vector.extract_strided_slice %35 {offsets = [344, 0], sizes = [5, 16], strides = [1, 1]} : vector<392x16xf32> to vector<5x16xf32>
    %c25_150 = arith.constant 25 : index
    %c112_151 = arith.constant 112 : index
    %187 = vector.load %arg12[%c25_150, %c112_151] : memref<50x256xf32, #tpu.memory_space<vmem>>, vector<5x16xf32>
    tpu.vector_store %arg12[%c25_150, %c112_151], %186 {strides = array<i32>} : memref<50x256xf32, #tpu.memory_space<vmem>>, vector<5x16xf32>,
    %188 = vector.extract_strided_slice %35 {offsets = [351, 0], sizes = [5, 16], strides = [1, 1]} : vector<392x16xf32> to vector<5x16xf32>
    %c30_152 = arith.constant 30 : index
    %c112_153 = arith.constant 112 : index
    %189 = vector.load %arg12[%c30_152, %c112_153] : memref<50x256xf32, #tpu.memory_space<vmem>>, vector<5x16xf32>
    tpu.vector_store %arg12[%c30_152, %c112_153], %188 {strides = array<i32>} : memref<50x256xf32, #tpu.memory_space<vmem>>, vector<5x16xf32>,
    %190 = vector.extract_strided_slice %35 {offsets = [358, 0], sizes = [5, 16], strides = [1, 1]} : vector<392x16xf32> to vector<5x16xf32>
    %c35_154 = arith.constant 35 : index
    %c112_155 = arith.constant 112 : index
    %191 = vector.load %arg12[%c35_154, %c112_155] : memref<50x256xf32, #tpu.memory_space<vmem>>, vector<5x16xf32>
    tpu.vector_store %arg12[%c35_154, %c112_155], %190 {strides = array<i32>} : memref<50x256xf32, #tpu.memory_space<vmem>>, vector<5x16xf32>,
    %192 = vector.extract_strided_slice %35 {offsets = [365, 0], sizes = [5, 16], strides = [1, 1]} : vector<392x16xf32> to vector<5x16xf32>
    %c40_156 = arith.constant 40 : index
    %c112_157 = arith.constant 112 : index
    %193 = vector.load %arg12[%c40_156, %c112_157] : memref<50x256xf32, #tpu.memory_space<vmem>>, vector<5x16xf32>
    tpu.vector_store %arg12[%c40_156, %c112_157], %192 {strides = array<i32>} : memref<50x256xf32, #tpu.memory_space<vmem>>, vector<5x16xf32>,
    %194 = vector.extract_strided_slice %35 {offsets = [372, 0], sizes = [5, 16], strides = [1, 1]} : vector<392x16xf32> to vector<5x16xf32>
    %c45_158 = arith.constant 45 : index
    %c112_159 = arith.constant 112 : index
    %195 = vector.load %arg12[%c45_158, %c112_159] : memref<50x256xf32, #tpu.memory_space<vmem>>, vector<5x16xf32>
    tpu.vector_store %arg12[%c45_158, %c112_159], %194 {strides = array<i32>} : memref<50x256xf32, #tpu.memory_space<vmem>>, vector<5x16xf32>,
    %196 = vector.extract_strided_slice %35 {offsets = [7, 0], sizes = [5, 16], strides = [1, 1]} : vector<392x16xf32> to vector<5x16xf32>
    %c0_160 = arith.constant 0 : index
    %c128 = arith.constant 128 : index
    %197 = vector.load %arg12[%c0_160, %c128] : memref<50x256xf32, #tpu.memory_space<vmem>>, vector<5x16xf32>
    tpu.vector_store %arg12[%c0_160, %c128], %196 {strides = array<i32>} : memref<50x256xf32, #tpu.memory_space<vmem>>, vector<5x16xf32>,
    %198 = vector.extract_strided_slice %35 {offsets = [14, 0], sizes = [5, 16], strides = [1, 1]} : vector<392x16xf32> to vector<5x16xf32>
    %c5_161 = arith.constant 5 : index
    %c128_162 = arith.constant 128 : index
    %199 = vector.load %arg12[%c5_161, %c128_162] : memref<50x256xf32, #tpu.memory_space<vmem>>, vector<5x16xf32>
    tpu.vector_store %arg12[%c5_161, %c128_162], %198 {strides = array<i32>} : memref<50x256xf32, #tpu.memory_space<vmem>>, vector<5x16xf32>,
    %200 = vector.extract_strided_slice %35 {offsets = [21, 0], sizes = [5, 16], strides = [1, 1]} : vector<392x16xf32> to vector<5x16xf32>
    %c10_163 = arith.constant 10 : index
    %c128_164 = arith.constant 128 : index
    %201 = vector.load %arg12[%c10_163, %c128_164] : memref<50x256xf32, #tpu.memory_space<vmem>>, vector<5x16xf32>
    tpu.vector_store %arg12[%c10_163, %c128_164], %200 {strides = array<i32>} : memref<50x256xf32, #tpu.memory_space<vmem>>, vector<5x16xf32>,
    %202 = vector.extract_strided_slice %35 {offsets = [28, 0], sizes = [5, 16], strides = [1, 1]} : vector<392x16xf32> to vector<5x16xf32>
    %c15_165 = arith.constant 15 : index
    %c128_166 = arith.constant 128 : index
    %203 = vector.load %arg12[%c15_165, %c128_166] : memref<50x256xf32, #tpu.memory_space<vmem>>, vector<5x16xf32>
    tpu.vector_store %arg12[%c15_165, %c128_166], %202 {strides = array<i32>} : memref<50x256xf32, #tpu.memory_space<vmem>>, vector<5x16xf32>,
    %204 = vector.extract_strided_slice %35 {offsets = [35, 0], sizes = [5, 16], strides = [1, 1]} : vector<392x16xf32> to vector<5x16xf32>
    %c20_167 = arith.constant 20 : index
    %c128_168 = arith.constant 128 : index
    %205 = vector.load %arg12[%c20_167, %c128_168] : memref<50x256xf32, #tpu.memory_space<vmem>>, vector<5x16xf32>
    tpu.vector_store %arg12[%c20_167, %c128_168], %204 {strides = array<i32>} : memref<50x256xf32, #tpu.memory_space<vmem>>, vector<5x16xf32>,
    %206 = vector.extract_strided_slice %35 {offsets = [203, 0], sizes = [5, 16], strides = [1, 1]} : vector<392x16xf32> to vector<5x16xf32>
    %c25_169 = arith.constant 25 : index
    %c128_170 = arith.constant 128 : index
    %207 = vector.load %arg12[%c25_169, %c128_170] : memref<50x256xf32, #tpu.memory_space<vmem>>, vector<5x16xf32>
    tpu.vector_store %arg12[%c25_169, %c128_170], %206 {strides = array<i32>} : memref<50x256xf32, #tpu.memory_space<vmem>>, vector<5x16xf32>,
    %208 = vector.extract_strided_slice %35 {offsets = [210, 0], sizes = [5, 16], strides = [1, 1]} : vector<392x16xf32> to vector<5x16xf32>
    %c30_171 = arith.constant 30 : index
    %c128_172 = arith.constant 128 : index
    %209 = vector.load %arg12[%c30_171, %c128_172] : memref<50x256xf32, #tpu.memory_space<vmem>>, vector<5x16xf32>
    tpu.vector_store %arg12[%c30_171, %c128_172], %208 {strides = array<i32>} : memref<50x256xf32, #tpu.memory_space<vmem>>, vector<5x16xf32>,
    %210 = vector.extract_strided_slice %35 {offsets = [217, 0], sizes = [5, 16], strides = [1, 1]} : vector<392x16xf32> to vector<5x16xf32>
    %c35_173 = arith.constant 35 : index
    %c128_174 = arith.constant 128 : index
    %211 = vector.load %arg12[%c35_173, %c128_174] : memref<50x256xf32, #tpu.memory_space<vmem>>, vector<5x16xf32>
    tpu.vector_store %arg12[%c35_173, %c128_174], %210 {strides = array<i32>} : memref<50x256xf32, #tpu.memory_space<vmem>>, vector<5x16xf32>,
    %212 = vector.extract_strided_slice %35 {offsets = [224, 0], sizes = [5, 16], strides = [1, 1]} : vector<392x16xf32> to vector<5x16xf32>
    %c40_175 = arith.constant 40 : index
    %c128_176 = arith.constant 128 : index
    %213 = vector.load %arg12[%c40_175, %c128_176] : memref<50x256xf32, #tpu.memory_space<vmem>>, vector<5x16xf32>
    tpu.vector_store %arg12[%c40_175, %c128_176], %212 {strides = array<i32>} : memref<50x256xf32, #tpu.memory_space<vmem>>, vector<5x16xf32>,
    %214 = vector.extract_strided_slice %35 {offsets = [231, 0], sizes = [5, 16], strides = [1, 1]} : vector<392x16xf32> to vector<5x16xf32>
    %c45_177 = arith.constant 45 : index
    %c128_178 = arith.constant 128 : index
    %215 = vector.load %arg12[%c45_177, %c128_178] : memref<50x256xf32, #tpu.memory_space<vmem>>, vector<5x16xf32>
    tpu.vector_store %arg12[%c45_177, %c128_178], %214 {strides = array<i32>} : memref<50x256xf32, #tpu.memory_space<vmem>>, vector<5x16xf32>,
    %216 = vector.extract_strided_slice %35 {offsets = [56, 0], sizes = [5, 16], strides = [1, 1]} : vector<392x16xf32> to vector<5x16xf32>
    %c0_179 = arith.constant 0 : index
    %c144 = arith.constant 144 : index
    %217 = vector.load %arg12[%c0_179, %c144] : memref<50x256xf32, #tpu.memory_space<vmem>>, vector<5x16xf32>
    tpu.vector_store %arg12[%c0_179, %c144], %216 {strides = array<i32>} : memref<50x256xf32, #tpu.memory_space<vmem>>, vector<5x16xf32>,
    %218 = vector.extract_strided_slice %35 {offsets = [63, 0], sizes = [5, 16], strides = [1, 1]} : vector<392x16xf32> to vector<5x16xf32>
    %c5_180 = arith.constant 5 : index
    %c144_181 = arith.constant 144 : index
    %219 = vector.load %arg12[%c5_180, %c144_181] : memref<50x256xf32, #tpu.memory_space<vmem>>, vector<5x16xf32>
    tpu.vector_store %arg12[%c5_180, %c144_181], %218 {strides = array<i32>} : memref<50x256xf32, #tpu.memory_space<vmem>>, vector<5x16xf32>,
    %220 = vector.extract_strided_slice %35 {offsets = [70, 0], sizes = [5, 16], strides = [1, 1]} : vector<392x16xf32> to vector<5x16xf32>
    %c10_182 = arith.constant 10 : index
    %c144_183 = arith.constant 144 : index
    %221 = vector.load %arg12[%c10_182, %c144_183] : memref<50x256xf32, #tpu.memory_space<vmem>>, vector<5x16xf32>
    tpu.vector_store %arg12[%c10_182, %c144_183], %220 {strides = array<i32>} : memref<50x256xf32, #tpu.memory_space<vmem>>, vector<5x16xf32>,
    %222 = vector.extract_strided_slice %35 {offsets = [77, 0], sizes = [5, 16], strides = [1, 1]} : vector<392x16xf32> to vector<5x16xf32>
    %c15_184 = arith.constant 15 : index
    %c144_185 = arith.constant 144 : index
    %223 = vector.load %arg12[%c15_184, %c144_185] : memref<50x256xf32, #tpu.memory_space<vmem>>, vector<5x16xf32>
    tpu.vector_store %arg12[%c15_184, %c144_185], %222 {strides = array<i32>} : memref<50x256xf32, #tpu.memory_space<vmem>>, vector<5x16xf32>,
    %224 = vector.extract_strided_slice %35 {offsets = [84, 0], sizes = [5, 16], strides = [1, 1]} : vector<392x16xf32> to vector<5x16xf32>
    %c20_186 = arith.constant 20 : index
    %c144_187 = arith.constant 144 : index
    %225 = vector.load %arg12[%c20_186, %c144_187] : memref<50x256xf32, #tpu.memory_space<vmem>>, vector<5x16xf32>
    tpu.vector_store %arg12[%c20_186, %c144_187], %224 {strides = array<i32>} : memref<50x256xf32, #tpu.memory_space<vmem>>, vector<5x16xf32>,
    %226 = vector.extract_strided_slice %35 {offsets = [252, 0], sizes = [5, 16], strides = [1, 1]} : vector<392x16xf32> to vector<5x16xf32>
    %c25_188 = arith.constant 25 : index
    %c144_189 = arith.constant 144 : index
    %227 = vector.load %arg12[%c25_188, %c144_189] : memref<50x256xf32, #tpu.memory_space<vmem>>, vector<5x16xf32>
    tpu.vector_store %arg12[%c25_188, %c144_189], %226 {strides = array<i32>} : memref<50x256xf32, #tpu.memory_space<vmem>>, vector<5x16xf32>,
    %228 = vector.extract_strided_slice %35 {offsets = [259, 0], sizes = [5, 16], strides = [1, 1]} : vector<392x16xf32> to vector<5x16xf32>
    %c30_190 = arith.constant 30 : index
    %c144_191 = arith.constant 144 : index
    %229 = vector.load %arg12[%c30_190, %c144_191] : memref<50x256xf32, #tpu.memory_space<vmem>>, vector<5x16xf32>
    tpu.vector_store %arg12[%c30_190, %c144_191], %228 {strides = array<i32>} : memref<50x256xf32, #tpu.memory_space<vmem>>, vector<5x16xf32>,
    %230 = vector.extract_strided_slice %35 {offsets = [266, 0], sizes = [5, 16], strides = [1, 1]} : vector<392x16xf32> to vector<5x16xf32>
    %c35_192 = arith.constant 35 : index
    %c144_193 = arith.constant 144 : index
    %231 = vector.load %arg12[%c35_192, %c144_193] : memref<50x256xf32, #tpu.memory_space<vmem>>, vector<5x16xf32>
    tpu.vector_store %arg12[%c35_192, %c144_193], %230 {strides = array<i32>} : memref<50x256xf32, #tpu.memory_space<vmem>>, vector<5x16xf32>,
    %232 = vector.extract_strided_slice %35 {offsets = [273, 0], sizes = [5, 16], strides = [1, 1]} : vector<392x16xf32> to vector<5x16xf32>
    %c40_194 = arith.constant 40 : index
    %c144_195 = arith.constant 144 : index
    %233 = vector.load %arg12[%c40_194, %c144_195] : memref<50x256xf32, #tpu.memory_space<vmem>>, vector<5x16xf32>
    tpu.vector_store %arg12[%c40_194, %c144_195], %232 {strides = array<i32>} : memref<50x256xf32, #tpu.memory_space<vmem>>, vector<5x16xf32>,
    %234 = vector.extract_strided_slice %35 {offsets = [280, 0], sizes = [5, 16], strides = [1, 1]} : vector<392x16xf32> to vector<5x16xf32>
    %c45_196 = arith.constant 45 : index
    %c144_197 = arith.constant 144 : index
    %235 = vector.load %arg12[%c45_196, %c144_197] : memref<50x256xf32, #tpu.memory_space<vmem>>, vector<5x16xf32>
    tpu.vector_store %arg12[%c45_196, %c144_197], %234 {strides = array<i32>} : memref<50x256xf32, #tpu.memory_space<vmem>>, vector<5x16xf32>,
    %236 = vector.extract_strided_slice %35 {offsets = [8, 0], sizes = [5, 16], strides = [1, 1]} : vector<392x16xf32> to vector<5x16xf32>
    %c0_198 = arith.constant 0 : index
    %c160 = arith.constant 160 : index
    %237 = vector.load %arg12[%c0_198, %c160] : memref<50x256xf32, #tpu.memory_space<vmem>>, vector<5x16xf32>
    tpu.vector_store %arg12[%c0_198, %c160], %236 {strides = array<i32>} : memref<50x256xf32, #tpu.memory_space<vmem>>, vector<5x16xf32>,
    %238 = vector.extract_strided_slice %35 {offsets = [15, 0], sizes = [5, 16], strides = [1, 1]} : vector<392x16xf32> to vector<5x16xf32>
    %c5_199 = arith.constant 5 : index
    %c160_200 = arith.constant 160 : index
    %239 = vector.load %arg12[%c5_199, %c160_200] : memref<50x256xf32, #tpu.memory_space<vmem>>, vector<5x16xf32>
    tpu.vector_store %arg12[%c5_199, %c160_200], %238 {strides = array<i32>} : memref<50x256xf32, #tpu.memory_space<vmem>>, vector<5x16xf32>,
    %240 = vector.extract_strided_slice %35 {offsets = [22, 0], sizes = [5, 16], strides = [1, 1]} : vector<392x16xf32> to vector<5x16xf32>
    %c10_201 = arith.constant 10 : index
    %c160_202 = arith.constant 160 : index
    %241 = vector.load %arg12[%c10_201, %c160_202] : memref<50x256xf32, #tpu.memory_space<vmem>>, vector<5x16xf32>
    tpu.vector_store %arg12[%c10_201, %c160_202], %240 {strides = array<i32>} : memref<50x256xf32, #tpu.memory_space<vmem>>, vector<5x16xf32>,
    %242 = vector.extract_strided_slice %35 {offsets = [29, 0], sizes = [5, 16], strides = [1, 1]} : vector<392x16xf32> to vector<5x16xf32>
    %c15_203 = arith.constant 15 : index
    %c160_204 = arith.constant 160 : index
    %243 = vector.load %arg12[%c15_203, %c160_204] : memref<50x256xf32, #tpu.memory_space<vmem>>, vector<5x16xf32>
    tpu.vector_store %arg12[%c15_203, %c160_204], %242 {strides = array<i32>} : memref<50x256xf32, #tpu.memory_space<vmem>>, vector<5x16xf32>,
    %244 = vector.extract_strided_slice %35 {offsets = [36, 0], sizes = [5, 16], strides = [1, 1]} : vector<392x16xf32> to vector<5x16xf32>
    %c20_205 = arith.constant 20 : index
    %c160_206 = arith.constant 160 : index
    %245 = vector.load %arg12[%c20_205, %c160_206] : memref<50x256xf32, #tpu.memory_space<vmem>>, vector<5x16xf32>
    tpu.vector_store %arg12[%c20_205, %c160_206], %244 {strides = array<i32>} : memref<50x256xf32, #tpu.memory_space<vmem>>, vector<5x16xf32>,
    %246 = vector.extract_strided_slice %35 {offsets = [204, 0], sizes = [5, 16], strides = [1, 1]} : vector<392x16xf32> to vector<5x16xf32>
    %c25_207 = arith.constant 25 : index
    %c160_208 = arith.constant 160 : index
    %247 = vector.load %arg12[%c25_207, %c160_208] : memref<50x256xf32, #tpu.memory_space<vmem>>, vector<5x16xf32>
    tpu.vector_store %arg12[%c25_207, %c160_208], %246 {strides = array<i32>} : memref<50x256xf32, #tpu.memory_space<vmem>>, vector<5x16xf32>,
    %248 = vector.extract_strided_slice %35 {offsets = [211, 0], sizes = [5, 16], strides = [1, 1]} : vector<392x16xf32> to vector<5x16xf32>
    %c30_209 = arith.constant 30 : index
    %c160_210 = arith.constant 160 : index
    %249 = vector.load %arg12[%c30_209, %c160_210] : memref<50x256xf32, #tpu.memory_space<vmem>>, vector<5x16xf32>
    tpu.vector_store %arg12[%c30_209, %c160_210], %248 {strides = array<i32>} : memref<50x256xf32, #tpu.memory_space<vmem>>, vector<5x16xf32>,
    %250 = vector.extract_strided_slice %35 {offsets = [218, 0], sizes = [5, 16], strides = [1, 1]} : vector<392x16xf32> to vector<5x16xf32>
    %c35_211 = arith.constant 35 : index
    %c160_212 = arith.constant 160 : index
    %251 = vector.load %arg12[%c35_211, %c160_212] : memref<50x256xf32, #tpu.memory_space<vmem>>, vector<5x16xf32>
    tpu.vector_store %arg12[%c35_211, %c160_212], %250 {strides = array<i32>} : memref<50x256xf32, #tpu.memory_space<vmem>>, vector<5x16xf32>,
    %252 = vector.extract_strided_slice %35 {offsets = [225, 0], sizes = [5, 16], strides = [1, 1]} : vector<392x16xf32> to vector<5x16xf32>
    %c40_213 = arith.constant 40 : index
    %c160_214 = arith.constant 160 : index
    %253 = vector.load %arg12[%c40_213, %c160_214] : memref<50x256xf32, #tpu.memory_space<vmem>>, vector<5x16xf32>
    tpu.vector_store %arg12[%c40_213, %c160_214], %252 {strides = array<i32>} : memref<50x256xf32, #tpu.memory_space<vmem>>, vector<5x16xf32>,
    %254 = vector.extract_strided_slice %35 {offsets = [232, 0], sizes = [5, 16], strides = [1, 1]} : vector<392x16xf32> to vector<5x16xf32>
    %c45_215 = arith.constant 45 : index
    %c160_216 = arith.constant 160 : index
    %255 = vector.load %arg12[%c45_215, %c160_216] : memref<50x256xf32, #tpu.memory_space<vmem>>, vector<5x16xf32>
    tpu.vector_store %arg12[%c45_215, %c160_216], %254 {strides = array<i32>} : memref<50x256xf32, #tpu.memory_space<vmem>>, vector<5x16xf32>,
    %256 = vector.extract_strided_slice %35 {offsets = [57, 0], sizes = [5, 16], strides = [1, 1]} : vector<392x16xf32> to vector<5x16xf32>
    %c0_217 = arith.constant 0 : index
    %c176 = arith.constant 176 : index
    %257 = vector.load %arg12[%c0_217, %c176] : memref<50x256xf32, #tpu.memory_space<vmem>>, vector<5x16xf32>
    tpu.vector_store %arg12[%c0_217, %c176], %256 {strides = array<i32>} : memref<50x256xf32, #tpu.memory_space<vmem>>, vector<5x16xf32>,
    %258 = vector.extract_strided_slice %35 {offsets = [64, 0], sizes = [5, 16], strides = [1, 1]} : vector<392x16xf32> to vector<5x16xf32>
    %c5_218 = arith.constant 5 : index
    %c176_219 = arith.constant 176 : index
    %259 = vector.load %arg12[%c5_218, %c176_219] : memref<50x256xf32, #tpu.memory_space<vmem>>, vector<5x16xf32>
    tpu.vector_store %arg12[%c5_218, %c176_219], %258 {strides = array<i32>} : memref<50x256xf32, #tpu.memory_space<vmem>>, vector<5x16xf32>,
    %260 = vector.extract_strided_slice %35 {offsets = [71, 0], sizes = [5, 16], strides = [1, 1]} : vector<392x16xf32> to vector<5x16xf32>
    %c10_220 = arith.constant 10 : index
    %c176_221 = arith.constant 176 : index
    %261 = vector.load %arg12[%c10_220, %c176_221] : memref<50x256xf32, #tpu.memory_space<vmem>>, vector<5x16xf32>
    tpu.vector_store %arg12[%c10_220, %c176_221], %260 {strides = array<i32>} : memref<50x256xf32, #tpu.memory_space<vmem>>, vector<5x16xf32>,
    %262 = vector.extract_strided_slice %35 {offsets = [78, 0], sizes = [5, 16], strides = [1, 1]} : vector<392x16xf32> to vector<5x16xf32>
    %c15_222 = arith.constant 15 : index
    %c176_223 = arith.constant 176 : index
    %263 = vector.load %arg12[%c15_222, %c176_223] : memref<50x256xf32, #tpu.memory_space<vmem>>, vector<5x16xf32>
    tpu.vector_store %arg12[%c15_222, %c176_223], %262 {strides = array<i32>} : memref<50x256xf32, #tpu.memory_space<vmem>>, vector<5x16xf32>,
    %264 = vector.extract_strided_slice %35 {offsets = [85, 0], sizes = [5, 16], strides = [1, 1]} : vector<392x16xf32> to vector<5x16xf32>
    %c20_224 = arith.constant 20 : index
    %c176_225 = arith.constant 176 : index
    %265 = vector.load %arg12[%c20_224, %c176_225] : memref<50x256xf32, #tpu.memory_space<vmem>>, vector<5x16xf32>
    tpu.vector_store %arg12[%c20_224, %c176_225], %264 {strides = array<i32>} : memref<50x256xf32, #tpu.memory_space<vmem>>, vector<5x16xf32>,
    %266 = vector.extract_strided_slice %35 {offsets = [253, 0], sizes = [5, 16], strides = [1, 1]} : vector<392x16xf32> to vector<5x16xf32>
    %c25_226 = arith.constant 25 : index
    %c176_227 = arith.constant 176 : index
    %267 = vector.load %arg12[%c25_226, %c176_227] : memref<50x256xf32, #tpu.memory_space<vmem>>, vector<5x16xf32>
    tpu.vector_store %arg12[%c25_226, %c176_227], %266 {strides = array<i32>} : memref<50x256xf32, #tpu.memory_space<vmem>>, vector<5x16xf32>,
    %268 = vector.extract_strided_slice %35 {offsets = [260, 0], sizes = [5, 16], strides = [1, 1]} : vector<392x16xf32> to vector<5x16xf32>
    %c30_228 = arith.constant 30 : index
    %c176_229 = arith.constant 176 : index
    %269 = vector.load %arg12[%c30_228, %c176_229] : memref<50x256xf32, #tpu.memory_space<vmem>>, vector<5x16xf32>
    tpu.vector_store %arg12[%c30_228, %c176_229], %268 {strides = array<i32>} : memref<50x256xf32, #tpu.memory_space<vmem>>, vector<5x16xf32>,
    %270 = vector.extract_strided_slice %35 {offsets = [267, 0], sizes = [5, 16], strides = [1, 1]} : vector<392x16xf32> to vector<5x16xf32>
    %c35_230 = arith.constant 35 : index
    %c176_231 = arith.constant 176 : index
    %271 = vector.load %arg12[%c35_230, %c176_231] : memref<50x256xf32, #tpu.memory_space<vmem>>, vector<5x16xf32>
    tpu.vector_store %arg12[%c35_230, %c176_231], %270 {strides = array<i32>} : memref<50x256xf32, #tpu.memory_space<vmem>>, vector<5x16xf32>,
    %272 = vector.extract_strided_slice %35 {offsets = [274, 0], sizes = [5, 16], strides = [1, 1]} : vector<392x16xf32> to vector<5x16xf32>
    %c40_232 = arith.constant 40 : index
    %c176_233 = arith.constant 176 : index
    %273 = vector.load %arg12[%c40_232, %c176_233] : memref<50x256xf32, #tpu.memory_space<vmem>>, vector<5x16xf32>
    tpu.vector_store %arg12[%c40_232, %c176_233], %272 {strides = array<i32>} : memref<50x256xf32, #tpu.memory_space<vmem>>, vector<5x16xf32>,
    %274 = vector.extract_strided_slice %35 {offsets = [281, 0], sizes = [5, 16], strides = [1, 1]} : vector<392x16xf32> to vector<5x16xf32>
    %c45_234 = arith.constant 45 : index
    %c176_235 = arith.constant 176 : index
    %275 = vector.load %arg12[%c45_234, %c176_235] : memref<50x256xf32, #tpu.memory_space<vmem>>, vector<5x16xf32>
    tpu.vector_store %arg12[%c45_234, %c176_235], %274 {strides = array<i32>} : memref<50x256xf32, #tpu.memory_space<vmem>>, vector<5x16xf32>,
    %276 = vector.extract_strided_slice %35 {offsets = [105, 0], sizes = [5, 16], strides = [1, 1]} : vector<392x16xf32> to vector<5x16xf32>
    %c0_236 = arith.constant 0 : index
    %c192 = arith.constant 192 : index
    %277 = vector.load %arg12[%c0_236, %c192] : memref<50x256xf32, #tpu.memory_space<vmem>>, vector<5x16xf32>
    tpu.vector_store %arg12[%c0_236, %c192], %276 {strides = array<i32>} : memref<50x256xf32, #tpu.memory_space<vmem>>, vector<5x16xf32>,
    %278 = vector.extract_strided_slice %35 {offsets = [112, 0], sizes = [5, 16], strides = [1, 1]} : vector<392x16xf32> to vector<5x16xf32>
    %c5_237 = arith.constant 5 : index
    %c192_238 = arith.constant 192 : index
    %279 = vector.load %arg12[%c5_237, %c192_238] : memref<50x256xf32, #tpu.memory_space<vmem>>, vector<5x16xf32>
    tpu.vector_store %arg12[%c5_237, %c192_238], %278 {strides = array<i32>} : memref<50x256xf32, #tpu.memory_space<vmem>>, vector<5x16xf32>,
    %280 = vector.extract_strided_slice %35 {offsets = [119, 0], sizes = [5, 16], strides = [1, 1]} : vector<392x16xf32> to vector<5x16xf32>
    %c10_239 = arith.constant 10 : index
    %c192_240 = arith.constant 192 : index
    %281 = vector.load %arg12[%c10_239, %c192_240] : memref<50x256xf32, #tpu.memory_space<vmem>>, vector<5x16xf32>
    tpu.vector_store %arg12[%c10_239, %c192_240], %280 {strides = array<i32>} : memref<50x256xf32, #tpu.memory_space<vmem>>, vector<5x16xf32>,
    %282 = vector.extract_strided_slice %35 {offsets = [126, 0], sizes = [5, 16], strides = [1, 1]} : vector<392x16xf32> to vector<5x16xf32>
    %c15_241 = arith.constant 15 : index
    %c192_242 = arith.constant 192 : index
    %283 = vector.load %arg12[%c15_241, %c192_242] : memref<50x256xf32, #tpu.memory_space<vmem>>, vector<5x16xf32>
    tpu.vector_store %arg12[%c15_241, %c192_242], %282 {strides = array<i32>} : memref<50x256xf32, #tpu.memory_space<vmem>>, vector<5x16xf32>,
    %284 = vector.extract_strided_slice %35 {offsets = [133, 0], sizes = [5, 16], strides = [1, 1]} : vector<392x16xf32> to vector<5x16xf32>
    %c20_243 = arith.constant 20 : index
    %c192_244 = arith.constant 192 : index
    %285 = vector.load %arg12[%c20_243, %c192_244] : memref<50x256xf32, #tpu.memory_space<vmem>>, vector<5x16xf32>
    tpu.vector_store %arg12[%c20_243, %c192_244], %284 {strides = array<i32>} : memref<50x256xf32, #tpu.memory_space<vmem>>, vector<5x16xf32>,
    %286 = vector.extract_strided_slice %35 {offsets = [301, 0], sizes = [5, 16], strides = [1, 1]} : vector<392x16xf32> to vector<5x16xf32>
    %c25_245 = arith.constant 25 : index
    %c192_246 = arith.constant 192 : index
    %287 = vector.load %arg12[%c25_245, %c192_246] : memref<50x256xf32, #tpu.memory_space<vmem>>, vector<5x16xf32>
    tpu.vector_store %arg12[%c25_245, %c192_246], %286 {strides = array<i32>} : memref<50x256xf32, #tpu.memory_space<vmem>>, vector<5x16xf32>,
    %288 = vector.extract_strided_slice %35 {offsets = [308, 0], sizes = [5, 16], strides = [1, 1]} : vector<392x16xf32> to vector<5x16xf32>
    %c30_247 = arith.constant 30 : index
    %c192_248 = arith.constant 192 : index
    %289 = vector.load %arg12[%c30_247, %c192_248] : memref<50x256xf32, #tpu.memory_space<vmem>>, vector<5x16xf32>
    tpu.vector_store %arg12[%c30_247, %c192_248], %288 {strides = array<i32>} : memref<50x256xf32, #tpu.memory_space<vmem>>, vector<5x16xf32>,
    %290 = vector.extract_strided_slice %35 {offsets = [315, 0], sizes = [5, 16], strides = [1, 1]} : vector<392x16xf32> to vector<5x16xf32>
    %c35_249 = arith.constant 35 : index
    %c192_250 = arith.constant 192 : index
    %291 = vector.load %arg12[%c35_249, %c192_250] : memref<50x256xf32, #tpu.memory_space<vmem>>, vector<5x16xf32>
    tpu.vector_store %arg12[%c35_249, %c192_250], %290 {strides = array<i32>} : memref<50x256xf32, #tpu.memory_space<vmem>>, vector<5x16xf32>,
    %292 = vector.extract_strided_slice %35 {offsets = [322, 0], sizes = [5, 16], strides = [1, 1]} : vector<392x16xf32> to vector<5x16xf32>
    %c40_251 = arith.constant 40 : index
    %c192_252 = arith.constant 192 : index
    %293 = vector.load %arg12[%c40_251, %c192_252] : memref<50x256xf32, #tpu.memory_space<vmem>>, vector<5x16xf32>
    tpu.vector_store %arg12[%c40_251, %c192_252], %292 {strides = array<i32>} : memref<50x256xf32, #tpu.memory_space<vmem>>, vector<5x16xf32>,
    %294 = vector.extract_strided_slice %35 {offsets = [329, 0], sizes = [5, 16], strides = [1, 1]} : vector<392x16xf32> to vector<5x16xf32>
    %c45_253 = arith.constant 45 : index
    %c192_254 = arith.constant 192 : index
    %295 = vector.load %arg12[%c45_253, %c192_254] : memref<50x256xf32, #tpu.memory_space<vmem>>, vector<5x16xf32>
    tpu.vector_store %arg12[%c45_253, %c192_254], %294 {strides = array<i32>} : memref<50x256xf32, #tpu.memory_space<vmem>>, vector<5x16xf32>,
    %296 = vector.extract_strided_slice %35 {offsets = [154, 0], sizes = [5, 16], strides = [1, 1]} : vector<392x16xf32> to vector<5x16xf32>
    %c0_255 = arith.constant 0 : index
    %c208 = arith.constant 208 : index
    %297 = vector.load %arg12[%c0_255, %c208] : memref<50x256xf32, #tpu.memory_space<vmem>>, vector<5x16xf32>
    tpu.vector_store %arg12[%c0_255, %c208], %296 {strides = array<i32>} : memref<50x256xf32, #tpu.memory_space<vmem>>, vector<5x16xf32>,
    %298 = vector.extract_strided_slice %35 {offsets = [161, 0], sizes = [5, 16], strides = [1, 1]} : vector<392x16xf32> to vector<5x16xf32>
    %c5_256 = arith.constant 5 : index
    %c208_257 = arith.constant 208 : index
    %299 = vector.load %arg12[%c5_256, %c208_257] : memref<50x256xf32, #tpu.memory_space<vmem>>, vector<5x16xf32>
    tpu.vector_store %arg12[%c5_256, %c208_257], %298 {strides = array<i32>} : memref<50x256xf32, #tpu.memory_space<vmem>>, vector<5x16xf32>,
    %300 = vector.extract_strided_slice %35 {offsets = [168, 0], sizes = [5, 16], strides = [1, 1]} : vector<392x16xf32> to vector<5x16xf32>
    %c10_258 = arith.constant 10 : index
    %c208_259 = arith.constant 208 : index
    %301 = vector.load %arg12[%c10_258, %c208_259] : memref<50x256xf32, #tpu.memory_space<vmem>>, vector<5x16xf32>
    tpu.vector_store %arg12[%c10_258, %c208_259], %300 {strides = array<i32>} : memref<50x256xf32, #tpu.memory_space<vmem>>, vector<5x16xf32>,
    %302 = vector.extract_strided_slice %35 {offsets = [175, 0], sizes = [5, 16], strides = [1, 1]} : vector<392x16xf32> to vector<5x16xf32>
    %c15_260 = arith.constant 15 : index
    %c208_261 = arith.constant 208 : index
    %303 = vector.load %arg12[%c15_260, %c208_261] : memref<50x256xf32, #tpu.memory_space<vmem>>, vector<5x16xf32>
    tpu.vector_store %arg12[%c15_260, %c208_261], %302 {strides = array<i32>} : memref<50x256xf32, #tpu.memory_space<vmem>>, vector<5x16xf32>,
    %304 = vector.extract_strided_slice %35 {offsets = [182, 0], sizes = [5, 16], strides = [1, 1]} : vector<392x16xf32> to vector<5x16xf32>
    %c20_262 = arith.constant 20 : index
    %c208_263 = arith.constant 208 : index
    %305 = vector.load %arg12[%c20_262, %c208_263] : memref<50x256xf32, #tpu.memory_space<vmem>>, vector<5x16xf32>
    tpu.vector_store %arg12[%c20_262, %c208_263], %304 {strides = array<i32>} : memref<50x256xf32, #tpu.memory_space<vmem>>, vector<5x16xf32>,
    %306 = vector.extract_strided_slice %35 {offsets = [350, 0], sizes = [5, 16], strides = [1, 1]} : vector<392x16xf32> to vector<5x16xf32>
    %c25_264 = arith.constant 25 : index
    %c208_265 = arith.constant 208 : index
    %307 = vector.load %arg12[%c25_264, %c208_265] : memref<50x256xf32, #tpu.memory_space<vmem>>, vector<5x16xf32>
    tpu.vector_store %arg12[%c25_264, %c208_265], %306 {strides = array<i32>} : memref<50x256xf32, #tpu.memory_space<vmem>>, vector<5x16xf32>,
    %308 = vector.extract_strided_slice %35 {offsets = [357, 0], sizes = [5, 16], strides = [1, 1]} : vector<392x16xf32> to vector<5x16xf32>
    %c30_266 = arith.constant 30 : index
    %c208_267 = arith.constant 208 : index
    %309 = vector.load %arg12[%c30_266, %c208_267] : memref<50x256xf32, #tpu.memory_space<vmem>>, vector<5x16xf32>
    tpu.vector_store %arg12[%c30_266, %c208_267], %308 {strides = array<i32>} : memref<50x256xf32, #tpu.memory_space<vmem>>, vector<5x16xf32>,
    %310 = vector.extract_strided_slice %35 {offsets = [364, 0], sizes = [5, 16], strides = [1, 1]} : vector<392x16xf32> to vector<5x16xf32>
    %c35_268 = arith.constant 35 : index
    %c208_269 = arith.constant 208 : index
    %311 = vector.load %arg12[%c35_268, %c208_269] : memref<50x256xf32, #tpu.memory_space<vmem>>, vector<5x16xf32>
    tpu.vector_store %arg12[%c35_268, %c208_269], %310 {strides = array<i32>} : memref<50x256xf32, #tpu.memory_space<vmem>>, vector<5x16xf32>,
    %312 = vector.extract_strided_slice %35 {offsets = [371, 0], sizes = [5, 16], strides = [1, 1]} : vector<392x16xf32> to vector<5x16xf32>
    %c40_270 = arith.constant 40 : index
    %c208_271 = arith.constant 208 : index
    %313 = vector.load %arg12[%c40_270, %c208_271] : memref<50x256xf32, #tpu.memory_space<vmem>>, vector<5x16xf32>
    tpu.vector_store %arg12[%c40_270, %c208_271], %312 {strides = array<i32>} : memref<50x256xf32, #tpu.memory_space<vmem>>, vector<5x16xf32>,
    %314 = vector.extract_strided_slice %35 {offsets = [378, 0], sizes = [5, 16], strides = [1, 1]} : vector<392x16xf32> to vector<5x16xf32>
    %c45_272 = arith.constant 45 : index
    %c208_273 = arith.constant 208 : index
    %315 = vector.load %arg12[%c45_272, %c208_273] : memref<50x256xf32, #tpu.memory_space<vmem>>, vector<5x16xf32>
    tpu.vector_store %arg12[%c45_272, %c208_273], %314 {strides = array<i32>} : memref<50x256xf32, #tpu.memory_space<vmem>>, vector<5x16xf32>,
    %316 = vector.extract_strided_slice %35 {offsets = [106, 0], sizes = [5, 16], strides = [1, 1]} : vector<392x16xf32> to vector<5x16xf32>
    %c0_274 = arith.constant 0 : index
    %c224 = arith.constant 224 : index
    %317 = vector.load %arg12[%c0_274, %c224] : memref<50x256xf32, #tpu.memory_space<vmem>>, vector<5x16xf32>
    tpu.vector_store %arg12[%c0_274, %c224], %316 {strides = array<i32>} : memref<50x256xf32, #tpu.memory_space<vmem>>, vector<5x16xf32>,
    %318 = vector.extract_strided_slice %35 {offsets = [113, 0], sizes = [5, 16], strides = [1, 1]} : vector<392x16xf32> to vector<5x16xf32>
    %c5_275 = arith.constant 5 : index
    %c224_276 = arith.constant 224 : index
    %319 = vector.load %arg12[%c5_275, %c224_276] : memref<50x256xf32, #tpu.memory_space<vmem>>, vector<5x16xf32>
    tpu.vector_store %arg12[%c5_275, %c224_276], %318 {strides = array<i32>} : memref<50x256xf32, #tpu.memory_space<vmem>>, vector<5x16xf32>,
    %320 = vector.extract_strided_slice %35 {offsets = [120, 0], sizes = [5, 16], strides = [1, 1]} : vector<392x16xf32> to vector<5x16xf32>
    %c10_277 = arith.constant 10 : index
    %c224_278 = arith.constant 224 : index
    %321 = vector.load %arg12[%c10_277, %c224_278] : memref<50x256xf32, #tpu.memory_space<vmem>>, vector<5x16xf32>
    tpu.vector_store %arg12[%c10_277, %c224_278], %320 {strides = array<i32>} : memref<50x256xf32, #tpu.memory_space<vmem>>, vector<5x16xf32>,
    %322 = vector.extract_strided_slice %35 {offsets = [127, 0], sizes = [5, 16], strides = [1, 1]} : vector<392x16xf32> to vector<5x16xf32>
    %c15_279 = arith.constant 15 : index
    %c224_280 = arith.constant 224 : index
    %323 = vector.load %arg12[%c15_279, %c224_280] : memref<50x256xf32, #tpu.memory_space<vmem>>, vector<5x16xf32>
    tpu.vector_store %arg12[%c15_279, %c224_280], %322 {strides = array<i32>} : memref<50x256xf32, #tpu.memory_space<vmem>>, vector<5x16xf32>,
    %324 = vector.extract_strided_slice %35 {offsets = [134, 0], sizes = [5, 16], strides = [1, 1]} : vector<392x16xf32> to vector<5x16xf32>
    %c20_281 = arith.constant 20 : index
    %c224_282 = arith.constant 224 : index
    %325 = vector.load %arg12[%c20_281, %c224_282] : memref<50x256xf32, #tpu.memory_space<vmem>>, vector<5x16xf32>
    tpu.vector_store %arg12[%c20_281, %c224_282], %324 {strides = array<i32>} : memref<50x256xf32, #tpu.memory_space<vmem>>, vector<5x16xf32>,
    %326 = vector.extract_strided_slice %35 {offsets = [302, 0], sizes = [5, 16], strides = [1, 1]} : vector<392x16xf32> to vector<5x16xf32>
    %c25_283 = arith.constant 25 : index
    %c224_284 = arith.constant 224 : index
    %327 = vector.load %arg12[%c25_283, %c224_284] : memref<50x256xf32, #tpu.memory_space<vmem>>, vector<5x16xf32>
    tpu.vector_store %arg12[%c25_283, %c224_284], %326 {strides = array<i32>} : memref<50x256xf32, #tpu.memory_space<vmem>>, vector<5x16xf32>,
    %328 = vector.extract_strided_slice %35 {offsets = [309, 0], sizes = [5, 16], strides = [1, 1]} : vector<392x16xf32> to vector<5x16xf32>
    %c30_285 = arith.constant 30 : index
    %c224_286 = arith.constant 224 : index
    %329 = vector.load %arg12[%c30_285, %c224_286] : memref<50x256xf32, #tpu.memory_space<vmem>>, vector<5x16xf32>
    tpu.vector_store %arg12[%c30_285, %c224_286], %328 {strides = array<i32>} : memref<50x256xf32, #tpu.memory_space<vmem>>, vector<5x16xf32>,
    %330 = vector.extract_strided_slice %35 {offsets = [316, 0], sizes = [5, 16], strides = [1, 1]} : vector<392x16xf32> to vector<5x16xf32>
    %c35_287 = arith.constant 35 : index
    %c224_288 = arith.constant 224 : index
    %331 = vector.load %arg12[%c35_287, %c224_288] : memref<50x256xf32, #tpu.memory_space<vmem>>, vector<5x16xf32>
    tpu.vector_store %arg12[%c35_287, %c224_288], %330 {strides = array<i32>} : memref<50x256xf32, #tpu.memory_space<vmem>>, vector<5x16xf32>,
    %332 = vector.extract_strided_slice %35 {offsets = [323, 0], sizes = [5, 16], strides = [1, 1]} : vector<392x16xf32> to vector<5x16xf32>
    %c40_289 = arith.constant 40 : index
    %c224_290 = arith.constant 224 : index
    %333 = vector.load %arg12[%c40_289, %c224_290] : memref<50x256xf32, #tpu.memory_space<vmem>>, vector<5x16xf32>
    tpu.vector_store %arg12[%c40_289, %c224_290], %332 {strides = array<i32>} : memref<50x256xf32, #tpu.memory_space<vmem>>, vector<5x16xf32>,
    %334 = vector.extract_strided_slice %35 {offsets = [330, 0], sizes = [5, 16], strides = [1, 1]} : vector<392x16xf32> to vector<5x16xf32>
    %c45_291 = arith.constant 45 : index
    %c224_292 = arith.constant 224 : index
    %335 = vector.load %arg12[%c45_291, %c224_292] : memref<50x256xf32, #tpu.memory_space<vmem>>, vector<5x16xf32>
    tpu.vector_store %arg12[%c45_291, %c224_292], %334 {strides = array<i32>} : memref<50x256xf32, #tpu.memory_space<vmem>>, vector<5x16xf32>,
    %336 = vector.extract_strided_slice %35 {offsets = [155, 0], sizes = [5, 16], strides = [1, 1]} : vector<392x16xf32> to vector<5x16xf32>
    %c0_293 = arith.constant 0 : index
    %c240 = arith.constant 240 : index
    %337 = vector.load %arg12[%c0_293, %c240] : memref<50x256xf32, #tpu.memory_space<vmem>>, vector<5x16xf32>
    tpu.vector_store %arg12[%c0_293, %c240], %336 {strides = array<i32>} : memref<50x256xf32, #tpu.memory_space<vmem>>, vector<5x16xf32>,
    %338 = vector.extract_strided_slice %35 {offsets = [162, 0], sizes = [5, 16], strides = [1, 1]} : vector<392x16xf32> to vector<5x16xf32>
    %c5_294 = arith.constant 5 : index
    %c240_295 = arith.constant 240 : index
    %339 = vector.load %arg12[%c5_294, %c240_295] : memref<50x256xf32, #tpu.memory_space<vmem>>, vector<5x16xf32>
    tpu.vector_store %arg12[%c5_294, %c240_295], %338 {strides = array<i32>} : memref<50x256xf32, #tpu.memory_space<vmem>>, vector<5x16xf32>,
    %340 = vector.extract_strided_slice %35 {offsets = [169, 0], sizes = [5, 16], strides = [1, 1]} : vector<392x16xf32> to vector<5x16xf32>
    %c10_296 = arith.constant 10 : index
    %c240_297 = arith.constant 240 : index
    %341 = vector.load %arg12[%c10_296, %c240_297] : memref<50x256xf32, #tpu.memory_space<vmem>>, vector<5x16xf32>
    tpu.vector_store %arg12[%c10_296, %c240_297], %340 {strides = array<i32>} : memref<50x256xf32, #tpu.memory_space<vmem>>, vector<5x16xf32>,
    %342 = vector.extract_strided_slice %35 {offsets = [176, 0], sizes = [5, 16], strides = [1, 1]} : vector<392x16xf32> to vector<5x16xf32>
    %c15_298 = arith.constant 15 : index
    %c240_299 = arith.constant 240 : index
    %343 = vector.load %arg12[%c15_298, %c240_299] : memref<50x256xf32, #tpu.memory_space<vmem>>, vector<5x16xf32>
    tpu.vector_store %arg12[%c15_298, %c240_299], %342 {strides = array<i32>} : memref<50x256xf32, #tpu.memory_space<vmem>>, vector<5x16xf32>,
    %344 = vector.extract_strided_slice %35 {offsets = [183, 0], sizes = [5, 16], strides = [1, 1]} : vector<392x16xf32> to vector<5x16xf32>
    %c20_300 = arith.constant 20 : index
    %c240_301 = arith.constant 240 : index
    %345 = vector.load %arg12[%c20_300, %c240_301] : memref<50x256xf32, #tpu.memory_space<vmem>>, vector<5x16xf32>
    tpu.vector_store %arg12[%c20_300, %c240_301], %344 {strides = array<i32>} : memref<50x256xf32, #tpu.memory_space<vmem>>, vector<5x16xf32>,
    %346 = vector.extract_strided_slice %35 {offsets = [351, 0], sizes = [5, 16], strides = [1, 1]} : vector<392x16xf32> to vector<5x16xf32>
    %c25_302 = arith.constant 25 : index
    %c240_303 = arith.constant 240 : index
    %347 = vector.load %arg12[%c25_302, %c240_303] : memref<50x256xf32, #tpu.memory_space<vmem>>, vector<5x16xf32>
    tpu.vector_store %arg12[%c25_302, %c240_303], %346 {strides = array<i32>} : memref<50x256xf32, #tpu.memory_space<vmem>>, vector<5x16xf32>,
    %348 = vector.extract_strided_slice %35 {offsets = [358, 0], sizes = [5, 16], strides = [1, 1]} : vector<392x16xf32> to vector<5x16xf32>
    %c30_304 = arith.constant 30 : index
    %c240_305 = arith.constant 240 : index
    %349 = vector.load %arg12[%c30_304, %c240_305] : memref<50x256xf32, #tpu.memory_space<vmem>>, vector<5x16xf32>
    tpu.vector_store %arg12[%c30_304, %c240_305], %348 {strides = array<i32>} : memref<50x256xf32, #tpu.memory_space<vmem>>, vector<5x16xf32>,
    %350 = vector.extract_strided_slice %35 {offsets = [365, 0], sizes = [5, 16], strides = [1, 1]} : vector<392x16xf32> to vector<5x16xf32>
    %c35_306 = arith.constant 35 : index
    %c240_307 = arith.constant 240 : index
    %351 = vector.load %arg12[%c35_306, %c240_307] : memref<50x256xf32, #tpu.memory_space<vmem>>, vector<5x16xf32>
    tpu.vector_store %arg12[%c35_306, %c240_307], %350 {strides = array<i32>} : memref<50x256xf32, #tpu.memory_space<vmem>>, vector<5x16xf32>,
    %352 = vector.extract_strided_slice %35 {offsets = [372, 0], sizes = [5, 16], strides = [1, 1]} : vector<392x16xf32> to vector<5x16xf32>
    %c40_308 = arith.constant 40 : index
    %c240_309 = arith.constant 240 : index
    %353 = vector.load %arg12[%c40_308, %c240_309] : memref<50x256xf32, #tpu.memory_space<vmem>>, vector<5x16xf32>
    tpu.vector_store %arg12[%c40_308, %c240_309], %352 {strides = array<i32>} : memref<50x256xf32, #tpu.memory_space<vmem>>, vector<5x16xf32>,
    %354 = vector.extract_strided_slice %35 {offsets = [379, 0], sizes = [5, 16], strides = [1, 1]} : vector<392x16xf32> to vector<5x16xf32>
    %c45_310 = arith.constant 45 : index
    %c240_311 = arith.constant 240 : index
    %355 = vector.load %arg12[%c45_310, %c240_311] : memref<50x256xf32, #tpu.memory_space<vmem>>, vector<5x16xf32>
    tpu.vector_store %arg12[%c45_310, %c240_311], %354 {strides = array<i32>} : memref<50x256xf32, #tpu.memory_space<vmem>>, vector<5x16xf32>,
    %c0_312 = arith.constant 0 : index
    %c0_313 = arith.constant 0 : index
    %356 = vector.load %arg12[%c0_312, %c0_313] : memref<50x256xf32, #tpu.memory_space<vmem>>, vector<50x256xf32>
    %c0_314 = arith.constant 0 : index
    %c0_315 = arith.constant 0 : index
    %357 = vector.load %arg5[%c0_314, %c0_315] : memref<256x32xf32, #tpu.memory_space<vmem>>, vector<256x32xf32>
    %cst_316 = arith.constant dense<0.000000e+00> : vector<50x32xf32>
    %358 = tpu.matmul %356, %357, %cst_316 {dimension_numbers = #tpu.dot_dimension_numbers<[1], [0], [0], [1], [0, 0, 1, 1], [], []>} : vector<50x256xf32>, vector<256x32xf32>, vector<50x32xf32> -> vector<50x32xf32>
    %cst_317 = arith.constant dense<0.000000e+00> : vector<32xf32>
    %359 = vector.multi_reduction <add>, %358, %cst_317 [0] : vector<50x32xf32> to vector<32xf32>
    %360 = vector.shape_cast %359 : vector<32xf32> to vector<1x32xf32>
    %cst_318 = arith.constant 5.000000e+01 : f32
    %361 = vector.broadcast %cst_318 : f32 to vector<1x32xf32>
    %362 = arith.divf %360, %361 : vector<1x32xf32>
    %363 = vector.broadcast %362 : vector<1x32xf32> to vector<50x32xf32>
    %364 = arith.subf %358, %363 : vector<50x32xf32>
    %365 = arith.mulf %364, %364 : vector<50x32xf32>
    %cst_319 = arith.constant dense<0.000000e+00> : vector<32xf32>
    %366 = vector.multi_reduction <add>, %365, %cst_319 [0] : vector<50x32xf32> to vector<32xf32>
    %367 = vector.shape_cast %366 : vector<32xf32> to vector<1x32xf32>
    %cst_320 = arith.constant 5.000000e+01 : f32
    %368 = vector.broadcast %cst_320 : f32 to vector<1x32xf32>
    %369 = arith.divf %367, %368 : vector<1x32xf32>
    %c0_321 = arith.constant 0 : index
    %c0_322 = arith.constant 0 : index
    %370 = vector.load %arg6[%c0_321, %c0_322] : memref<1x32xf32, #tpu.memory_space<vmem>>, vector<1x32xf32>
    %cst_323 = arith.constant 9.99999974E-6 : f32
    %371 = vector.broadcast %cst_323 : f32 to vector<1x32xf32>
    %372 = arith.addf %369, %371 : vector<1x32xf32>
    %373 = math.rsqrt %372 : vector<1x32xf32>
    %374 = arith.mulf %370, %373 : vector<1x32xf32>
    %c0_324 = arith.constant 0 : index
    %c0_325 = arith.constant 0 : index
    %375 = vector.load %arg7[%c0_324, %c0_325] : memref<1x32xf32, #tpu.memory_space<vmem>>, vector<1x32xf32>
    %376 = arith.mulf %362, %374 : vector<1x32xf32>
    %377 = arith.subf %375, %376 : vector<1x32xf32>
    %378 = vector.broadcast %374 : vector<1x32xf32> to vector<50x32xf32>
    %379 = arith.mulf %358, %378 : vector<50x32xf32>
    %380 = vector.broadcast %377 : vector<1x32xf32> to vector<50x32xf32>
    %381 = arith.addf %379, %380 : vector<50x32xf32>
    %cst_326 = arith.constant 0.000000e+00 : f32
    %382 = vector.broadcast %cst_326 : f32 to vector<50x32xf32>
    %383 = arith.cmpf oge, %381, %382 : vector<50x32xf32>
    %cst_327 = arith.constant 2.000000e-01 : f32
    %384 = vector.broadcast %cst_327 : f32 to vector<50x32xf32>
    %385 = arith.mulf %384, %381 : vector<50x32xf32>
    %386 = arith.select %383, %381, %385 : vector<50x32xi1>, vector<50x32xf32>
    %c0_328 = arith.constant 0 : index
    %c0_329 = arith.constant 0 : index
    %387 = vector.load %arg8[%c0_328, %c0_329] : memref<50x32xf32, #tpu.memory_space<vmem>>, vector<50x32xf32>
    %388 = arith.mulf %386, %387 : vector<50x32xf32>
    %c0_330 = arith.constant 0 : index
    %c0_331 = arith.constant 0 : index
    %389 = vector.load %arg9[%c0_330, %c0_331] : memref<2x50xf32, #tpu.memory_space<vmem>>, vector<2x50xf32>
    %cst_332 = arith.constant dense<0.000000e+00> : vector<2x32xf32>
    %390 = tpu.matmul %389, %388, %cst_332 {dimension_numbers = #tpu.dot_dimension_numbers<[1], [0], [0], [1], [0, 0, 1, 1], [], []>} : vector<2x50xf32>, vector<50x32xf32>, vector<2x32xf32> -> vector<2x32xf32>
    %cst_333 = arith.constant dense<0.000000e+00> : vector<2xf32>
    %391 = vector.multi_reduction <add>, %390, %cst_333 [1] : vector<2x32xf32> to vector<2xf32>
    %392 = vector.shape_cast %391 : vector<2xf32> to vector<2x1xf32>
    %c0_334 = arith.constant 0 : index
    %c0_335 = arith.constant 0 : index
    %393 = vector.load %arg10[%c0_334, %c0_335] : memref<1x1xf32, #tpu.memory_space<vmem>>, vector<1x1xf32>
    %394 = vector.broadcast %393 : vector<1x1xf32> to vector<2x1xf32>
    %395 = arith.addf %392, %394 : vector<2x1xf32>
    %c0_336 = arith.constant 0 : index
    %c0_337 = arith.constant 0 : index
    %396 = vector.load %arg11[%c0_336, %c0_337] : memref<2x1xf32, #tpu.memory_space<vmem>>, vector<2x1xf32>
    tpu.vector_store %arg11[%c0_336, %c0_337], %395 {strides = array<i32>} : memref<2x1xf32, #tpu.memory_space<vmem>>, vector<2x1xf32>,
    return
  }
}

</mosaic_0001>

<llo_original>
// kernel: tile.15
$region0: #{tile.15}
  %s0 = inlined_call_operand.vmem [shape: f32[2,25,32], index: 0, kind: input, shape index: {}]
  %s1 = inlined_call_operand.vmem [shape: f32[50,32], index: 1, kind: output, shape index: {}]
  $region1: #{tile.15} parent=0
    #allocation0 [shape = 'u8[131072]{0}', space=vmem, size = 0x20000, scoped, tag = 'scoped mem for input reshape']
    %s3 = sshll.u32 1, 2
    %s4 = ssub.s32 %s3, 1
    %s5 = smul.addr 2, 31
    %s6 = scalar_lea.vmem %s0, %s5
    %v7 = vld [vmem:[%s6] sm:%s4]
    %s8 = scalar_lea.vmem [#allocation0], 248
    %9 = vst [vmem:[%s8] sm:%s4] %v7
    %s10 = smul.addr 2, 30
    %s11 = scalar_lea.vmem %s0, %s10
    %v12 = vld [vmem:[%s11] sm:%s4]
    %s13 = scalar_lea.vmem [#allocation0], 240
    %14 = vst [vmem:[%s13] sm:%s4] %v12
    %s15 = smul.addr 2, 29
    %s16 = scalar_lea.vmem %s0, %s15
    %v17 = vld [vmem:[%s16] sm:%s4]
    %s18 = scalar_lea.vmem [#allocation0], 232
    %19 = vst [vmem:[%s18] sm:%s4] %v17
    %s20 = smul.addr 2, 28
    %s21 = scalar_lea.vmem %s0, %s20
    %v22 = vld [vmem:[%s21] sm:%s4]
    %s23 = scalar_lea.vmem [#allocation0], 224
    %24 = vst [vmem:[%s23] sm:%s4] %v22
    %s25 = smul.addr 2, 27
    %s26 = scalar_lea.vmem %s0, %s25
    %v27 = vld [vmem:[%s26] sm:%s4]
    %s28 = scalar_lea.vmem [#allocation0], 216
    %29 = vst [vmem:[%s28] sm:%s4] %v27
    %s30 = smul.addr 2, 26
    %s31 = scalar_lea.vmem %s0, %s30
    %v32 = vld [vmem:[%s31] sm:%s4]
    %s33 = scalar_lea.vmem [#allocation0], 208
    %34 = vst [vmem:[%s33] sm:%s4] %v32
    %s35 = smul.addr 2, 25
    %s36 = scalar_lea.vmem %s0, %s35
    %v37 = vld [vmem:[%s36] sm:%s4]
    %s38 = scalar_lea.vmem [#allocation0], 200
    %39 = vst [vmem:[%s38] sm:%s4] %v37
    %s40 = smul.addr 2, 24
    %s41 = scalar_lea.vmem %s0, %s40
    %v42 = vld [vmem:[%s41] sm:%s4]
    %s43 = scalar_lea.vmem [#allocation0], 192
    %44 = vst [vmem:[%s43] sm:%s4] %v42
    %s45 = smul.addr 2, 23
    %s46 = scalar_lea.vmem %s0, %s45
    %v47 = vld [vmem:[%s46] sm:%s4]
    %s48 = scalar_lea.vmem [#allocation0], 184
    %49 = vst [vmem:[%s48] sm:%s4] %v47
    %s50 = smul.addr 2, 22
    %s51 = scalar_lea.vmem %s0, %s50
    %v52 = vld [vmem:[%s51] sm:%s4]
    %s53 = scalar_lea.vmem [#allocation0], 176
    %54 = vst [vmem:[%s53] sm:%s4] %v52
    %s55 = smul.addr 2, 21
    %s56 = scalar_lea.vmem %s0, %s55
    %v57 = vld [vmem:[%s56] sm:%s4]
    %s58 = scalar_lea.vmem [#allocation0], 168
    %59 = vst [vmem:[%s58] sm:%s4] %v57
    %s60 = smul.addr 2, 20
    %s61 = scalar_lea.vmem %s0, %s60
    %v62 = vld [vmem:[%s61] sm:%s4]
    %s63 = scalar_lea.vmem [#allocation0], 160
    %64 = vst [vmem:[%s63] sm:%s4] %v62
    %s65 = smul.addr 2, 19
    %s66 = scalar_lea.vmem %s0, %s65
    %v67 = vld [vmem:[%s66] sm:%s4]
    %s68 = scalar_lea.vmem [#allocation0], 152
    %69 = vst [vmem:[%s68] sm:%s4] %v67
    %s70 = smul.addr 2, 18
    %s71 = scalar_lea.vmem %s0, %s70
    %v72 = vld [vmem:[%s71] sm:%s4]
    %s73 = scalar_lea.vmem [#allocation0], 144
    %74 = vst [vmem:[%s73] sm:%s4] %v72
    %s75 = smul.addr 2, 17
    %s76 = scalar_lea.vmem %s0, %s75
    %v77 = vld [vmem:[%s76] sm:%s4]
    %s78 = scalar_lea.vmem [#allocation0], 136
    %79 = vst [vmem:[%s78] sm:%s4] %v77
    %s80 = smul.addr 2, 16
    %s81 = scalar_lea.vmem %s0, %s80
    %v82 = vld [vmem:[%s81] sm:%s4]
    %s83 = scalar_lea.vmem [#allocation0], 128
    %84 = vst [vmem:[%s83] sm:%s4] %v82
    %s85 = smul.addr 2, 15
    %s86 = scalar_lea.vmem %s0, %s85
    %v87 = vld [vmem:[%s86] sm:%s4]
    %s88 = scalar_lea.vmem [#allocation0], 120
    %89 = vst [vmem:[%s88] sm:%s4] %v87
    %s90 = smul.addr 2, 14
    %s91 = scalar_lea.vmem %s0, %s90
    %v92 = vld [vmem:[%s91] sm:%s4]
    %s93 = scalar_lea.vmem [#allocation0], 112
    %94 = vst [vmem:[%s93] sm:%s4] %v92
    %s95 = smul.addr 2, 13
    %s96 = scalar_lea.vmem %s0, %s95
    %v97 = vld [vmem:[%s96] sm:%s4]
    %s98 = scalar_lea.vmem [#allocation0], 104
    %99 = vst [vmem:[%s98] sm:%s4] %v97
    %s100 = smul.addr 2, 12
    %s101 = scalar_lea.vmem %s0, %s100
    %v102 = vld [vmem:[%s101] sm:%s4]
    %s103 = scalar_lea.vmem [#allocation0], 96
    %104 = vst [vmem:[%s103] sm:%s4] %v102
    %s105 = smul.addr 2, 11
    %s106 = scalar_lea.vmem %s0, %s105
    %v107 = vld [vmem:[%s106] sm:%s4]
    %s108 = scalar_lea.vmem [#allocation0], 88
    %109 = vst [vmem:[%s108] sm:%s4] %v107
    %s110 = smul.addr 2, 10
    %s111 = scalar_lea.vmem %s0, %s110
    %v112 = vld [vmem:[%s111] sm:%s4]
    %s113 = scalar_lea.vmem [#allocation0], 80
    %114 = vst [vmem:[%s113] sm:%s4] %v112
    %s115 = smul.addr 2, 9
    %s116 = scalar_lea.vmem %s0, %s115
    %v117 = vld [vmem:[%s116] sm:%s4]
    %s118 = scalar_lea.vmem [#allocation0], 72
    %119 = vst [vmem:[%s118] sm:%s4] %v117
    %s120 = smul.addr 2, 8
    %s121 = scalar_lea.vmem %s0, %s120
    %v122 = vld [vmem:[%s121] sm:%s4]
    %s123 = scalar_lea.vmem [#allocation0], 64
    %124 = vst [vmem:[%s123] sm:%s4] %v122
    %s125 = smul.addr 2, 7
    %s126 = scalar_lea.vmem %s0, %s125
    %v127 = vld [vmem:[%s126] sm:%s4]
    %s128 = scalar_lea.vmem [#allocation0], 56
    %129 = vst [vmem:[%s128] sm:%s4] %v127
    %s130 = smul.addr 2, 6
    %s131 = scalar_lea.vmem %s0, %s130
    %v132 = vld [vmem:[%s131] sm:%s4]
    %s133 = scalar_lea.vmem [#allocation0], 48
    %134 = vst [vmem:[%s133] sm:%s4] %v132
    %s135 = smul.addr 2, 5
    %s136 = scalar_lea.vmem %s0, %s135
    %v137 = vld [vmem:[%s136] sm:%s4]
    %s138 = scalar_lea.vmem [#allocation0], 40
    %139 = vst [vmem:[%s138] sm:%s4] %v137
    %s140 = smul.addr 2, 4
    %s141 = scalar_lea.vmem %s0, %s140
    %v142 = vld [vmem:[%s141] sm:%s4]
    %s143 = scalar_lea.vmem [#allocation0], 32
    %144 = vst [vmem:[%s143] sm:%s4] %v142
    %s145 = smul.addr 2, 3
    %s146 = scalar_lea.vmem %s0, %s145
    %v147 = vld [vmem:[%s146] sm:%s4]
    %s148 = scalar_lea.vmem [#allocation0], 24
    %149 = vst [vmem:[%s148] sm:%s4] %v147
    %s150 = smul.addr 2, 2
    %s151 = scalar_lea.vmem %s0, %s150
    %v152 = vld [vmem:[%s151] sm:%s4]
    %s153 = scalar_lea.vmem [#allocation0], 16
    %154 = vst [vmem:[%s153] sm:%s4] %v152
    %s155 = scalar_lea.vmem %s0, 2
    %v156 = vld [vmem:[%s155] sm:%s4]
    %s157 = scalar_lea.vmem [#allocation0], 8
    %158 = vst [vmem:[%s157] sm:%s4] %v156
    %v159 = vld [vmem:[%s0] sm:%s4]
    %160 = vst [vmem:[#allocation0] sm:%s4] %v159
    %v161 = vld [vmem:[#allocation0] ss:$8 sm:$0xf]
    %v162 = vld [vmem:[#allocation0] ss:$8 sm:$0xf0]
    %vm163 = vcmask 1047556
    %v164 = vsel %vm163, %v162, %v161
    %vm165 = vcmask 203776
    %166 = vst.msk [vmem:[%s1] sm:$0xff] %vm165, %v164
    %s167 = scalar_lea.vmem [#allocation0], 64
    %v168 = vld [vmem:[%s167] ss:$8 sm:$0xf]
    %s169 = scalar_lea.vmem [#allocation0], 64
    %v170 = vld [vmem:[%s169] ss:$8 sm:$0xf0]
    %vm171 = vcmask 1047556
    %v172 = vsel %vm171, %v170, %v168
    %vm173 = vcmask 203776
    %s174 = scalar_lea.vmem %s1, 8
    %175 = vst.msk [vmem:[%s174] sm:$0xff] %vm173, %v172
    %s176 = scalar_lea.vmem [#allocation0], 128
    %v177 = vld [vmem:[%s176] ss:$8 sm:$0xf]
    %s178 = scalar_lea.vmem [#allocation0], 128
    %v179 = vld [vmem:[%s178] ss:$8 sm:$0xf0]
    %vm180 = vcmask 1047556
    %v181 = vsel %vm180, %v179, %v177
    %vm182 = vcmask 203776
    %s183 = scalar_lea.vmem %s1, 16
    %184 = vst.msk [vmem:[%s183] sm:$0xff] %vm182, %v181
    %s185 = scalar_lea.vmem [#allocation0], 192
    %v186 = vld [vmem:[%s185] ss:$8 sm:$0xf]
    %s187 = scalar_lea.vmem [#allocation0], 192
    %v188 = vld [vmem:[%s187] ss:$8 sm:$0xf0]
    %vm189 = vcmask 1047556
    %v190 = vsel %vm189, %v188, %v186
    %vm191 = vcmask 203776
    %s192 = scalar_lea.vmem %s1, 24
    %193 = vst.msk [vmem:[%s192] sm:$0xff] %vm191, %v190
    %s194 = scalar_lea.vmem [#allocation0], 1
    %v195 = vld [vmem:[%s194] ss:$8 sm:$0xf]
    %s196 = scalar_lea.vmem [#allocation0], 1
    %v197 = vld [vmem:[%s196] ss:$8 sm:$0xf0]
    %vm198 = vcmask 1047556
    %v199 = vsel %vm198, %v197, %v195
    %200 = vrot.lane.b32.xlu0 %v199, 25
    %v201 = vpop.permute.xlu0 %200
    %vm202 = vcmask 408776
    %203 = vst.msk [vmem:[%s1] sm:$0xff] %vm202, %v201
    %s204 = scalar_lea.vmem [#allocation0], 65
    %v205 = vld [vmem:[%s204] ss:$8 sm:$0xf]
    %s206 = scalar_lea.vmem [#allocation0], 65
    %v207 = vld [vmem:[%s206] ss:$8 sm:$0xf0]
    %vm208 = vcmask 1047556
    %v209 = vsel %vm208, %v207, %v205
    %210 = vrot.lane.b32.xlu0 %v209, 25
    %v211 = vpop.permute.xlu0 %210
    %vm212 = vcmask 408776
    %s213 = scalar_lea.vmem %s1, 8
    %214 = vst.msk [vmem:[%s213] sm:$0xff] %vm212, %v211
    %s215 = scalar_lea.vmem [#allocation0], 129
    %v216 = vld [vmem:[%s215] ss:$8 sm:$0xf]
    %s217 = scalar_lea.vmem [#allocation0], 129
    %v218 = vld [vmem:[%s217] ss:$8 sm:$0xf0]
    %vm219 = vcmask 1047556
    %v220 = vsel %vm219, %v218, %v216
    %221 = vrot.lane.b32.xlu0 %v220, 25
    %v222 = vpop.permute.xlu0 %221
    %vm223 = vcmask 408776
    %s224 = scalar_lea.vmem %s1, 16
    %225 = vst.msk [vmem:[%s224] sm:$0xff] %vm223, %v222
    %s226 = scalar_lea.vmem [#allocation0], 193
    %v227 = vld [vmem:[%s226] ss:$8 sm:$0xf]
    %s228 = scalar_lea.vmem [#allocation0], 193
    %v229 = vld [vmem:[%s228] ss:$8 sm:$0xf0]
    %vm230 = vcmask 1047556
    %v231 = vsel %vm230, %v229, %v227
    %232 = vrot.lane.b32.xlu0 %v231, 25
    %v233 = vpop.permute.xlu0 %232
    %vm234 = vcmask 408776
    %s235 = scalar_lea.vmem %s1, 24
    %236 = vst.msk [vmem:[%s235] sm:$0xff] %vm234, %v233

// kernel: discriminator_forward.1
$region0: #{discriminator_forward.1}
  #allocation0 [shape = 'u32[]', space=smem, size = 0x4, offset = 0x4, fixed_abs, tag = 'smem constant byte address 0x4 - core index']
  #allocation1 [shape = 'u32[144,128]{1,0:T(1,128)}', space=vmem, size = 0x12000, scoped, tag = 'internal scratch']
  #allocation2 [shape = 'f32[50,256]{1,0:T(8,128)}', space=vmem, size = 0xe000, scoped, tag = 'scratch operand']
  #allocation3 [shape = 'f32[1,1]{1,0:T(1,128)S(1)}', space=vmem, size = 0x200, scoped, tag = 'scoped memory for discriminator_forward.1']
  %s0 = inlined_call_operand.vmem [shape: f32[392,16], index: 0, kind: input, shape index: {}]
  %s1 = inlined_call_operand.vmem [shape: f32[392,1], index: 1, kind: input, shape index: {}]
  %s2 = inlined_call_operand.vmem [shape: f32[16,16], index: 2, kind: input, shape index: {}]
  %s3 = inlined_call_operand.vmem [shape: f32[1,16], index: 3, kind: input, shape index: {}]
  %s4 = inlined_call_operand.vmem [shape: f32[1,16], index: 4, kind: input, shape index: {}]
  %s5 = inlined_call_operand.vmem [shape: f32[256,32], index: 5, kind: input, shape index: {}]
  %s6 = inlined_call_operand.vmem [shape: f32[1,32], index: 6, kind: input, shape index: {}]
  %s7 = inlined_call_operand.vmem [shape: f32[1,32], index: 7, kind: input, shape index: {}]
  %s8 = inlined_call_operand.vmem [shape: f32[50,32], index: 8, kind: input, shape index: {}]
  %s9 = inlined_call_operand.vmem [shape: f32[2,50], index: 9, kind: input, shape index: {}]
  %s10 = inlined_call_operand.<no memory space> [shape: f32[1,1], index: 10, kind: input, shape index: {}]
  %s11 = inlined_call_operand.vmem [shape: f32[2,1], index: 11, kind: output, shape index: {}]
  %s12 = sld [smem:[#allocation0]]
  $region54: #{discriminator_forward.1} parent=0
    _
  %s14 = ssub.s32 1, %s12
  %s15 = scalar_select 0, %s14, %s12
  %v16 = vstv %s10
  %17 = vst [vmem:[#allocation3] sm:$0x1] %v16
  // Predicated region
  $region2: #{discriminator_forward.1} parent=0 // pred_check
    _
  $region3: #{discriminator_forward.1} parent=0 // pred_check_branch
    %19 = sbr.rel (0) target = $region5
  $region4: #{discriminator_forward.1} parent=0 // pred_region
    _
  $region5: #{discriminator_forward.1} parent=0 // pred_fallthru
    _
  // Predicated region
  $region6: #{discriminator_forward.1} parent=0 // pred_check
    _
  $region7: #{discriminator_forward.1} parent=0 // pred_check_branch
    %21 = sbr.rel (0) target = $region9
  $region8: #{discriminator_forward.1} parent=0 // pred_region
    _
  $region9: #{discriminator_forward.1} parent=0 // pred_fallthru
    _
  // Predicated region
  $region10: #{discriminator_forward.1} parent=0 // pred_check
    _
  $region11: #{discriminator_forward.1} parent=0 // pred_check_branch
    %23 = sbr.rel (0) target = $region13
  $region12: #{discriminator_forward.1} parent=0 // pred_region
    _
  $region13: #{discriminator_forward.1} parent=0 // pred_fallthru
    _
  // Predicated region
  $region14: #{discriminator_forward.1} parent=0 // pred_check
    _
  $region15: #{discriminator_forward.1} parent=0 // pred_check_branch
    %25 = sbr.rel (0) target = $region17
  $region16: #{discriminator_forward.1} parent=0 // pred_region
    _
  $region17: #{discriminator_forward.1} parent=0 // pred_fallthru
    _
  // Predicated region
  $region18: #{discriminator_forward.1} parent=0 // pred_check
    _
  $region19: #{discriminator_forward.1} parent=0 // pred_check_branch
    %27 = sbr.rel (0) target = $region21
  $region20: #{discriminator_forward.1} parent=0 // pred_region
    _
  $region21: #{discriminator_forward.1} parent=0 // pred_fallthru
    _
  // Predicated region
  $region22: #{discriminator_forward.1} parent=0 // pred_check
    _
  $region23: #{discriminator_forward.1} parent=0 // pred_check_branch
    %29 = sbr.rel (0) target = $region25
  $region24: #{discriminator_forward.1} parent=0 // pred_region
    _
  $region25: #{discriminator_forward.1} parent=0 // pred_fallthru
    _
  // Predicated region
  $region26: #{discriminator_forward.1} parent=0 // pred_check
    _
  $region27: #{discriminator_forward.1} parent=0 // pred_check_branch
    %31 = sbr.rel (0) target = $region29
  $region28: #{discriminator_forward.1} parent=0 // pred_region
    _
  $region29: #{discriminator_forward.1} parent=0 // pred_fallthru
    _
  // Predicated region
  $region30: #{discriminator_forward.1} parent=0 // pred_check
    _
  $region31: #{discriminator_forward.1} parent=0 // pred_check_branch
    %33 = sbr.rel (0) target = $region33
  $region32: #{discriminator_forward.1} parent=0 // pred_region
    _
  $region33: #{discriminator_forward.1} parent=0 // pred_fallthru
    _
  // Predicated region
  $region34: #{discriminator_forward.1} parent=0 // pred_check
    _
  $region35: #{discriminator_forward.1} parent=0 // pred_check_branch
    %35 = sbr.rel (0) target = $region37
  $region36: #{discriminator_forward.1} parent=0 // pred_region
    _
  $region37: #{discriminator_forward.1} parent=0 // pred_fallthru
    _
  // Predicated region
  $region38: #{discriminator_forward.1} parent=0 // pred_check
    _
  $region39: #{discriminator_forward.1} parent=0 // pred_check_branch
    %37 = sbr.rel (0) target = $region41
  $region40: #{discriminator_forward.1} parent=0 // pred_region
    _
  $region41: #{discriminator_forward.1} parent=0 // pred_fallthru
    _
  // Predicated region
  $region42: #{discriminator_forward.1} parent=0 // pred_check
    _
  $region43: #{discriminator_forward.1} parent=0 // pred_check_branch
    %39 = sbr.rel (0) target = $region45
  $region44: #{discriminator_forward.1} parent=0 // pred_region
    _
  $region45: #{discriminator_forward.1} parent=0 // pred_fallthru
    _
  %v40 = vld [vmem:[%s0] sm:$0xff]
  %v41 = vld [vmem:[%s0 + $0x8] sm:$0xff]
  %v42 = vld [vmem:[%s0 + $0x10] sm:$0xff]
  %v43 = vld [vmem:[%s0 + $0x18] sm:$0xff]
  %v44 = vld [vmem:[%s0 + $0x20] sm:$0xff]
  %v45 = vld [vmem:[%s0 + $0x28] sm:$0xff]
  %v46 = vld [vmem:[%s0 + $0x30] sm:$0xff]
  %v47 = vld [vmem:[%s0 + $0x38] sm:$0xff]
  %v48 = vld [vmem:[%s0 + $0x40] sm:$0xff]
  %v49 = vld [vmem:[%s0 + $0x48] sm:$0xff]
  %v50 = vld [vmem:[%s0 + $0x50] sm:$0xff]
  %v51 = vld [vmem:[%s0 + $0x58] sm:$0xff]
  %v52 = vld [vmem:[%s0 + $0x60] sm:$0xff]
  %v53 = vld [vmem:[%s0 + $0x68] sm:$0xff]
  %v54 = vld [vmem:[%s0 + $0x70] sm:$0xff]
  %v55 = vld [vmem:[%s0 + $0x78] sm:$0xff]
  %v56 = vld [vmem:[%s0 + $0x80] sm:$0xff]
  %v57 = vld [vmem:[%s0 + $0x88] sm:$0xff]
  %v58 = vld [vmem:[%s0 + $0x90] sm:$0xff]
  %v59 = vld [vmem:[%s0 + $0x98] sm:$0xff]
  %v60 = vld [vmem:[%s0 + $0xa0] sm:$0xff]
  %v61 = vld [vmem:[%s0 + $0xa8] sm:$0xff]
  %v62 = vld [vmem:[%s0 + $0xb0] sm:$0xff]
  %v63 = vld [vmem:[%s0 + $0xb8] sm:$0xff]
  %v64 = vld [vmem:[%s0 + $0xc0] sm:$0xff]
  %v65 = vld [vmem:[%s0 + $0xc8] sm:$0xff]
  %v66 = vld [vmem:[%s0 + $0xd0] sm:$0xff]
  %v67 = vld [vmem:[%s0 + $0xd8] sm:$0xff]
  %v68 = vld [vmem:[%s0 + $0xe0] sm:$0xff]
  %v69 = vld [vmem:[%s0 + $0xe8] sm:$0xff]
  %v70 = vld [vmem:[%s0 + $0xf0] sm:$0xff]
  %v71 = vld [vmem:[%s0 + $0xf8] sm:$0xff]
  %v72 = vld [vmem:[%s0 + $0x100] sm:$0xff]
  %v73 = vld [vmem:[%s0 + $0x108] sm:$0xff]
  %v74 = vld [vmem:[%s0 + $0x110] sm:$0xff]
  %v75 = vld [vmem:[%s0 + $0x118] sm:$0xff]
  %v76 = vld [vmem:[%s0 + $0x120] sm:$0xff]
  %v77 = vld [vmem:[%s0 + $0x128] sm:$0xff]
  %v78 = vld [vmem:[%s0 + $0x130] sm:$0xff]
  %v79 = vld [vmem:[%s0 + $0x138] sm:$0xff]
  %v80 = vld [vmem:[%s0 + $0x140] sm:$0xff]
  %v81 = vld [vmem:[%s0 + $0x148] sm:$0xff]
  %v82 = vld [vmem:[%s0 + $0x150] sm:$0xff]
  %v83 = vld [vmem:[%s0 + $0x158] sm:$0xff]
  %v84 = vld [vmem:[%s0 + $0x160] sm:$0xff]
  %v85 = vld [vmem:[%s0 + $0x168] sm:$0xff]
  %v86 = vld [vmem:[%s0 + $0x170] sm:$0xff]
  %v87 = vld [vmem:[%s0 + $0x178] sm:$0xff]
  %v88 = vld [vmem:[%s0 + $0x180] sm:$0xff]
  %v89 = vld [vmem:[%s2] sm:$0xff]
  %v90 = vld [vmem:[%s2 + $0x8] sm:$0xff]
  %vm91 = vcmask 130048
  %v93 = vsel %vm91, %v40, 0
  %v96 = vsel %vm91, %v41, 0
  %v99 = vsel %vm91, %v42, 0
  %v102 = vsel %vm91, %v43, 0
  %v105 = vsel %vm91, %v44, 0
  %v108 = vsel %vm91, %v45, 0
  %v111 = vsel %vm91, %v46, 0
  %v114 = vsel %vm91, %v47, 0
  %v117 = vsel %vm91, %v48, 0
  %v120 = vsel %vm91, %v49, 0
  %v123 = vsel %vm91, %v50, 0
  %v126 = vsel %vm91, %v51, 0
  %v129 = vsel %vm91, %v52, 0
  %v132 = vsel %vm91, %v53, 0
  %v135 = vsel %vm91, %v54, 0
  %v138 = vsel %vm91, %v55, 0
  %v141 = vsel %vm91, %v56, 0
  %v144 = vsel %vm91, %v57, 0
  %v147 = vsel %vm91, %v58, 0
  %v150 = vsel %vm91, %v59, 0
  %v153 = vsel %vm91, %v60, 0
  %v156 = vsel %vm91, %v61, 0
  %v159 = vsel %vm91, %v62, 0
  %v162 = vsel %vm91, %v63, 0
  %v165 = vsel %vm91, %v64, 0
  %v168 = vsel %vm91, %v65, 0
  %v171 = vsel %vm91, %v66, 0
  %v174 = vsel %vm91, %v67, 0
  %v177 = vsel %vm91, %v68, 0
  %v180 = vsel %vm91, %v69, 0
  %v183 = vsel %vm91, %v70, 0
  %v186 = vsel %vm91, %v71, 0
  %v189 = vsel %vm91, %v72, 0
  %v192 = vsel %vm91, %v73, 0
  %v195 = vsel %vm91, %v74, 0
  %v198 = vsel %vm91, %v75, 0
  %v201 = vsel %vm91, %v76, 0
  %v204 = vsel %vm91, %v77, 0
  %v207 = vsel %vm91, %v78, 0
  %v210 = vsel %vm91, %v79, 0
  %v213 = vsel %vm91, %v80, 0
  %v216 = vsel %vm91, %v81, 0
  %v219 = vsel %vm91, %v82, 0
  %v222 = vsel %vm91, %v83, 0
  %v225 = vsel %vm91, %v84, 0
  %v228 = vsel %vm91, %v85, 0
  %v231 = vsel %vm91, %v86, 0
  %v234 = vsel %vm91, %v87, 0
  %v237 = vsel %vm91, %v88, 0
  %239 = vmatprep.subr.mxu0 0.0
  %240 = vmatpush1.msra.mxu0 0.0
  %241 = vmatprep.subr.mxu0 0.0
  %242 = vmatpush1.msra.mxu0 0.0
  %243 = vmatprep.subr.mxu0 0.0
  %244 = vmatpush1.msra.mxu0 0.0
  %245 = vmatprep.subr.mxu0 0.0
  %246 = vmatpush1.msra.mxu0 0.0
  %247 = vmatprep.subr.mxu0 0.0
  %248 = vmatpush1.msra.mxu0 0.0
  %249 = vmatprep.subr.mxu0 0.0
  %250 = vmatpush1.msra.mxu0 0.0
  %251 = vmatprep.subr.mxu0 0.0
  %252 = vmatpush1.msra.mxu0 0.0
  %253 = vmatprep.subr.mxu0 0.0
  %254 = vmatpush1.msra.mxu0 0.0
  %255 = vmatprep.subr.mxu0 0.0
  %256 = vmatpush1.msra.mxu0 0.0
  %257 = vmatprep.subr.mxu0 0.0
  %258 = vmatpush1.msra.mxu0 0.0
  %259 = vmatprep.subr.mxu0 0.0
  %260 = vmatpush1.msra.mxu0 0.0
  %261 = vmatprep.subr.mxu0 0.0
  %262 = vmatpush1.msra.mxu0 0.0
  %263 = vmatprep.subr.mxu0 0.0
  %264 = vmatpush1.msra.mxu0 0.0
  %265 = vmatprep.subr.mxu0 0.0
  %266 = vmatpush1.msra.mxu0 0.0
  %267 = vmatprep.subr.mxu0 0.0
  %268 = vmatpush1.msra.mxu0 %v90
  %269 = vmatprep.subr.mxu0 0.0
  %270 = vmatpush1.msra.mxu0 %v89
  %271 = vmatprep.subr.mxu0 0.0
  %272 = vmatpush2.msra.mxu0 0.0
  %273 = vmatprep.subr.mxu0 0.0
  %274 = vmatpush2.msra.mxu0 0.0
  %275 = vmatprep.subr.mxu0 0.0
  %276 = vmatpush2.msra.mxu0 0.0
  %277 = vmatprep.subr.mxu0 0.0
  %278 = vmatpush2.msra.mxu0 0.0
  %279 = vmatprep.subr.mxu0 0.0
  %280 = vmatpush2.msra.mxu0 0.0
  %281 = vmatprep.subr.mxu0 0.0
  %282 = vmatpush2.msra.mxu0 0.0
  %283 = vmatprep.subr.mxu0 0.0
  %284 = vmatpush2.msra.mxu0 0.0
  %285 = vmatprep.subr.mxu0 0.0
  %286 = vmatpush2.msra.mxu0 0.0
  %287 = vmatprep.subr.mxu0 0.0
  %288 = vmatpush2.msra.mxu0 0.0
  %289 = vmatprep.subr.mxu0 0.0
  %290 = vmatpush2.msra.mxu0 0.0
  %291 = vmatprep.subr.mxu0 0.0
  %292 = vmatpush2.msra.mxu0 0.0
  %293 = vmatprep.subr.mxu0 0.0
  %294 = vmatpush2.msra.mxu0 0.0
  %295 = vmatprep.subr.mxu0 0.0
  %296 = vmatpush2.msra.mxu0 0.0
  %297 = vmatprep.subr.mxu0 0.0
  %298 = vmatpush2.msra.mxu0 0.0
  %299 = vmatprep.subr.mxu0 0.0
  %300 = vmatpush2.msra.mxu0 0.0
  %301 = vmatprep.subr.mxu0 0.0
  %302 = vmatpush2.msra.mxu0 0.0
  %303 = vmatprep.mubr.f32.mxu0 0.0
  %304 = vmatmul.mubr.f32.gmra.mxu0 %v93
  %v305 = vpop.f32.mrf.mxu0
  %v306 = vadd.f32 0.0, %v305
  %v307 = vpop.f32.mrf.mxu0
  %308 = vmatprep.mubr.f32.mxu0 0.0
  %309 = vmatmul.mubr.f32.gmra.mxu0 %v96
  %v310 = vpop.f32.mrf.mxu0
  %v311 = vadd.f32 0.0, %v310
  %v312 = vpop.f32.mrf.mxu0
  %313 = vmatprep.mubr.f32.mxu0 0.0
  %314 = vmatmul.mubr.f32.gmra.mxu0 %v99
  %v315 = vpop.f32.mrf.mxu0
  %v316 = vadd.f32 0.0, %v315
  %v317 = vpop.f32.mrf.mxu0
  %318 = vmatprep.mubr.f32.mxu0 0.0
  %319 = vmatmul.mubr.f32.gmra.mxu0 %v102
  %v320 = vpop.f32.mrf.mxu0
  %v321 = vadd.f32 0.0, %v320
  %v322 = vpop.f32.mrf.mxu0
  %323 = vmatprep.mubr.f32.mxu0 0.0
  %324 = vmatmul.mubr.f32.gmra.mxu0 %v105
  %v325 = vpop.f32.mrf.mxu0
  %v326 = vadd.f32 0.0, %v325
  %v327 = vpop.f32.mrf.mxu0
  %328 = vmatprep.mubr.f32.mxu0 0.0
  %329 = vmatmul.mubr.f32.gmra.mxu0 %v108
  %v330 = vpop.f32.mrf.mxu0
  %v331 = vadd.f32 0.0, %v330
  %v332 = vpop.f32.mrf.mxu0
  %333 = vmatprep.mubr.f32.mxu0 0.0
  %334 = vmatmul.mubr.f32.gmra.mxu0 %v111
  %v335 = vpop.f32.mrf.mxu0
  %v336 = vadd.f32 0.0, %v335
  %v337 = vpop.f32.mrf.mxu0
  %338 = vmatprep.mubr.f32.mxu0 0.0
  %339 = vmatmul.mubr.f32.gmra.mxu0 %v114
  %v340 = vpop.f32.mrf.mxu0
  %v341 = vadd.f32 0.0, %v340
  %v342 = vpop.f32.mrf.mxu0
  %343 = vmatprep.mubr.f32.mxu0 0.0
  %344 = vmatmul.mubr.f32.gmra.mxu0 %v117
  %v345 = vpop.f32.mrf.mxu0
  %v346 = vadd.f32 0.0, %v345
  %v347 = vpop.f32.mrf.mxu0
  %348 = vmatprep.mubr.f32.mxu0 0.0
  %349 = vmatmul.mubr.f32.gmra.mxu0 %v120
  %v350 = vpop.f32.mrf.mxu0
  %v351 = vadd.f32 0.0, %v350
  %v352 = vpop.f32.mrf.mxu0
  %353 = vmatprep.mubr.f32.mxu0 0.0
  %354 = vmatmul.mubr.f32.gmra.mxu0 %v123
  %v355 = vpop.f32.mrf.mxu0
  %v356 = vadd.f32 0.0, %v355
  %v357 = vpop.f32.mrf.mxu0
  %358 = vmatprep.mubr.f32.mxu0 0.0
  %359 = vmatmul.mubr.f32.gmra.mxu0 %v126
  %v360 = vpop.f32.mrf.mxu0
  %v361 = vadd.f32 0.0, %v360
  %v362 = vpop.f32.mrf.mxu0
  %363 = vmatprep.mubr.f32.mxu0 0.0
  %364 = vmatmul.mubr.f32.gmra.mxu0 %v129
  %v365 = vpop.f32.mrf.mxu0
  %v366 = vadd.f32 0.0, %v365
  %v367 = vpop.f32.mrf.mxu0
  %368 = vmatprep.mubr.f32.mxu0 0.0
  %369 = vmatmul.mubr.f32.gmra.mxu0 %v132
  %v370 = vpop.f32.mrf.mxu0
  %v371 = vadd.f32 0.0, %v370
  %v372 = vpop.f32.mrf.mxu0
  %373 = vmatprep.mubr.f32.mxu0 0.0
  %374 = vmatmul.mubr.f32.gmra.mxu0 %v135
  %v375 = vpop.f32.mrf.mxu0
  %v376 = vadd.f32 0.0, %v375
  %v377 = vpop.f32.mrf.mxu0
  %378 = vmatprep.mubr.f32.mxu0 0.0
  %379 = vmatmul.mubr.f32.gmra.mxu0 %v138
  %v380 = vpop.f32.mrf.mxu0
  %v381 = vadd.f32 0.0, %v380
  %v382 = vpop.f32.mrf.mxu0
  %383 = vmatprep.mubr.f32.mxu0 0.0
  %384 = vmatmul.mubr.f32.gmra.mxu0 %v141
  %v385 = vpop.f32.mrf.mxu0
  %v386 = vadd.f32 0.0, %v385
  %v387 = vpop.f32.mrf.mxu0
  %388 = vmatprep.mubr.f32.mxu0 0.0
  %389 = vmatmul.mubr.f32.gmra.mxu0 %v144
  %v390 = vpop.f32.mrf.mxu0
  %v391 = vadd.f32 0.0, %v390
  %v392 = vpop.f32.mrf.mxu0
  %393 = vmatprep.mubr.f32.mxu0 0.0
  %394 = vmatmul.mubr.f32.gmra.mxu0 %v147
  %v395 = vpop.f32.mrf.mxu0
  %v396 = vadd.f32 0.0, %v395
  %v397 = vpop.f32.mrf.mxu0
  %398 = vmatprep.mubr.f32.mxu0 0.0
  %399 = vmatmul.mubr.f32.gmra.mxu0 %v150
  %v400 = vpop.f32.mrf.mxu0
  %v401 = vadd.f32 0.0, %v400
  %v402 = vpop.f32.mrf.mxu0
  %403 = vmatprep.mubr.f32.mxu0 0.0
  %404 = vmatmul.mubr.f32.gmra.mxu0 %v153
  %v405 = vpop.f32.mrf.mxu0
  %v406 = vadd.f32 0.0, %v405
  %v407 = vpop.f32.mrf.mxu0
  %408 = vmatprep.mubr.f32.mxu0 0.0
  %409 = vmatmul.mubr.f32.gmra.mxu0 %v156
  %v410 = vpop.f32.mrf.mxu0
  %v411 = vadd.f32 0.0, %v410
  %v412 = vpop.f32.mrf.mxu0
  %413 = vmatprep.mubr.f32.mxu0 0.0
  %414 = vmatmul.mubr.f32.gmra.mxu0 %v159
  %v415 = vpop.f32.mrf.mxu0
  %v416 = vadd.f32 0.0, %v415
  %v417 = vpop.f32.mrf.mxu0
  %418 = vmatprep.mubr.f32.mxu0 0.0
  %419 = vmatmul.mubr.f32.gmra.mxu0 %v162
  %v420 = vpop.f32.mrf.mxu0
  %v421 = vadd.f32 0.0, %v420
  %v422 = vpop.f32.mrf.mxu0
  %423 = vmatprep.mubr.f32.mxu0 0.0
  %424 = vmatmul.mubr.f32.gmra.mxu0 %v165
  %v425 = vpop.f32.mrf.mxu0
  %v426 = vadd.f32 0.0, %v425
  %v427 = vpop.f32.mrf.mxu0
  %428 = vmatprep.mubr.f32.mxu0 0.0
  %429 = vmatmul.mubr.f32.gmra.mxu0 %v168
  %v430 = vpop.f32.mrf.mxu0
  %v431 = vadd.f32 0.0, %v430
  %v432 = vpop.f32.mrf.mxu0
  %433 = vmatprep.mubr.f32.mxu0 0.0
  %434 = vmatmul.mubr.f32.gmra.mxu0 %v171
  %v435 = vpop.f32.mrf.mxu0
  %v436 = vadd.f32 0.0, %v435
  %v437 = vpop.f32.mrf.mxu0
  %438 = vmatprep.mubr.f32.mxu0 0.0
  %439 = vmatmul.mubr.f32.gmra.mxu0 %v174
  %v440 = vpop.f32.mrf.mxu0
  %v441 = vadd.f32 0.0, %v440
  %v442 = vpop.f32.mrf.mxu0
  %443 = vmatprep.mubr.f32.mxu0 0.0
  %444 = vmatmul.mubr.f32.gmra.mxu0 %v177
  %v445 = vpop.f32.mrf.mxu0
  %v446 = vadd.f32 0.0, %v445
  %v447 = vpop.f32.mrf.mxu0
  %448 = vmatprep.mubr.f32.mxu0 0.0
  %449 = vmatmul.mubr.f32.gmra.mxu0 %v180
  %v450 = vpop.f32.mrf.mxu0
  %v451 = vadd.f32 0.0, %v450
  %v452 = vpop.f32.mrf.mxu0
  %453 = vmatprep.mubr.f32.mxu0 0.0
  %454 = vmatmul.mubr.f32.gmra.mxu0 %v183
  %v455 = vpop.f32.mrf.mxu0
  %v456 = vadd.f32 0.0, %v455
  %v457 = vpop.f32.mrf.mxu0
  %458 = vmatprep.mubr.f32.mxu0 0.0
  %459 = vmatmul.mubr.f32.gmra.mxu0 %v186
  %v460 = vpop.f32.mrf.mxu0
  %v461 = vadd.f32 0.0, %v460
  %v462 = vpop.f32.mrf.mxu0
  %463 = vmatprep.mubr.f32.mxu0 0.0
  %464 = vmatmul.mubr.f32.gmra.mxu0 %v189
  %v465 = vpop.f32.mrf.mxu0
  %v466 = vadd.f32 0.0, %v465
  %v467 = vpop.f32.mrf.mxu0
  %468 = vmatprep.mubr.f32.mxu0 0.0
  %469 = vmatmul.mubr.f32.gmra.mxu0 %v192
  %v470 = vpop.f32.mrf.mxu0
  %v471 = vadd.f32 0.0, %v470
  %v472 = vpop.f32.mrf.mxu0
  %473 = vmatprep.mubr.f32.mxu0 0.0
  %474 = vmatmul.mubr.f32.gmra.mxu0 %v195
  %v475 = vpop.f32.mrf.mxu0
  %v476 = vadd.f32 0.0, %v475
  %v477 = vpop.f32.mrf.mxu0
  %478 = vmatprep.mubr.f32.mxu0 0.0
  %479 = vmatmul.mubr.f32.gmra.mxu0 %v198
  %v480 = vpop.f32.mrf.mxu0
  %v481 = vadd.f32 0.0, %v480
  %v482 = vpop.f32.mrf.mxu0
  %483 = vmatprep.mubr.f32.mxu0 0.0
  %484 = vmatmul.mubr.f32.gmra.mxu0 %v201
  %v485 = vpop.f32.mrf.mxu0
  %v486 = vadd.f32 0.0, %v485
  %v487 = vpop.f32.mrf.mxu0
  %488 = vmatprep.mubr.f32.mxu0 0.0
  %489 = vmatmul.mubr.f32.gmra.mxu0 %v204
  %v490 = vpop.f32.mrf.mxu0
  %v491 = vadd.f32 0.0, %v490
  %v492 = vpop.f32.mrf.mxu0
  %493 = vmatprep.mubr.f32.mxu0 0.0
  %494 = vmatmul.mubr.f32.gmra.mxu0 %v207
  %v495 = vpop.f32.mrf.mxu0
  %v496 = vadd.f32 0.0, %v495
  %v497 = vpop.f32.mrf.mxu0
  %498 = vmatprep.mubr.f32.mxu0 0.0
  %499 = vmatmul.mubr.f32.gmra.mxu0 %v210
  %v500 = vpop.f32.mrf.mxu0
  %v501 = vadd.f32 0.0, %v500
  %v502 = vpop.f32.mrf.mxu0
  %503 = vmatprep.mubr.f32.mxu0 0.0
  %504 = vmatmul.mubr.f32.gmra.mxu0 %v213
  %v505 = vpop.f32.mrf.mxu0
  %v506 = vadd.f32 0.0, %v505
  %v507 = vpop.f32.mrf.mxu0
  %508 = vmatprep.mubr.f32.mxu0 0.0
  %509 = vmatmul.mubr.f32.gmra.mxu0 %v216
  %v510 = vpop.f32.mrf.mxu0
  %v511 = vadd.f32 0.0, %v510
  %v512 = vpop.f32.mrf.mxu0
  %513 = vmatprep.mubr.f32.mxu0 0.0
  %514 = vmatmul.mubr.f32.gmra.mxu0 %v219
  %v515 = vpop.f32.mrf.mxu0
  %v516 = vadd.f32 0.0, %v515
  %v517 = vpop.f32.mrf.mxu0
  %518 = vmatprep.mubr.f32.mxu0 0.0
  %519 = vmatmul.mubr.f32.gmra.mxu0 %v222
  %v520 = vpop.f32.mrf.mxu0
  %v521 = vadd.f32 0.0, %v520
  %v522 = vpop.f32.mrf.mxu0
  %523 = vmatprep.mubr.f32.mxu0 0.0
  %524 = vmatmul.mubr.f32.gmra.mxu0 %v225
  %v525 = vpop.f32.mrf.mxu0
  %v526 = vadd.f32 0.0, %v525
  %v527 = vpop.f32.mrf.mxu0
  %528 = vmatprep.mubr.f32.mxu0 0.0
  %529 = vmatmul.mubr.f32.gmra.mxu0 %v228
  %v530 = vpop.f32.mrf.mxu0
  %v531 = vadd.f32 0.0, %v530
  %v532 = vpop.f32.mrf.mxu0
  %533 = vmatprep.mubr.f32.mxu0 0.0
  %534 = vmatmul.mubr.f32.gmra.mxu0 %v231
  %v535 = vpop.f32.mrf.mxu0
  %v536 = vadd.f32 0.0, %v535
  %v537 = vpop.f32.mrf.mxu0
  %538 = vmatprep.mubr.f32.mxu0 0.0
  %539 = vmatmul.mubr.f32.gmra.mxu0 %v234
  %v540 = vpop.f32.mrf.mxu0
  %v541 = vadd.f32 0.0, %v540
  %v542 = vpop.f32.mrf.mxu0
  %543 = vmatprep.mubr.f32.mxu0 0.0
  %544 = vmatmul.mubr.f32.gmra.mxu0 %v237
  %v545 = vpop.f32.mrf.mxu0
  %v546 = vadd.f32 0.0, %v545
  %v547 = vpop.f32.mrf.mxu0
  %548 = vdwg.mxu0
  %v549 = vld [vmem:[%s1] sm:$0xff]
  %v550 = vld [vmem:[%s1 + $0x8] sm:$0xff]
  %v551 = vld [vmem:[%s1 + $0x10] sm:$0xff]
  %v552 = vld [vmem:[%s1 + $0x18] sm:$0xff]
  %v553 = vld [vmem:[%s1 + $0x20] sm:$0xff]
  %v554 = vld [vmem:[%s1 + $0x28] sm:$0xff]
  %v555 = vld [vmem:[%s1 + $0x30] sm:$0xff]
  %v556 = vld [vmem:[%s1 + $0x38] sm:$0xff]
  %v557 = vld [vmem:[%s1 + $0x40] sm:$0xff]
  %v558 = vld [vmem:[%s1 + $0x48] sm:$0xff]
  %v559 = vld [vmem:[%s1 + $0x50] sm:$0xff]
  %v560 = vld [vmem:[%s1 + $0x58] sm:$0xff]
  %v561 = vld [vmem:[%s1 + $0x60] sm:$0xff]
  %v562 = vld [vmem:[%s1 + $0x68] sm:$0xff]
  %v563 = vld [vmem:[%s1 + $0x70] sm:$0xff]
  %v564 = vld [vmem:[%s1 + $0x78] sm:$0xff]
  %v565 = vld [vmem:[%s1 + $0x80] sm:$0xff]
  %v566 = vld [vmem:[%s1 + $0x88] sm:$0xff]
  %v567 = vld [vmem:[%s1 + $0x90] sm:$0xff]
  %v568 = vld [vmem:[%s1 + $0x98] sm:$0xff]
  %v569 = vld [vmem:[%s1 + $0xa0] sm:$0xff]
  %v570 = vld [vmem:[%s1 + $0xa8] sm:$0xff]
  %v571 = vld [vmem:[%s1 + $0xb0] sm:$0xff]
  %v572 = vld [vmem:[%s1 + $0xb8] sm:$0xff]
  %v573 = vld [vmem:[%s1 + $0xc0] sm:$0xff]
  %v574 = vld [vmem:[%s1 + $0xc8] sm:$0xff]
  %v575 = vld [vmem:[%s1 + $0xd0] sm:$0xff]
  %v576 = vld [vmem:[%s1 + $0xd8] sm:$0xff]
  %v577 = vld [vmem:[%s1 + $0xe0] sm:$0xff]
  %v578 = vld [vmem:[%s1 + $0xe8] sm:$0xff]
  %v579 = vld [vmem:[%s1 + $0xf0] sm:$0xff]
  %v580 = vld [vmem:[%s1 + $0xf8] sm:$0xff]
  %v581 = vld [vmem:[%s1 + $0x100] sm:$0xff]
  %v582 = vld [vmem:[%s1 + $0x108] sm:$0xff]
  %v583 = vld [vmem:[%s1 + $0x110] sm:$0xff]
  %v584 = vld [vmem:[%s1 + $0x118] sm:$0xff]
  %v585 = vld [vmem:[%s1 + $0x120] sm:$0xff]
  %v586 = vld [vmem:[%s1 + $0x128] sm:$0xff]
  %v587 = vld [vmem:[%s1 + $0x130] sm:$0xff]
  %v588 = vld [vmem:[%s1 + $0x138] sm:$0xff]
  %v589 = vld [vmem:[%s1 + $0x140] sm:$0xff]
  %v590 = vld [vmem:[%s1 + $0x148] sm:$0xff]
  %v591 = vld [vmem:[%s1 + $0x150] sm:$0xff]
  %v592 = vld [vmem:[%s1 + $0x158] sm:$0xff]
  %v593 = vld [vmem:[%s1 + $0x160] sm:$0xff]
  %v594 = vld [vmem:[%s1 + $0x168] sm:$0xff]
  %v595 = vld [vmem:[%s1 + $0x170] sm:$0xff]
  %v596 = vld [vmem:[%s1 + $0x178] sm:$0xff]
  %v597 = vld [vmem:[%s1 + $0x180] sm:$0xff]
  %599 = vset.pattern.permute.xlu0 0
  %600 = vperm.xlu0 %599, %v549
  %v601 = vpop.permute.xlu0 %600
  %604 = vset.pattern.permute.xlu0 0
  %605 = vperm.xlu0 %604, %v550
  %v606 = vpop.permute.xlu0 %605
  %609 = vset.pattern.permute.xlu0 0
  %610 = vperm.xlu0 %609, %v551
  %v611 = vpop.permute.xlu0 %610
  %614 = vset.pattern.permute.xlu0 0
  %615 = vperm.xlu0 %614, %v552
  %v616 = vpop.permute.xlu0 %615
  %619 = vset.pattern.permute.xlu0 0
  %620 = vperm.xlu0 %619, %v553
  %v621 = vpop.permute.xlu0 %620
  %624 = vset.pattern.permute.xlu0 0
  %625 = vperm.xlu0 %624, %v554
  %v626 = vpop.permute.xlu0 %625
  %629 = vset.pattern.permute.xlu0 0
  %630 = vperm.xlu0 %629, %v555
  %v631 = vpop.permute.xlu0 %630
  %634 = vset.pattern.permute.xlu0 0
  %635 = vperm.xlu0 %634, %v556
  %v636 = vpop.permute.xlu0 %635
  %639 = vset.pattern.permute.xlu0 0
  %640 = vperm.xlu0 %639, %v557
  %v641 = vpop.permute.xlu0 %640
  %644 = vset.pattern.permute.xlu0 0
  %645 = vperm.xlu0 %644, %v558
  %v646 = vpop.permute.xlu0 %645
  %649 = vset.pattern.permute.xlu0 0
  %650 = vperm.xlu0 %649, %v559
  %v651 = vpop.permute.xlu0 %650
  %654 = vset.pattern.permute.xlu0 0
  %655 = vperm.xlu0 %654, %v560
  %v656 = vpop.permute.xlu0 %655
  %659 = vset.pattern.permute.xlu0 0
  %660 = vperm.xlu0 %659, %v561
  %v661 = vpop.permute.xlu0 %660
  %664 = vset.pattern.permute.xlu0 0
  %665 = vperm.xlu0 %664, %v562
  %v666 = vpop.permute.xlu0 %665
  %669 = vset.pattern.permute.xlu0 0
  %670 = vperm.xlu0 %669, %v563
  %v671 = vpop.permute.xlu0 %670
  %674 = vset.pattern.permute.xlu0 0
  %675 = vperm.xlu0 %674, %v564
  %v676 = vpop.permute.xlu0 %675
  %679 = vset.pattern.permute.xlu0 0
  %680 = vperm.xlu0 %679, %v565
  %v681 = vpop.permute.xlu0 %680
  %684 = vset.pattern.permute.xlu0 0
  %685 = vperm.xlu0 %684, %v566
  %v686 = vpop.permute.xlu0 %685
  %689 = vset.pattern.permute.xlu0 0
  %690 = vperm.xlu0 %689, %v567
  %v691 = vpop.permute.xlu0 %690
  %694 = vset.pattern.permute.xlu0 0
  %695 = vperm.xlu0 %694, %v568
  %v696 = vpop.permute.xlu0 %695
  %699 = vset.pattern.permute.xlu0 0
  %700 = vperm.xlu0 %699, %v569
  %v701 = vpop.permute.xlu0 %700
  %704 = vset.pattern.permute.xlu0 0
  %705 = vperm.xlu0 %704, %v570
  %v706 = vpop.permute.xlu0 %705
  %709 = vset.pattern.permute.xlu0 0
  %710 = vperm.xlu0 %709, %v571
  %v711 = vpop.permute.xlu0 %710
  %714 = vset.pattern.permute.xlu0 0
  %715 = vperm.xlu0 %714, %v572
  %v716 = vpop.permute.xlu0 %715
  %719 = vset.pattern.permute.xlu0 0
  %720 = vperm.xlu0 %719, %v573
  %v721 = vpop.permute.xlu0 %720
  %724 = vset.pattern.permute.xlu0 0
  %725 = vperm.xlu0 %724, %v574
  %v726 = vpop.permute.xlu0 %725
  %729 = vset.pattern.permute.xlu0 0
  %730 = vperm.xlu0 %729, %v575
  %v731 = vpop.permute.xlu0 %730
  %734 = vset.pattern.permute.xlu0 0
  %735 = vperm.xlu0 %734, %v576
  %v736 = vpop.permute.xlu0 %735
  %739 = vset.pattern.permute.xlu0 0
  %740 = vperm.xlu0 %739, %v577
  %v741 = vpop.permute.xlu0 %740
  %744 = vset.pattern.permute.xlu0 0
  %745 = vperm.xlu0 %744, %v578
  %v746 = vpop.permute.xlu0 %745
  %749 = vset.pattern.permute.xlu0 0
  %750 = vperm.xlu0 %749, %v579
  %v751 = vpop.permute.xlu0 %750
  %754 = vset.pattern.permute.xlu0 0
  %755 = vperm.xlu0 %754, %v580
  %v756 = vpop.permute.xlu0 %755
  %759 = vset.pattern.permute.xlu0 0
  %760 = vperm.xlu0 %759, %v581
  %v761 = vpop.permute.xlu0 %760
  %764 = vset.pattern.permute.xlu0 0
  %765 = vperm.xlu0 %764, %v582
  %v766 = vpop.permute.xlu0 %765
  %769 = vset.pattern.permute.xlu0 0
  %770 = vperm.xlu0 %769, %v583
  %v771 = vpop.permute.xlu0 %770
  %774 = vset.pattern.permute.xlu0 0
  %775 = vperm.xlu0 %774, %v584
  %v776 = vpop.permute.xlu0 %775
  %779 = vset.pattern.permute.xlu0 0
  %780 = vperm.xlu0 %779, %v585
  %v781 = vpop.permute.xlu0 %780
  %784 = vset.pattern.permute.xlu0 0
  %785 = vperm.xlu0 %784, %v586
  %v786 = vpop.permute.xlu0 %785
  %789 = vset.pattern.permute.xlu0 0
  %790 = vperm.xlu0 %789, %v587
  %v791 = vpop.permute.xlu0 %790
  %794 = vset.pattern.permute.xlu0 0
  %795 = vperm.xlu0 %794, %v588
  %v796 = vpop.permute.xlu0 %795
  %799 = vset.pattern.permute.xlu0 0
  %800 = vperm.xlu0 %799, %v589
  %v801 = vpop.permute.xlu0 %800
  %804 = vset.pattern.permute.xlu0 0
  %805 = vperm.xlu0 %804, %v590
  %v806 = vpop.permute.xlu0 %805
  %809 = vset.pattern.permute.xlu0 0
  %810 = vperm.xlu0 %809, %v591
  %v811 = vpop.permute.xlu0 %810
  %814 = vset.pattern.permute.xlu0 0
  %815 = vperm.xlu0 %814, %v592
  %v816 = vpop.permute.xlu0 %815
  %819 = vset.pattern.permute.xlu0 0
  %820 = vperm.xlu0 %819, %v593
  %v821 = vpop.permute.xlu0 %820
  %824 = vset.pattern.permute.xlu0 0
  %825 = vperm.xlu0 %824, %v594
  %v826 = vpop.permute.xlu0 %825
  %829 = vset.pattern.permute.xlu0 0
  %830 = vperm.xlu0 %829, %v595
  %v831 = vpop.permute.xlu0 %830
  %834 = vset.pattern.permute.xlu0 0
  %835 = vperm.xlu0 %834, %v596
  %v836 = vpop.permute.xlu0 %835
  %839 = vset.pattern.permute.xlu0 0
  %840 = vperm.xlu0 %839, %v597
  %v841 = vpop.permute.xlu0 %840
  %v843 = vmul.f32 %v306, %v601
  %v844 = vmul.f32 %v311, %v606
  %v845 = vmul.f32 %v316, %v611
  %v846 = vmul.f32 %v321, %v616
  %v847 = vmul.f32 %v326, %v621
  %v848 = vmul.f32 %v331, %v626
  %v849 = vmul.f32 %v336, %v631
  %v850 = vmul.f32 %v341, %v636
  %v851 = vmul.f32 %v346, %v641
  %v852 = vmul.f32 %v351, %v646
  %v853 = vmul.f32 %v356, %v651
  %v854 = vmul.f32 %v361, %v656
  %v855 = vmul.f32 %v366, %v661
  %v856 = vmul.f32 %v371, %v666
  %v857 = vmul.f32 %v376, %v671
  %v858 = vmul.f32 %v381, %v676
  %v859 = vmul.f32 %v386, %v681
  %v860 = vmul.f32 %v391, %v686
  %v861 = vmul.f32 %v396, %v691
  %v862 = vmul.f32 %v401, %v696
  %v863 = vmul.f32 %v406, %v701
  %v864 = vmul.f32 %v411, %v706
  %v865 = vmul.f32 %v416, %v711
  %v866 = vmul.f32 %v421, %v716
  %v867 = vmul.f32 %v426, %v721
  %v868 = vmul.f32 %v431, %v726
  %v869 = vmul.f32 %v436, %v731
  %v870 = vmul.f32 %v441, %v736
  %v871 = vmul.f32 %v446, %v741
  %v872 = vmul.f32 %v451, %v746
  %v873 = vmul.f32 %v456, %v751
  %v874 = vmul.f32 %v461, %v756
  %v875 = vmul.f32 %v466, %v761
  %v876 = vmul.f32 %v471, %v766
  %v877 = vmul.f32 %v476, %v771
  %v878 = vmul.f32 %v481, %v776
  %v879 = vmul.f32 %v486, %v781
  %v880 = vmul.f32 %v491, %v786
  %v881 = vmul.f32 %v496, %v791
  %v882 = vmul.f32 %v501, %v796
  %v883 = vmul.f32 %v506, %v801
  %v884 = vmul.f32 %v511, %v806
  %v885 = vmul.f32 %v516, %v811
  %v886 = vmul.f32 %v521, %v816
  %v887 = vmul.f32 %v526, %v821
  %v888 = vmul.f32 %v531, %v826
  %v889 = vmul.f32 %v536, %v831
  %v890 = vmul.f32 %v541, %v836
  %v891 = vmul.f32 %v546, %v841
  %v892 = vsel %vm91, %v843, 0.0
  %v893 = vsel %vm91, %v844, 0.0
  %v894 = vadd.f32 %v892, %v893
  %v895 = vsel %vm91, %v845, 0.0
  %v896 = vadd.f32 %v894, %v895
  %v897 = vsel %vm91, %v846, 0.0
  %v898 = vadd.f32 %v896, %v897
  %v899 = vsel %vm91, %v847, 0.0
  %v900 = vadd.f32 %v898, %v899
  %v901 = vsel %vm91, %v848, 0.0
  %v902 = vadd.f32 %v900, %v901
  %v903 = vsel %vm91, %v849, 0.0
  %v904 = vadd.f32 %v902, %v903
  %v905 = vsel %vm91, %v850, 0.0
  %v906 = vadd.f32 %v904, %v905
  %v907 = vsel %vm91, %v851, 0.0
  %v908 = vadd.f32 %v906, %v907
  %v909 = vsel %vm91, %v852, 0.0
  %v910 = vadd.f32 %v908, %v909
  %v911 = vsel %vm91, %v853, 0.0
  %v912 = vadd.f32 %v910, %v911
  %v913 = vsel %vm91, %v854, 0.0
  %v914 = vadd.f32 %v912, %v913
  %v915 = vsel %vm91, %v855, 0.0
  %v916 = vadd.f32 %v914, %v915
  %v917 = vsel %vm91, %v856, 0.0
  %v918 = vadd.f32 %v916, %v917
  %v919 = vsel %vm91, %v857, 0.0
  %v920 = vadd.f32 %v918, %v919
  %v921 = vsel %vm91, %v858, 0.0
  %v922 = vadd.f32 %v920, %v921
  %v923 = vsel %vm91, %v859, 0.0
  %v924 = vadd.f32 %v922, %v923
  %v925 = vsel %vm91, %v860, 0.0
  %v926 = vadd.f32 %v924, %v925
  %v927 = vsel %vm91, %v861, 0.0
  %v928 = vadd.f32 %v926, %v927
  %v929 = vsel %vm91, %v862, 0.0
  %v930 = vadd.f32 %v928, %v929
  %v931 = vsel %vm91, %v863, 0.0
  %v932 = vadd.f32 %v930, %v931
  %v933 = vsel %vm91, %v864, 0.0
  %v934 = vadd.f32 %v932, %v933
  %v935 = vsel %vm91, %v865, 0.0
  %v936 = vadd.f32 %v934, %v935
  %v937 = vsel %vm91, %v866, 0.0
  %v938 = vadd.f32 %v936, %v937
  %v939 = vsel %vm91, %v867, 0.0
  %v940 = vadd.f32 %v938, %v939
  %v941 = vsel %vm91, %v868, 0.0
  %v942 = vadd.f32 %v940, %v941
  %v943 = vsel %vm91, %v869, 0.0
  %v944 = vadd.f32 %v942, %v943
  %v945 = vsel %vm91, %v870, 0.0
  %v946 = vadd.f32 %v944, %v945
  %v947 = vsel %vm91, %v871, 0.0
  %v948 = vadd.f32 %v946, %v947
  %v949 = vsel %vm91, %v872, 0.0
  %v950 = vadd.f32 %v948, %v949
  %v951 = vsel %vm91, %v873, 0.0
  %v952 = vadd.f32 %v950, %v951
  %v953 = vsel %vm91, %v874, 0.0
  %v954 = vadd.f32 %v952, %v953
  %v955 = vsel %vm91, %v875, 0.0
  %v956 = vadd.f32 %v954, %v955
  %v957 = vsel %vm91, %v876, 0.0
  %v958 = vadd.f32 %v956, %v957
  %v959 = vsel %vm91, %v877, 0.0
  %v960 = vadd.f32 %v958, %v959
  %v961 = vsel %vm91, %v878, 0.0
  %v962 = vadd.f32 %v960, %v961
  %v963 = vsel %vm91, %v879, 0.0
  %v964 = vadd.f32 %v962, %v963
  %v965 = vsel %vm91, %v880, 0.0
  %v966 = vadd.f32 %v964, %v965
  %v967 = vsel %vm91, %v881, 0.0
  %v968 = vadd.f32 %v966, %v967
  %v969 = vsel %vm91, %v882, 0.0
  %v970 = vadd.f32 %v968, %v969
  %v971 = vsel %vm91, %v883, 0.0
  %v972 = vadd.f32 %v970, %v971
  %v973 = vsel %vm91, %v884, 0.0
  %v974 = vadd.f32 %v972, %v973
  %v975 = vsel %vm91, %v885, 0.0
  %v976 = vadd.f32 %v974, %v975
  %v977 = vsel %vm91, %v886, 0.0
  %v978 = vadd.f32 %v976, %v977
  %v979 = vsel %vm91, %v887, 0.0
  %v980 = vadd.f32 %v978, %v979
  %v981 = vsel %vm91, %v888, 0.0
  %v982 = vadd.f32 %v980, %v981
  %v983 = vsel %vm91, %v889, 0.0
  %v984 = vadd.f32 %v982, %v983
  %v985 = vsel %vm91, %v890, 0.0
  %v986 = vadd.f32 %v984, %v985
  %v987 = vsel %vm91, %v891, 0.0
  %v988 = vadd.f32 %v986, %v987
  %v989 = vrot.slane %v988, 4
  %v990 = vadd.f32 %v988, %v989
  %v991 = vrot.slane %v990, 2
  %v992 = vadd.f32 %v990, %v991
  %v993 = vrot.slane %v992, 1
  %v994 = vadd.f32 %v992, %v993
  %v995 = vrcp.pop 338.0
  %v996 = vmul.f32 %v994, %v995
  %v997 = vsub.f32 %v306, %v996
  %v998 = vsub.f32 %v311, %v996
  %v999 = vsub.f32 %v316, %v996
  %v1000 = vsub.f32 %v321, %v996
  %v1001 = vsub.f32 %v326, %v996
  %v1002 = vsub.f32 %v331, %v996
  %v1003 = vsub.f32 %v336, %v996
  %v1004 = vsub.f32 %v341, %v996
  %v1005 = vsub.f32 %v346, %v996
  %v1006 = vsub.f32 %v351, %v996
  %v1007 = vsub.f32 %v356, %v996
  %v1008 = vsub.f32 %v361, %v996
  %v1009 = vsub.f32 %v366, %v996
  %v1010 = vsub.f32 %v371, %v996
  %v1011 = vsub.f32 %v376, %v996
  %v1012 = vsub.f32 %v381, %v996
  %v1013 = vsub.f32 %v386, %v996
  %v1014 = vsub.f32 %v391, %v996
  %v1015 = vsub.f32 %v396, %v996
  %v1016 = vsub.f32 %v401, %v996
  %v1017 = vsub.f32 %v406, %v996
  %v1018 = vsub.f32 %v411, %v996
  %v1019 = vsub.f32 %v416, %v996
  %v1020 = vsub.f32 %v421, %v996
  %v1021 = vsub.f32 %v426, %v996
  %v1022 = vsub.f32 %v431, %v996
  %v1023 = vsub.f32 %v436, %v996
  %v1024 = vsub.f32 %v441, %v996
  %v1025 = vsub.f32 %v446, %v996
  %v1026 = vsub.f32 %v451, %v996
  %v1027 = vsub.f32 %v456, %v996
  %v1028 = vsub.f32 %v461, %v996
  %v1029 = vsub.f32 %v466, %v996
  %v1030 = vsub.f32 %v471, %v996
  %v1031 = vsub.f32 %v476, %v996
  %v1032 = vsub.f32 %v481, %v996
  %v1033 = vsub.f32 %v486, %v996
  %v1034 = vsub.f32 %v491, %v996
  %v1035 = vsub.f32 %v496, %v996
  %v1036 = vsub.f32 %v501, %v996
  %v1037 = vsub.f32 %v506, %v996
  %v1038 = vsub.f32 %v511, %v996
  %v1039 = vsub.f32 %v516, %v996
  %v1040 = vsub.f32 %v521, %v996
  %v1041 = vsub.f32 %v526, %v996
  %v1042 = vsub.f32 %v531, %v996
  %v1043 = vsub.f32 %v536, %v996
  %v1044 = vsub.f32 %v541, %v996
  %v1045 = vsub.f32 %v546, %v996
  %v1046 = vmul.f32 %v997, %v601
  %v1047 = vmul.f32 %v998, %v606
  %v1048 = vmul.f32 %v999, %v611
  %v1049 = vmul.f32 %v1000, %v616
  %v1050 = vmul.f32 %v1001, %v621
  %v1051 = vmul.f32 %v1002, %v626
  %v1052 = vmul.f32 %v1003, %v631
  %v1053 = vmul.f32 %v1004, %v636
  %v1054 = vmul.f32 %v1005, %v641
  %v1055 = vmul.f32 %v1006, %v646
  %v1056 = vmul.f32 %v1007, %v651
  %v1057 = vmul.f32 %v1008, %v656
  %v1058 = vmul.f32 %v1009, %v661
  %v1059 = vmul.f32 %v1010, %v666
  %v1060 = vmul.f32 %v1011, %v671
  %v1061 = vmul.f32 %v1012, %v676
  %v1062 = vmul.f32 %v1013, %v681
  %v1063 = vmul.f32 %v1014, %v686
  %v1064 = vmul.f32 %v1015, %v691
  %v1065 = vmul.f32 %v1016, %v696
  %v1066 = vmul.f32 %v1017, %v701
  %v1067 = vmul.f32 %v1018, %v706
  %v1068 = vmul.f32 %v1019, %v711
  %v1069 = vmul.f32 %v1020, %v716
  %v1070 = vmul.f32 %v1021, %v721
  %v1071 = vmul.f32 %v1022, %v726
  %v1072 = vmul.f32 %v1023, %v731
  %v1073 = vmul.f32 %v1024, %v736
  %v1074 = vmul.f32 %v1025, %v741
  %v1075 = vmul.f32 %v1026, %v746
  %v1076 = vmul.f32 %v1027, %v751
  %v1077 = vmul.f32 %v1028, %v756
  %v1078 = vmul.f32 %v1029, %v761
  %v1079 = vmul.f32 %v1030, %v766
  %v1080 = vmul.f32 %v1031, %v771
  %v1081 = vmul.f32 %v1032, %v776
  %v1082 = vmul.f32 %v1033, %v781
  %v1083 = vmul.f32 %v1034, %v786
  %v1084 = vmul.f32 %v1035, %v791
  %v1085 = vmul.f32 %v1036, %v796
  %v1086 = vmul.f32 %v1037, %v801
  %v1087 = vmul.f32 %v1038, %v806
  %v1088 = vmul.f32 %v1039, %v811
  %v1089 = vmul.f32 %v1040, %v816
  %v1090 = vmul.f32 %v1041, %v821
  %v1091 = vmul.f32 %v1042, %v826
  %v1092 = vmul.f32 %v1043, %v831
  %v1093 = vmul.f32 %v1044, %v836
  %v1094 = vmul.f32 %v1045, %v841
  %v1095 = vmul.f32 %v1046, %v1046
  %v1096 = vmul.f32 %v1047, %v1047
  %v1097 = vmul.f32 %v1048, %v1048
  %v1098 = vmul.f32 %v1049, %v1049
  %v1099 = vmul.f32 %v1050, %v1050
  %v1100 = vmul.f32 %v1051, %v1051
  %v1101 = vmul.f32 %v1052, %v1052
  %v1102 = vmul.f32 %v1053, %v1053
  %v1103 = vmul.f32 %v1054, %v1054
  %v1104 = vmul.f32 %v1055, %v1055
  %v1105 = vmul.f32 %v1056, %v1056
  %v1106 = vmul.f32 %v1057, %v1057
  %v1107 = vmul.f32 %v1058, %v1058
  %v1108 = vmul.f32 %v1059, %v1059
  %v1109 = vmul.f32 %v1060, %v1060
  %v1110 = vmul.f32 %v1061, %v1061
  %v1111 = vmul.f32 %v1062, %v1062
  %v1112 = vmul.f32 %v1063, %v1063
  %v1113 = vmul.f32 %v1064, %v1064
  %v1114 = vmul.f32 %v1065, %v1065
  %v1115 = vmul.f32 %v1066, %v1066
  %v1116 = vmul.f32 %v1067, %v1067
  %v1117 = vmul.f32 %v1068, %v1068
  %v1118 = vmul.f32 %v1069, %v1069
  %v1119 = vmul.f32 %v1070, %v1070
  %v1120 = vmul.f32 %v1071, %v1071
  %v1121 = vmul.f32 %v1072, %v1072
  %v1122 = vmul.f32 %v1073, %v1073
  %v1123 = vmul.f32 %v1074, %v1074
  %v1124 = vmul.f32 %v1075, %v1075
  %v1125 = vmul.f32 %v1076, %v1076
  %v1126 = vmul.f32 %v1077, %v1077
  %v1127 = vmul.f32 %v1078, %v1078
  %v1128 = vmul.f32 %v1079, %v1079
  %v1129 = vmul.f32 %v1080, %v1080
  %v1130 = vmul.f32 %v1081, %v1081
  %v1131 = vmul.f32 %v1082, %v1082
  %v1132 = vmul.f32 %v1083, %v1083
  %v1133 = vmul.f32 %v1084, %v1084
  %v1134 = vmul.f32 %v1085, %v1085
  %v1135 = vmul.f32 %v1086, %v1086
  %v1136 = vmul.f32 %v1087, %v1087
  %v1137 = vmul.f32 %v1088, %v1088
  %v1138 = vmul.f32 %v1089, %v1089
  %v1139 = vmul.f32 %v1090, %v1090
  %v1140 = vmul.f32 %v1091, %v1091
  %v1141 = vmul.f32 %v1092, %v1092
  %v1142 = vmul.f32 %v1093, %v1093
  %v1143 = vmul.f32 %v1094, %v1094
  %v1144 = vsel %vm91, %v1095, 0.0
  %v1145 = vsel %vm91, %v1096, 0.0
  %v1146 = vadd.f32 %v1144, %v1145
  %v1147 = vsel %vm91, %v1097, 0.0
  %v1148 = vadd.f32 %v1146, %v1147
  %v1149 = vsel %vm91, %v1098, 0.0
  %v1150 = vadd.f32 %v1148, %v1149
  %v1151 = vsel %vm91, %v1099, 0.0
  %v1152 = vadd.f32 %v1150, %v1151
  %v1153 = vsel %vm91, %v1100, 0.0
  %v1154 = vadd.f32 %v1152, %v1153
  %v1155 = vsel %vm91, %v1101, 0.0
  %v1156 = vadd.f32 %v1154, %v1155
  %v1157 = vsel %vm91, %v1102, 0.0
  %v1158 = vadd.f32 %v1156, %v1157
  %v1159 = vsel %vm91, %v1103, 0.0
  %v1160 = vadd.f32 %v1158, %v1159
  %v1161 = vsel %vm91, %v1104, 0.0
  %v1162 = vadd.f32 %v1160, %v1161
  %v1163 = vsel %vm91, %v1105, 0.0
  %v1164 = vadd.f32 %v1162, %v1163
  %v1165 = vsel %vm91, %v1106, 0.0
  %v1166 = vadd.f32 %v1164, %v1165
  %v1167 = vsel %vm91, %v1107, 0.0
  %v1168 = vadd.f32 %v1166, %v1167
  %v1169 = vsel %vm91, %v1108, 0.0
  %v1170 = vadd.f32 %v1168, %v1169
  %v1171 = vsel %vm91, %v1109, 0.0
  %v1172 = vadd.f32 %v1170, %v1171
  %v1173 = vsel %vm91, %v1110, 0.0
  %v1174 = vadd.f32 %v1172, %v1173
  %v1175 = vsel %vm91, %v1111, 0.0
  %v1176 = vadd.f32 %v1174, %v1175
  %v1177 = vsel %vm91, %v1112, 0.0
  %v1178 = vadd.f32 %v1176, %v1177
  %v1179 = vsel %vm91, %v1113, 0.0
  %v1180 = vadd.f32 %v1178, %v1179
  %v1181 = vsel %vm91, %v1114, 0.0
  %v1182 = vadd.f32 %v1180, %v1181
  %v1183 = vsel %vm91, %v1115, 0.0
  %v1184 = vadd.f32 %v1182, %v1183
  %v1185 = vsel %vm91, %v1116, 0.0
  %v1186 = vadd.f32 %v1184, %v1185
  %v1187 = vsel %vm91, %v1117, 0.0
  %v1188 = vadd.f32 %v1186, %v1187
  %v1189 = vsel %vm91, %v1118, 0.0
  %v1190 = vadd.f32 %v1188, %v1189
  %v1191 = vsel %vm91, %v1119, 0.0
  %v1192 = vadd.f32 %v1190, %v1191
  %v1193 = vsel %vm91, %v1120, 0.0
  %v1194 = vadd.f32 %v1192, %v1193
  %v1195 = vsel %vm91, %v1121, 0.0
  %v1196 = vadd.f32 %v1194, %v1195
  %v1197 = vsel %vm91, %v1122, 0.0
  %v1198 = vadd.f32 %v1196, %v1197
  %v1199 = vsel %vm91, %v1123, 0.0
  %v1200 = vadd.f32 %v1198, %v1199
  %v1201 = vsel %vm91, %v1124, 0.0
  %v1202 = vadd.f32 %v1200, %v1201
  %v1203 = vsel %vm91, %v1125, 0.0
  %v1204 = vadd.f32 %v1202, %v1203
  %v1205 = vsel %vm91, %v1126, 0.0
  %v1206 = vadd.f32 %v1204, %v1205
  %v1207 = vsel %vm91, %v1127, 0.0
  %v1208 = vadd.f32 %v1206, %v1207
  %v1209 = vsel %vm91, %v1128, 0.0
  %v1210 = vadd.f32 %v1208, %v1209
  %v1211 = vsel %vm91, %v1129, 0.0
  %v1212 = vadd.f32 %v1210, %v1211
  %v1213 = vsel %vm91, %v1130, 0.0
  %v1214 = vadd.f32 %v1212, %v1213
  %v1215 = vsel %vm91, %v1131, 0.0
  %v1216 = vadd.f32 %v1214, %v1215
  %v1217 = vsel %vm91, %v1132, 0.0
  %v1218 = vadd.f32 %v1216, %v1217
  %v1219 = vsel %vm91, %v1133, 0.0
  %v1220 = vadd.f32 %v1218, %v1219
  %v1221 = vsel %vm91, %v1134, 0.0
  %v1222 = vadd.f32 %v1220, %v1221
  %v1223 = vsel %vm91, %v1135, 0.0
  %v1224 = vadd.f32 %v1222, %v1223
  %v1225 = vsel %vm91, %v1136, 0.0
  %v1226 = vadd.f32 %v1224, %v1225
  %v1227 = vsel %vm91, %v1137, 0.0
  %v1228 = vadd.f32 %v1226, %v1227
  %v1229 = vsel %vm91, %v1138, 0.0
  %v1230 = vadd.f32 %v1228, %v1229
  %v1231 = vsel %vm91, %v1139, 0.0
  %v1232 = vadd.f32 %v1230, %v1231
  %v1233 = vsel %vm91, %v1140, 0.0
  %v1234 = vadd.f32 %v1232, %v1233
  %v1235 = vsel %vm91, %v1141, 0.0
  %v1236 = vadd.f32 %v1234, %v1235
  %v1237 = vsel %vm91, %v1142, 0.0
  %v1238 = vadd.f32 %v1236, %v1237
  %v1239 = vsel %vm91, %v1143, 0.0
  %v1240 = vadd.f32 %v1238, %v1239
  %v1241 = vrot.slane %v1240, 4
  %v1242 = vadd.f32 %v1240, %v1241
  %v1243 = vrot.slane %v1242, 2
  %v1244 = vadd.f32 %v1242, %v1243
  %v1245 = vrot.slane %v1244, 1
  %v1246 = vadd.f32 %v1244, %v1245
  %v1247 = vmul.f32 %v1246, %v995
  %v1248 = vld [vmem:[%s3] sm:$0x1]
  %v1249 = vadd.f32 %v1247, 1e-05
  %v1250 = vrsqrt.pop %v1249
  %v1251 = vmul.f32 %v1248, %v1250
  %v1252 = vld [vmem:[%s4] sm:$0x1]
  %v1253 = vmul.f32 %v996, %v1251
  %v1254 = vsub.f32 %v1252, %v1253
  %v1256 = vlaneseq
  %v1257 = vshrl.u32 %v1256, 7
  %v1258 = vsub.s32 0, %v1257
  %v1259 = vrot.slane %v1251, %v1258
  %v1261 = vmul.f32 %v306, %v1259
  %v1262 = vmul.f32 %v311, %v1259
  %v1263 = vmul.f32 %v316, %v1259
  %v1264 = vmul.f32 %v321, %v1259
  %v1265 = vmul.f32 %v326, %v1259
  %v1266 = vmul.f32 %v331, %v1259
  %v1267 = vmul.f32 %v336, %v1259
  %v1268 = vmul.f32 %v341, %v1259
  %v1269 = vmul.f32 %v346, %v1259
  %v1270 = vmul.f32 %v351, %v1259
  %v1271 = vmul.f32 %v356, %v1259
  %v1272 = vmul.f32 %v361, %v1259
  %v1273 = vmul.f32 %v366, %v1259
  %v1274 = vmul.f32 %v371, %v1259
  %v1275 = vmul.f32 %v376, %v1259
  %v1276 = vmul.f32 %v381, %v1259
  %v1277 = vmul.f32 %v386, %v1259
  %v1278 = vmul.f32 %v391, %v1259
  %v1279 = vmul.f32 %v396, %v1259
  %v1280 = vmul.f32 %v401, %v1259
  %v1281 = vmul.f32 %v406, %v1259
  %v1282 = vmul.f32 %v411, %v1259
  %v1283 = vmul.f32 %v416, %v1259
  %v1284 = vmul.f32 %v421, %v1259
  %v1285 = vmul.f32 %v426, %v1259
  %v1286 = vmul.f32 %v431, %v1259
  %v1287 = vmul.f32 %v436, %v1259
  %v1288 = vmul.f32 %v441, %v1259
  %v1289 = vmul.f32 %v446, %v1259
  %v1290 = vmul.f32 %v451, %v1259
  %v1291 = vmul.f32 %v456, %v1259
  %v1292 = vmul.f32 %v461, %v1259
  %v1293 = vmul.f32 %v466, %v1259
  %v1294 = vmul.f32 %v471, %v1259
  %v1295 = vmul.f32 %v476, %v1259
  %v1296 = vmul.f32 %v481, %v1259
  %v1297 = vmul.f32 %v486, %v1259
  %v1298 = vmul.f32 %v491, %v1259
  %v1299 = vmul.f32 %v496, %v1259
  %v1300 = vmul.f32 %v501, %v1259
  %v1301 = vmul.f32 %v506, %v1259
  %v1302 = vmul.f32 %v511, %v1259
  %v1303 = vmul.f32 %v516, %v1259
  %v1304 = vmul.f32 %v521, %v1259
  %v1305 = vmul.f32 %v526, %v1259
  %v1306 = vmul.f32 %v531, %v1259
  %v1307 = vmul.f32 %v536, %v1259
  %v1308 = vmul.f32 %v541, %v1259
  %v1310 = vlaneseq
  %v1311 = vshrl.u32 %v1310, 7
  %v1312 = vsub.s32 0, %v1311
  %v1313 = vrot.slane %v1254, %v1312
  %v1315 = vadd.f32 %v1261, %v1313
  %v1316 = vadd.f32 %v1262, %v1313
  %v1317 = vadd.f32 %v1263, %v1313
  %v1318 = vadd.f32 %v1264, %v1313
  %v1319 = vadd.f32 %v1265, %v1313
  %v1320 = vadd.f32 %v1266, %v1313
  %v1321 = vadd.f32 %v1267, %v1313
  %v1322 = vadd.f32 %v1268, %v1313
  %v1323 = vadd.f32 %v1269, %v1313
  %v1324 = vadd.f32 %v1270, %v1313
  %v1325 = vadd.f32 %v1271, %v1313
  %v1326 = vadd.f32 %v1272, %v1313
  %v1327 = vadd.f32 %v1273, %v1313
  %v1328 = vadd.f32 %v1274, %v1313
  %v1329 = vadd.f32 %v1275, %v1313
  %v1330 = vadd.f32 %v1276, %v1313
  %v1331 = vadd.f32 %v1277, %v1313
  %v1332 = vadd.f32 %v1278, %v1313
  %v1333 = vadd.f32 %v1279, %v1313
  %v1334 = vadd.f32 %v1280, %v1313
  %v1335 = vadd.f32 %v1281, %v1313
  %v1336 = vadd.f32 %v1282, %v1313
  %v1337 = vadd.f32 %v1283, %v1313
  %v1338 = vadd.f32 %v1284, %v1313
  %v1339 = vadd.f32 %v1285, %v1313
  %v1340 = vadd.f32 %v1286, %v1313
  %v1341 = vadd.f32 %v1287, %v1313
  %v1342 = vadd.f32 %v1288, %v1313
  %v1343 = vadd.f32 %v1289, %v1313
  %v1344 = vadd.f32 %v1290, %v1313
  %v1345 = vadd.f32 %v1291, %v1313
  %v1346 = vadd.f32 %v1292, %v1313
  %v1347 = vadd.f32 %v1293, %v1313
  %v1348 = vadd.f32 %v1294, %v1313
  %v1349 = vadd.f32 %v1295, %v1313
  %v1350 = vadd.f32 %v1296, %v1313
  %v1351 = vadd.f32 %v1297, %v1313
  %v1352 = vadd.f32 %v1298, %v1313
  %v1353 = vadd.f32 %v1299, %v1313
  %v1354 = vadd.f32 %v1300, %v1313
  %v1355 = vadd.f32 %v1301, %v1313
  %v1356 = vadd.f32 %v1302, %v1313
  %v1357 = vadd.f32 %v1303, %v1313
  %v1358 = vadd.f32 %v1304, %v1313
  %v1359 = vadd.f32 %v1305, %v1313
  %v1360 = vadd.f32 %v1306, %v1313
  %v1361 = vadd.f32 %v1307, %v1313
  %v1362 = vadd.f32 %v1308, %v1313
  %vm1363 = vcmp.ge.f32.partialorder %v1315, 0.0
  %vm1364 = vcmp.ge.f32.partialorder %v1316, 0.0
  %vm1365 = vcmp.ge.f32.partialorder %v1317, 0.0
  %vm1366 = vcmp.ge.f32.partialorder %v1318, 0.0
  %vm1367 = vcmp.ge.f32.partialorder %v1319, 0.0
  %vm1368 = vcmp.ge.f32.partialorder %v1320, 0.0
  %vm1369 = vcmp.ge.f32.partialorder %v1321, 0.0
  %vm1370 = vcmp.ge.f32.partialorder %v1322, 0.0
  %vm1371 = vcmp.ge.f32.partialorder %v1323, 0.0
  %vm1372 = vcmp.ge.f32.partialorder %v1324, 0.0
  %vm1373 = vcmp.ge.f32.partialorder %v1325, 0.0
  %vm1374 = vcmp.ge.f32.partialorder %v1326, 0.0
  %vm1375 = vcmp.ge.f32.partialorder %v1327, 0.0
  %vm1376 = vcmp.ge.f32.partialorder %v1328, 0.0
  %vm1377 = vcmp.ge.f32.partialorder %v1329, 0.0
  %vm1378 = vcmp.ge.f32.partialorder %v1330, 0.0
  %vm1379 = vcmp.ge.f32.partialorder %v1331, 0.0
  %vm1380 = vcmp.ge.f32.partialorder %v1332, 0.0
  %vm1381 = vcmp.ge.f32.partialorder %v1333, 0.0
  %vm1382 = vcmp.ge.f32.partialorder %v1334, 0.0
  %vm1383 = vcmp.ge.f32.partialorder %v1335, 0.0
  %vm1384 = vcmp.ge.f32.partialorder %v1336, 0.0
  %vm1385 = vcmp.ge.f32.partialorder %v1337, 0.0
  %vm1386 = vcmp.ge.f32.partialorder %v1338, 0.0
  %vm1387 = vcmp.ge.f32.partialorder %v1339, 0.0
  %vm1388 = vcmp.ge.f32.partialorder %v1340, 0.0
  %vm1389 = vcmp.ge.f32.partialorder %v1341, 0.0
  %vm1390 = vcmp.ge.f32.partialorder %v1342, 0.0
  %vm1391 = vcmp.ge.f32.partialorder %v1343, 0.0
  %vm1392 = vcmp.ge.f32.partialorder %v1344, 0.0
  %vm1393 = vcmp.ge.f32.partialorder %v1345, 0.0
  %vm1394 = vcmp.ge.f32.partialorder %v1346, 0.0
  %vm1395 = vcmp.ge.f32.partialorder %v1347, 0.0
  %vm1396 = vcmp.ge.f32.partialorder %v1348, 0.0
  %vm1397 = vcmp.ge.f32.partialorder %v1349, 0.0
  %vm1398 = vcmp.ge.f32.partialorder %v1350, 0.0
  %vm1399 = vcmp.ge.f32.partialorder %v1351, 0.0
  %vm1400 = vcmp.ge.f32.partialorder %v1352, 0.0
  %vm1401 = vcmp.ge.f32.partialorder %v1353, 0.0
  %vm1402 = vcmp.ge.f32.partialorder %v1354, 0.0
  %vm1403 = vcmp.ge.f32.partialorder %v1355, 0.0
  %vm1404 = vcmp.ge.f32.partialorder %v1356, 0.0
  %vm1405 = vcmp.ge.f32.partialorder %v1357, 0.0
  %vm1406 = vcmp.ge.f32.partialorder %v1358, 0.0
  %vm1407 = vcmp.ge.f32.partialorder %v1359, 0.0
  %vm1408 = vcmp.ge.f32.partialorder %v1360, 0.0
  %vm1409 = vcmp.ge.f32.partialorder %v1361, 0.0
  %vm1410 = vcmp.ge.f32.partialorder %v1362, 0.0
  %v1411 = vmul.f32 %v1315, 0.2
  %v1412 = vmul.f32 %v1316, 0.2
  %v1413 = vmul.f32 %v1317, 0.2
  %v1414 = vmul.f32 %v1318, 0.2
  %v1415 = vmul.f32 %v1319, 0.2
  %v1416 = vmul.f32 %v1320, 0.2
  %v1417 = vmul.f32 %v1321, 0.2
  %v1418 = vmul.f32 %v1322, 0.2
  %v1419 = vmul.f32 %v1323, 0.2
  %v1420 = vmul.f32 %v1324, 0.2
  %v1421 = vmul.f32 %v1325, 0.2
  %v1422 = vmul.f32 %v1326, 0.2
  %v1423 = vmul.f32 %v1327, 0.2
  %v1424 = vmul.f32 %v1328, 0.2
  %v1425 = vmul.f32 %v1329, 0.2
  %v1426 = vmul.f32 %v1330, 0.2
  %v1427 = vmul.f32 %v1331, 0.2
  %v1428 = vmul.f32 %v1332, 0.2
  %v1429 = vmul.f32 %v1333, 0.2
  %v1430 = vmul.f32 %v1334, 0.2
  %v1431 = vmul.f32 %v1335, 0.2
  %v1432 = vmul.f32 %v1336, 0.2
  %v1433 = vmul.f32 %v1337, 0.2
  %v1434 = vmul.f32 %v1338, 0.2
  %v1435 = vmul.f32 %v1339, 0.2
  %v1436 = vmul.f32 %v1340, 0.2
  %v1437 = vmul.f32 %v1341, 0.2
  %v1438 = vmul.f32 %v1342, 0.2
  %v1439 = vmul.f32 %v1343, 0.2
  %v1440 = vmul.f32 %v1344, 0.2
  %v1441 = vmul.f32 %v1345, 0.2
  %v1442 = vmul.f32 %v1346, 0.2
  %v1443 = vmul.f32 %v1347, 0.2
  %v1444 = vmul.f32 %v1348, 0.2
  %v1445 = vmul.f32 %v1349, 0.2
  %v1446 = vmul.f32 %v1350, 0.2
  %v1447 = vmul.f32 %v1351, 0.2
  %v1448 = vmul.f32 %v1352, 0.2
  %v1449 = vmul.f32 %v1353, 0.2
  %v1450 = vmul.f32 %v1354, 0.2
  %v1451 = vmul.f32 %v1355, 0.2
  %v1452 = vmul.f32 %v1356, 0.2
  %v1453 = vmul.f32 %v1357, 0.2
  %v1454 = vmul.f32 %v1358, 0.2
  %v1455 = vmul.f32 %v1359, 0.2
  %v1456 = vmul.f32 %v1360, 0.2
  %v1457 = vmul.f32 %v1361, 0.2
  %v1458 = vmul.f32 %v1362, 0.2
  %v1459 = vsel %vm1363, %v1315, %v1411
  %v1460 = vsel %vm1364, %v1316, %v1412
  %v1461 = vsel %vm1365, %v1317, %v1413
  %v1462 = vsel %vm1366, %v1318, %v1414
  %v1463 = vsel %vm1367, %v1319, %v1415
  %v1464 = vsel %vm1368, %v1320, %v1416
  %v1465 = vsel %vm1369, %v1321, %v1417
  %v1466 = vsel %vm1370, %v1322, %v1418
  %v1467 = vsel %vm1371, %v1323, %v1419
  %v1468 = vsel %vm1372, %v1324, %v1420
  %v1469 = vsel %vm1373, %v1325, %v1421
  %v1470 = vsel %vm1374, %v1326, %v1422
  %v1471 = vsel %vm1375, %v1327, %v1423
  %v1472 = vsel %vm1376, %v1328, %v1424
  %v1473 = vsel %vm1377, %v1329, %v1425
  %v1474 = vsel %vm1378, %v1330, %v1426
  %v1475 = vsel %vm1379, %v1331, %v1427
  %v1476 = vsel %vm1380, %v1332, %v1428
  %v1477 = vsel %vm1381, %v1333, %v1429
  %v1478 = vsel %vm1382, %v1334, %v1430
  %v1479 = vsel %vm1383, %v1335, %v1431
  %v1480 = vsel %vm1384, %v1336, %v1432
  %v1481 = vsel %vm1385, %v1337, %v1433
  %v1482 = vsel %vm1386, %v1338, %v1434
  %v1483 = vsel %vm1387, %v1339, %v1435
  %v1484 = vsel %vm1388, %v1340, %v1436
  %v1485 = vsel %vm1389, %v1341, %v1437
  %v1486 = vsel %vm1390, %v1342, %v1438
  %v1487 = vsel %vm1391, %v1343, %v1439
  %v1488 = vsel %vm1392, %v1344, %v1440
  %v1489 = vsel %vm1393, %v1345, %v1441
  %v1490 = vsel %vm1394, %v1346, %v1442
  %v1491 = vsel %vm1395, %v1347, %v1443
  %v1492 = vsel %vm1396, %v1348, %v1444
  %v1493 = vsel %vm1397, %v1349, %v1445
  %v1494 = vsel %vm1398, %v1350, %v1446
  %v1495 = vsel %vm1399, %v1351, %v1447
  %v1496 = vsel %vm1400, %v1352, %v1448
  %v1497 = vsel %vm1401, %v1353, %v1449
  %v1498 = vsel %vm1402, %v1354, %v1450
  %v1499 = vsel %vm1403, %v1355, %v1451
  %v1500 = vsel %vm1404, %v1356, %v1452
  %v1501 = vsel %vm1405, %v1357, %v1453
  %v1502 = vsel %vm1406, %v1358, %v1454
  %v1503 = vsel %vm1407, %v1359, %v1455
  %v1504 = vsel %vm1408, %v1360, %v1456
  %v1505 = vsel %vm1409, %v1361, %v1457
  %v1506 = vsel %vm1410, %v1362, %v1458
  %vm1507 = vcmask 126976
  %1508 = vst.msk [vmem:[#allocation2] sm:$0x1f] %vm1507, %v1459
  %vm1511 = vcmask 1045504
  %v1512 = vrot.slane %v1459, 2
  %v1513 = vrot.slane %v1460, 2
  %v1514 = vsel %vm1511, %v1512, %v1513
  %vm1517 = vcmask 130053
  %1518 = vst.msk [vmem:[#allocation2] sm:$0xe0] %vm1517, %v1514
  %vm1519 = vcmask 123904
  %1520 = vst.msk [vmem:[#allocation2 + $0x10] sm:$0x3] %vm1519, %v1513
  %vm1522 = vcmask 1043456
  %v1523 = vrot.slane %v1460, 4
  %v1524 = vrot.slane %v1461, 4
  %v1525 = vsel %vm1522, %v1523, %v1524
  %vm1527 = vcmask 129026
  %1528 = vst.msk [vmem:[#allocation2 + $0x10] sm:$0x7c] %vm1527, %v1525
  %vm1530 = vcmask 1041408
  %v1531 = vrot.slane %v1461, 6
  %v1532 = vrot.slane %v1462, 6
  %v1533 = vsel %vm1530, %v1531, %v1532
  %vm1536 = vcmask 130055
  %1537 = vst.msk [vmem:[#allocation2 + $0x10] sm:$0x80] %vm1536, %v1531
  %vm1538 = vcmask 125952
  %1539 = vst.msk [vmem:[#allocation2 + $0x20] sm:$0xf] %vm1538, %v1533
  %vm1540 = vcmask 130052
  %1541 = vst.msk [vmem:[#allocation2 + $0x20] sm:$0xf0] %vm1540, %v1462
  %vm1542 = vcmask 122880
  %1543 = vst.msk [vmem:[#allocation2 + $0x30] sm:$0x1] %vm1542, %v1463
  %vm1546 = vcmask 1044480
  %v1547 = vrot.slane %v1483, 3
  %v1548 = vrot.slane %v1484, 3
  %v1549 = vsel %vm1546, %v1547, %v1548
  %vm1551 = vcmask 128001
  %1552 = vst.msk [vmem:[#allocation2 + $0x30] sm:$0x3e] %vm1551, %v1549
  %v1553 = vrot.slane %v1484, 5
  %vm1555 = vcmask 130054
  %1556 = vst.msk [vmem:[#allocation2 + $0x30] sm:$0xc0] %vm1555, %v1553
  %vm1557 = vcmask 124928
  %1558 = vst.msk [vmem:[#allocation2 + $0x40] sm:$0x7] %vm1557, %v1553
  %v1560 = vrot.slane %v1485, 7
  %vm1562 = vcmask 130051
  %1563 = vst.msk [vmem:[#allocation2 + $0x40] sm:$0xf8] %vm1562, %v1560
  %v1565 = vrot.slane %v1486, 1
  %1567 = vst.msk [vmem:[#allocation2 + $0x50] sm:$0x1f] %vm1507, %v1565
  %v1569 = vrot.slane %v1487, 3
  %1571 = vst.msk [vmem:[#allocation2 + $0x50] sm:$0xe0] %vm1517, %v1569
  %1572 = vst.msk [vmem:[#allocation2 + $0x60] sm:$0x3] %vm1519, %v1569
  %v1574 = vrot.slane %v1465, 1
  %1575 = vrot.lane.b32.xlu0 %v1574, 16
  %v1576 = vpop.permute.xlu0 %1575
  %vm1578 = vcmask 258176
  %1579 = vst.msk [vmem:[#allocation2] sm:$0x1f] %vm1578, %v1576
  %v1581 = vrot.slane %v1466, 3
  %1582 = vrot.lane.b32.xlu0 %v1581, 16
  %v1583 = vpop.permute.xlu0 %1582
  %vm1585 = vcmask 261253
  %1586 = vst.msk [vmem:[#allocation2] sm:$0xe0] %vm1585, %v1583
  %vm1587 = vcmask 255104
  %1588 = vst.msk [vmem:[#allocation2 + $0x10] sm:$0x3] %vm1587, %v1583
  %vm1590 = vcmask 1042432
  %v1591 = vrot.slane %v1466, 5
  %v1592 = vrot.slane %v1467, 5
  %v1593 = vsel %vm1590, %v1591, %v1592
  %1594 = vrot.lane.b32.xlu0 %v1593, 16
  %v1595 = vpop.permute.xlu0 %1594
  %vm1597 = vcmask 260226
  %1598 = vst.msk [vmem:[#allocation2 + $0x10] sm:$0x7c] %vm1597, %v1595
  %vm1600 = vcmask 1040384
  %v1601 = vrot.slane %v1467, 7
  %v1602 = vrot.slane %v1468, 7
  %v1603 = vsel %vm1600, %v1601, %v1602
  %1604 = vrot.lane.b32.xlu0 %v1601, 16
  %v1605 = vpop.permute.xlu0 %1604
  %1606 = vrot.lane.b32.xlu0 %v1603, 16
  %v1607 = vpop.permute.xlu0 %1606
  %vm1610 = vcmask 261255
  %1611 = vst.msk [vmem:[#allocation2 + $0x10] sm:$0x80] %vm1610, %v1605
  %vm1612 = vcmask 257152
  %1613 = vst.msk [vmem:[#allocation2 + $0x20] sm:$0xf] %vm1612, %v1607
  %vm1615 = vcmask 1046528
  %v1616 = vrot.slane %v1468, 1
  %v1617 = vrot.slane %v1469, 1
  %v1618 = vsel %vm1615, %v1616, %v1617
  %1619 = vrot.lane.b32.xlu0 %v1618, 16
  %v1620 = vpop.permute.xlu0 %1619
  %1621 = vrot.lane.b32.xlu0 %v1617, 16
  %v1622 = vpop.permute.xlu0 %1621
  %vm1625 = vcmask 261252
  %1626 = vst.msk [vmem:[#allocation2 + $0x20] sm:$0xf0] %vm1625, %v1620
  %vm1627 = vcmask 254080
  %1628 = vst.msk [vmem:[#allocation2 + $0x30] sm:$0x1] %vm1627, %v1622
  %v1631 = vrot.slane %v1489, 4
  %v1632 = vrot.slane %v1490, 4
  %v1633 = vsel %vm1522, %v1631, %v1632
  %1634 = vrot.lane.b32.xlu0 %v1633, 16
  %v1635 = vpop.permute.xlu0 %1634
  %vm1637 = vcmask 259201
  %1638 = vst.msk [vmem:[#allocation2 + $0x30] sm:$0x3e] %vm1637, %v1635
  %v1640 = vrot.slane %v1490, 6
  %v1641 = vrot.slane %v1491, 6
  %v1642 = vsel %vm1530, %v1640, %v1641
  %1643 = vrot.lane.b32.xlu0 %v1640, 16
  %v1644 = vpop.permute.xlu0 %1643
  %1645 = vrot.lane.b32.xlu0 %v1642, 16
  %v1646 = vpop.permute.xlu0 %1645
  %vm1649 = vcmask 261254
  %1650 = vst.msk [vmem:[#allocation2 + $0x30] sm:$0xc0] %vm1649, %v1644
  %vm1651 = vcmask 256128
  %1652 = vst.msk [vmem:[#allocation2 + $0x40] sm:$0x7] %vm1651, %v1646
  %1653 = vrot.lane.b32.xlu0 %v1491, 16
  %v1654 = vpop.permute.xlu0 %1653
  %vm1656 = vcmask 261251
  %1657 = vst.msk [vmem:[#allocation2 + $0x40] sm:$0xf8] %vm1656, %v1654
  %v1659 = vrot.slane %v1492, 2
  %1660 = vrot.lane.b32.xlu0 %v1659, 16
  %v1661 = vpop.permute.xlu0 %1660
  %1663 = vst.msk [vmem:[#allocation2 + $0x50] sm:$0x1f] %vm1578, %v1661
  %v1665 = vrot.slane %v1493, 4
  %1666 = vrot.lane.b32.xlu0 %v1665, 16
  %v1667 = vpop.permute.xlu0 %1666
  %1669 = vst.msk [vmem:[#allocation2 + $0x50] sm:$0xe0] %vm1585, %v1667
  %1670 = vst.msk [vmem:[#allocation2 + $0x60] sm:$0x3] %vm1587, %v1667
  %v1671 = vrot.slane %v1459, 1
  %1672 = vrot.lane.b32.xlu0 %v1671, 32
  %v1673 = vpop.permute.xlu0 %1672
  %vm1675 = vcmask 389376
  %1676 = vst.msk [vmem:[#allocation2] sm:$0x1f] %vm1675, %v1673
  %v1677 = vrot.slane %v1460, 3
  %1678 = vrot.lane.b32.xlu0 %v1677, 32
  %v1679 = vpop.permute.xlu0 %1678
  %vm1681 = vcmask 392453
  %1682 = vst.msk [vmem:[#allocation2] sm:$0xe0] %vm1681, %v1679
  %vm1683 = vcmask 386304
  %1684 = vst.msk [vmem:[#allocation2 + $0x10] sm:$0x3] %vm1683, %v1679
  %v1685 = vrot.slane %v1460, 5
  %v1686 = vrot.slane %v1461, 5
  %v1687 = vsel %vm1590, %v1685, %v1686
  %1688 = vrot.lane.b32.xlu0 %v1687, 32
  %v1689 = vpop.permute.xlu0 %1688
  %vm1691 = vcmask 391426
  %1692 = vst.msk [vmem:[#allocation2 + $0x10] sm:$0x7c] %vm1691, %v1689
  %v1693 = vrot.slane %v1461, 7
  %v1694 = vrot.slane %v1462, 7
  %v1695 = vsel %vm1600, %v1693, %v1694
  %1696 = vrot.lane.b32.xlu0 %v1693, 32
  %v1697 = vpop.permute.xlu0 %1696
  %1698 = vrot.lane.b32.xlu0 %v1695, 32
  %v1699 = vpop.permute.xlu0 %1698
  %vm1702 = vcmask 392455
  %1703 = vst.msk [vmem:[#allocation2 + $0x10] sm:$0x80] %vm1702, %v1697
  %vm1704 = vcmask 388352
  %1705 = vst.msk [vmem:[#allocation2 + $0x20] sm:$0xf] %vm1704, %v1699
  %v1707 = vrot.slane %v1462, 1
  %v1708 = vrot.slane %v1463, 1
  %v1709 = vsel %vm1615, %v1707, %v1708
  %1710 = vrot.lane.b32.xlu0 %v1709, 32
  %v1711 = vpop.permute.xlu0 %1710
  %1712 = vrot.lane.b32.xlu0 %v1708, 32
  %v1713 = vpop.permute.xlu0 %1712
  %vm1716 = vcmask 392452
  %1717 = vst.msk [vmem:[#allocation2 + $0x20] sm:$0xf0] %vm1716, %v1711
  %vm1718 = vcmask 385280
  %1719 = vst.msk [vmem:[#allocation2 + $0x30] sm:$0x1] %vm1718, %v1713
  %v1720 = vrot.slane %v1483, 4
  %v1721 = vrot.slane %v1484, 4
  %v1722 = vsel %vm1522, %v1720, %v1721
  %1723 = vrot.lane.b32.xlu0 %v1722, 32
  %v1724 = vpop.permute.xlu0 %1723
  %vm1726 = vcmask 390401
  %1727 = vst.msk [vmem:[#allocation2 + $0x30] sm:$0x3e] %vm1726, %v1724
  %v1728 = vrot.slane %v1484, 6
  %v1729 = vrot.slane %v1485, 6
  %v1730 = vsel %vm1530, %v1728, %v1729
  %1731 = vrot.lane.b32.xlu0 %v1728, 32
  %v1732 = vpop.permute.xlu0 %1731
  %1733 = vrot.lane.b32.xlu0 %v1730, 32
  %v1734 = vpop.permute.xlu0 %1733
  %vm1737 = vcmask 392454
  %1738 = vst.msk [vmem:[#allocation2 + $0x30] sm:$0xc0] %vm1737, %v1732
  %vm1739 = vcmask 387328
  %1740 = vst.msk [vmem:[#allocation2 + $0x40] sm:$0x7] %vm1739, %v1734
  %1741 = vrot.lane.b32.xlu0 %v1485, 32
  %v1742 = vpop.permute.xlu0 %1741
  %vm1744 = vcmask 392451
  %1745 = vst.msk [vmem:[#allocation2 + $0x40] sm:$0xf8] %vm1744, %v1742
  %v1746 = vrot.slane %v1486, 2
  %1747 = vrot.lane.b32.xlu0 %v1746, 32
  %v1748 = vpop.permute.xlu0 %1747
  %1750 = vst.msk [vmem:[#allocation2 + $0x50] sm:$0x1f] %vm1675, %v1748
  %v1751 = vrot.slane %v1487, 4
  %1752 = vrot.lane.b32.xlu0 %v1751, 32
  %v1753 = vpop.permute.xlu0 %1752
  %1755 = vst.msk [vmem:[#allocation2 + $0x50] sm:$0xe0] %vm1681, %v1753
  %1756 = vst.msk [vmem:[#allocation2 + $0x60] sm:$0x3] %vm1683, %v1753
  %v1757 = vrot.slane %v1465, 2
  %1758 = vrot.lane.b32.xlu0 %v1757, 48
  %v1759 = vpop.permute.xlu0 %1758
  %vm1761 = vcmask 520576
  %1762 = vst.msk [vmem:[#allocation2] sm:$0x1f] %vm1761, %v1759
  %v1763 = vrot.slane %v1466, 4
  %1764 = vrot.lane.b32.xlu0 %v1763, 48
  %v1765 = vpop.permute.xlu0 %1764
  %vm1767 = vcmask 523653
  %1768 = vst.msk [vmem:[#allocation2] sm:$0xe0] %vm1767, %v1765
  %vm1769 = vcmask 517504
  %1770 = vst.msk [vmem:[#allocation2 + $0x10] sm:$0x3] %vm1769, %v1765
  %v1771 = vrot.slane %v1467, 6
  %1772 = vrot.lane.b32.xlu0 %v1771, 48
  %v1773 = vpop.permute.xlu0 %1772
  %vm1775 = vcmask 522626
  %1776 = vst.msk [vmem:[#allocation2 + $0x10] sm:$0x7c] %vm1775, %v1773
  %1777 = vrot.lane.b32.xlu0 %v1467, 48
  %v1778 = vpop.permute.xlu0 %1777
  %1779 = vrot.lane.b32.xlu0 %v1468, 48
  %v1780 = vpop.permute.xlu0 %1779
  %vm1783 = vcmask 523655
  %1784 = vst.msk [vmem:[#allocation2 + $0x10] sm:$0x80] %vm1783, %v1778
  %vm1785 = vcmask 519552
  %1786 = vst.msk [vmem:[#allocation2 + $0x20] sm:$0xf] %vm1785, %v1780
  %v1787 = vrot.slane %v1468, 2
  %v1788 = vrot.slane %v1469, 2
  %v1789 = vsel %vm1511, %v1787, %v1788
  %1790 = vrot.lane.b32.xlu0 %v1789, 48
  %v1791 = vpop.permute.xlu0 %1790
  %1792 = vrot.lane.b32.xlu0 %v1788, 48
  %v1793 = vpop.permute.xlu0 %1792
  %vm1796 = vcmask 523652
  %1797 = vst.msk [vmem:[#allocation2 + $0x20] sm:$0xf0] %vm1796, %v1791
  %vm1798 = vcmask 516480
  %1799 = vst.msk [vmem:[#allocation2 + $0x30] sm:$0x1] %vm1798, %v1793
  %v1800 = vrot.slane %v1489, 5
  %v1801 = vrot.slane %v1490, 5
  %v1802 = vsel %vm1590, %v1800, %v1801
  %1803 = vrot.lane.b32.xlu0 %v1802, 48
  %v1804 = vpop.permute.xlu0 %1803
  %vm1806 = vcmask 521601
  %1807 = vst.msk [vmem:[#allocation2 + $0x30] sm:$0x3e] %vm1806, %v1804
  %v1808 = vrot.slane %v1490, 7
  %v1809 = vrot.slane %v1491, 7
  %v1810 = vsel %vm1600, %v1808, %v1809
  %1811 = vrot.lane.b32.xlu0 %v1808, 48
  %v1812 = vpop.permute.xlu0 %1811
  %1813 = vrot.lane.b32.xlu0 %v1810, 48
  %v1814 = vpop.permute.xlu0 %1813
  %vm1817 = vcmask 523654
  %1818 = vst.msk [vmem:[#allocation2 + $0x30] sm:$0xc0] %vm1817, %v1812
  %vm1819 = vcmask 518528
  %1820 = vst.msk [vmem:[#allocation2 + $0x40] sm:$0x7] %vm1819, %v1814
  %v1821 = vrot.slane %v1491, 1
  %v1822 = vrot.slane %v1492, 1
  %v1823 = vsel %vm1615, %v1821, %v1822
  %1824 = vrot.lane.b32.xlu0 %v1823, 48
  %v1825 = vpop.permute.xlu0 %1824
  %vm1827 = vcmask 523651
  %1828 = vst.msk [vmem:[#allocation2 + $0x40] sm:$0xf8] %vm1827, %v1825
  %v1829 = vrot.slane %v1492, 3
  %1830 = vrot.lane.b32.xlu0 %v1829, 48
  %v1831 = vpop.permute.xlu0 %1830
  %1833 = vst.msk [vmem:[#allocation2 + $0x50] sm:$0x1f] %vm1761, %v1831
  %v1834 = vrot.slane %v1493, 5
  %1835 = vrot.lane.b32.xlu0 %v1834, 48
  %v1836 = vpop.permute.xlu0 %1835
  %1838 = vst.msk [vmem:[#allocation2 + $0x50] sm:$0xe0] %vm1767, %v1836
  %1839 = vst.msk [vmem:[#allocation2 + $0x60] sm:$0x3] %vm1769, %v1836
  %v1841 = vrot.slane %v1471, 2
  %1842 = vrot.lane.b32.xlu0 %v1841, 64
  %v1843 = vpop.permute.xlu0 %1842
  %vm1845 = vcmask 651776
  %1846 = vst.msk [vmem:[#allocation2] sm:$0x1f] %vm1845, %v1843
  %v1848 = vrot.slane %v1472, 4
  %1849 = vrot.lane.b32.xlu0 %v1848, 64
  %v1850 = vpop.permute.xlu0 %1849
  %vm1852 = vcmask 654853
  %1853 = vst.msk [vmem:[#allocation2] sm:$0xe0] %vm1852, %v1850
  %vm1854 = vcmask 648704
  %1855 = vst.msk [vmem:[#allocation2 + $0x10] sm:$0x3] %vm1854, %v1850
  %v1857 = vrot.slane %v1473, 6
  %1858 = vrot.lane.b32.xlu0 %v1857, 64
  %v1859 = vpop.permute.xlu0 %1858
  %vm1861 = vcmask 653826
  %1862 = vst.msk [vmem:[#allocation2 + $0x10] sm:$0x7c] %vm1861, %v1859
  %1864 = vrot.lane.b32.xlu0 %v1473, 64
  %v1865 = vpop.permute.xlu0 %1864
  %1866 = vrot.lane.b32.xlu0 %v1474, 64
  %v1867 = vpop.permute.xlu0 %1866
  %vm1870 = vcmask 654855
  %1871 = vst.msk [vmem:[#allocation2 + $0x10] sm:$0x80] %vm1870, %v1865
  %vm1872 = vcmask 650752
  %1873 = vst.msk [vmem:[#allocation2 + $0x20] sm:$0xf] %vm1872, %v1867
  %v1875 = vrot.slane %v1474, 2
  %v1876 = vrot.slane %v1475, 2
  %v1877 = vsel %vm1511, %v1875, %v1876
  %1878 = vrot.lane.b32.xlu0 %v1877, 64
  %v1879 = vpop.permute.xlu0 %1878
  %1880 = vrot.lane.b32.xlu0 %v1876, 64
  %v1881 = vpop.permute.xlu0 %1880
  %vm1884 = vcmask 654852
  %1885 = vst.msk [vmem:[#allocation2 + $0x20] sm:$0xf0] %vm1884, %v1879
  %vm1886 = vcmask 647680
  %1887 = vst.msk [vmem:[#allocation2 + $0x30] sm:$0x1] %vm1886, %v1881
  %v1890 = vrot.slane %v1495, 5
  %v1891 = vrot.slane %v1496, 5
  %v1892 = vsel %vm1590, %v1890, %v1891
  %1893 = vrot.lane.b32.xlu0 %v1892, 64
  %v1894 = vpop.permute.xlu0 %1893
  %vm1896 = vcmask 652801
  %1897 = vst.msk [vmem:[#allocation2 + $0x30] sm:$0x3e] %vm1896, %v1894
  %v1899 = vrot.slane %v1496, 7
  %v1900 = vrot.slane %v1497, 7
  %v1901 = vsel %vm1600, %v1899, %v1900
  %1902 = vrot.lane.b32.xlu0 %v1899, 64
  %v1903 = vpop.permute.xlu0 %1902
  %1904 = vrot.lane.b32.xlu0 %v1901, 64
  %v1905 = vpop.permute.xlu0 %1904
  %vm1908 = vcmask 654854
  %1909 = vst.msk [vmem:[#allocation2 + $0x30] sm:$0xc0] %vm1908, %v1903
  %vm1910 = vcmask 649728
  %1911 = vst.msk [vmem:[#allocation2 + $0x40] sm:$0x7] %vm1910, %v1905
  %v1913 = vrot.slane %v1497, 1
  %v1914 = vrot.slane %v1498, 1
  %v1915 = vsel %vm1615, %v1913, %v1914
  %1916 = vrot.lane.b32.xlu0 %v1915, 64
  %v1917 = vpop.permute.xlu0 %1916
  %vm1919 = vcmask 654851
  %1920 = vst.msk [vmem:[#allocation2 + $0x40] sm:$0xf8] %vm1919, %v1917
  %v1921 = vrot.slane %v1498, 3
  %1922 = vrot.lane.b32.xlu0 %v1921, 64
  %v1923 = vpop.permute.xlu0 %1922
  %1925 = vst.msk [vmem:[#allocation2 + $0x50] sm:$0x1f] %vm1845, %v1923
  %v1927 = vrot.slane %v1499, 5
  %1928 = vrot.lane.b32.xlu0 %v1927, 64
  %v1929 = vpop.permute.xlu0 %1928
  %1931 = vst.msk [vmem:[#allocation2 + $0x50] sm:$0xe0] %vm1852, %v1929
  %1932 = vst.msk [vmem:[#allocation2 + $0x60] sm:$0x3] %vm1854, %v1929
  %v1934 = vrot.slane %v1477, 3
  %1935 = vrot.lane.b32.xlu0 %v1934, 80
  %v1936 = vpop.permute.xlu0 %1935
  %vm1938 = vcmask 782976
  %1939 = vst.msk [vmem:[#allocation2] sm:$0x1f] %vm1938, %v1936
  %v1941 = vrot.slane %v1478, 5
  %1942 = vrot.lane.b32.xlu0 %v1941, 80
  %v1943 = vpop.permute.xlu0 %1942
  %vm1945 = vcmask 786053
  %1946 = vst.msk [vmem:[#allocation2] sm:$0xe0] %vm1945, %v1943
  %vm1947 = vcmask 779904
  %1948 = vst.msk [vmem:[#allocation2 + $0x10] sm:$0x3] %vm1947, %v1943
  %v1950 = vrot.slane %v1479, 7
  %1951 = vrot.lane.b32.xlu0 %v1950, 80
  %v1952 = vpop.permute.xlu0 %1951
  %vm1954 = vcmask 785026
  %1955 = vst.msk [vmem:[#allocation2 + $0x10] sm:$0x7c] %vm1954, %v1952
  %v1957 = vrot.slane %v1480, 1
  %1958 = vrot.lane.b32.xlu0 %v1957, 80
  %v1959 = vpop.permute.xlu0 %1958
  %vm1961 = vcmask 786055
  %1962 = vst.msk [vmem:[#allocation2 + $0x10] sm:$0x80] %vm1961, %v1959
  %vm1963 = vcmask 781952
  %1964 = vst.msk [vmem:[#allocation2 + $0x20] sm:$0xf] %vm1963, %v1959
  %v1966 = vrot.slane %v1480, 3
  %v1967 = vrot.slane %v1481, 3
  %v1968 = vsel %vm1546, %v1966, %v1967
  %1969 = vrot.lane.b32.xlu0 %v1968, 80
  %v1970 = vpop.permute.xlu0 %1969
  %1971 = vrot.lane.b32.xlu0 %v1967, 80
  %v1972 = vpop.permute.xlu0 %1971
  %vm1975 = vcmask 786052
  %1976 = vst.msk [vmem:[#allocation2 + $0x20] sm:$0xf0] %vm1975, %v1970
  %vm1977 = vcmask 778880
  %1978 = vst.msk [vmem:[#allocation2 + $0x30] sm:$0x1] %vm1977, %v1972
  %v1981 = vrot.slane %v1501, 6
  %v1982 = vrot.slane %v1502, 6
  %v1983 = vsel %vm1530, %v1981, %v1982
  %1984 = vrot.lane.b32.xlu0 %v1983, 80
  %v1985 = vpop.permute.xlu0 %1984
  %vm1987 = vcmask 784001
  %1988 = vst.msk [vmem:[#allocation2 + $0x30] sm:$0x3e] %vm1987, %v1985
  %1990 = vrot.lane.b32.xlu0 %v1502, 80
  %v1991 = vpop.permute.xlu0 %1990
  %1992 = vrot.lane.b32.xlu0 %v1503, 80
  %v1993 = vpop.permute.xlu0 %1992
  %vm1996 = vcmask 786054
  %1997 = vst.msk [vmem:[#allocation2 + $0x30] sm:$0xc0] %vm1996, %v1991
  %vm1998 = vcmask 780928
  %1999 = vst.msk [vmem:[#allocation2 + $0x40] sm:$0x7] %vm1998, %v1993
  %v2001 = vrot.slane %v1503, 2
  %v2002 = vrot.slane %v1504, 2
  %v2003 = vsel %vm1511, %v2001, %v2002
  %2004 = vrot.lane.b32.xlu0 %v2003, 80
  %v2005 = vpop.permute.xlu0 %2004
  %vm2007 = vcmask 786051
  %2008 = vst.msk [vmem:[#allocation2 + $0x40] sm:$0xf8] %vm2007, %v2005
  %v2010 = vrot.slane %v1504, 4
  %v2011 = vrot.slane %v1505, 4
  %v2012 = vsel %vm1522, %v2010, %v2011
  %2013 = vrot.lane.b32.xlu0 %v2012, 80
  %v2014 = vpop.permute.xlu0 %2013
  %2016 = vst.msk [vmem:[#allocation2 + $0x50] sm:$0x1f] %vm1938, %v2014
  %v2017 = vrot.slane %v1505, 6
  %2018 = vrot.lane.b32.xlu0 %v2017, 80
  %v2019 = vpop.permute.xlu0 %2018
  %2021 = vst.msk [vmem:[#allocation2 + $0x50] sm:$0xe0] %vm1945, %v2019
  %2022 = vst.msk [vmem:[#allocation2 + $0x60] sm:$0x3] %vm1947, %v2019
  %v2023 = vrot.slane %v1471, 3
  %2024 = vrot.lane.b32.xlu0 %v2023, 96
  %v2025 = vpop.permute.xlu0 %2024
  %vm2027 = vcmask 914176
  %2028 = vst.msk [vmem:[#allocation2] sm:$0x1f] %vm2027, %v2025
  %v2029 = vrot.slane %v1472, 5
  %2030 = vrot.lane.b32.xlu0 %v2029, 96
  %v2031 = vpop.permute.xlu0 %2030
  %vm2033 = vcmask 917253
  %2034 = vst.msk [vmem:[#allocation2] sm:$0xe0] %vm2033, %v2031
  %vm2035 = vcmask 911104
  %2036 = vst.msk [vmem:[#allocation2 + $0x10] sm:$0x3] %vm2035, %v2031
  %v2037 = vrot.slane %v1473, 7
  %2038 = vrot.lane.b32.xlu0 %v2037, 96
  %v2039 = vpop.permute.xlu0 %2038
  %vm2041 = vcmask 916226
  %2042 = vst.msk [vmem:[#allocation2 + $0x10] sm:$0x7c] %vm2041, %v2039
  %v2043 = vrot.slane %v1474, 1
  %2044 = vrot.lane.b32.xlu0 %v2043, 96
  %v2045 = vpop.permute.xlu0 %2044
  %vm2047 = vcmask 917255
  %2048 = vst.msk [vmem:[#allocation2 + $0x10] sm:$0x80] %vm2047, %v2045
  %vm2049 = vcmask 913152
  %2050 = vst.msk [vmem:[#allocation2 + $0x20] sm:$0xf] %vm2049, %v2045
  %v2051 = vrot.slane %v1474, 3
  %v2052 = vrot.slane %v1475, 3
  %v2053 = vsel %vm1546, %v2051, %v2052
  %2054 = vrot.lane.b32.xlu0 %v2053, 96
  %v2055 = vpop.permute.xlu0 %2054
  %2056 = vrot.lane.b32.xlu0 %v2052, 96
  %v2057 = vpop.permute.xlu0 %2056
  %vm2060 = vcmask 917252
  %2061 = vst.msk [vmem:[#allocation2 + $0x20] sm:$0xf0] %vm2060, %v2055
  %vm2062 = vcmask 910080
  %2063 = vst.msk [vmem:[#allocation2 + $0x30] sm:$0x1] %vm2062, %v2057
  %v2064 = vrot.slane %v1495, 6
  %v2065 = vrot.slane %v1496, 6
  %v2066 = vsel %vm1530, %v2064, %v2065
  %2067 = vrot.lane.b32.xlu0 %v2066, 96
  %v2068 = vpop.permute.xlu0 %2067
  %vm2070 = vcmask 915201
  %2071 = vst.msk [vmem:[#allocation2 + $0x30] sm:$0x3e] %vm2070, %v2068
  %2072 = vrot.lane.b32.xlu0 %v1496, 96
  %v2073 = vpop.permute.xlu0 %2072
  %2074 = vrot.lane.b32.xlu0 %v1497, 96
  %v2075 = vpop.permute.xlu0 %2074
  %vm2078 = vcmask 917254
  %2079 = vst.msk [vmem:[#allocation2 + $0x30] sm:$0xc0] %vm2078, %v2073
  %vm2080 = vcmask 912128
  %2081 = vst.msk [vmem:[#allocation2 + $0x40] sm:$0x7] %vm2080, %v2075
  %v2082 = vrot.slane %v1497, 2
  %v2083 = vrot.slane %v1498, 2
  %v2084 = vsel %vm1511, %v2082, %v2083
  %2085 = vrot.lane.b32.xlu0 %v2084, 96
  %v2086 = vpop.permute.xlu0 %2085
  %vm2088 = vcmask 917251
  %2089 = vst.msk [vmem:[#allocation2 + $0x40] sm:$0xf8] %vm2088, %v2086
  %v2090 = vrot.slane %v1498, 4
  %v2091 = vrot.slane %v1499, 4
  %v2092 = vsel %vm1522, %v2090, %v2091
  %2093 = vrot.lane.b32.xlu0 %v2092, 96
  %v2094 = vpop.permute.xlu0 %2093
  %2096 = vst.msk [vmem:[#allocation2 + $0x50] sm:$0x1f] %vm2027, %v2094
  %v2097 = vrot.slane %v1499, 6
  %2098 = vrot.lane.b32.xlu0 %v2097, 96
  %v2099 = vpop.permute.xlu0 %2098
  %2101 = vst.msk [vmem:[#allocation2 + $0x50] sm:$0xe0] %vm2033, %v2099
  %2102 = vst.msk [vmem:[#allocation2 + $0x60] sm:$0x3] %vm2035, %v2099
  %v2103 = vrot.slane %v1477, 4
  %v2104 = vrot.slane %v1478, 4
  %v2105 = vsel %vm1522, %v2103, %v2104
  %2106 = vrot.lane.b32.xlu0 %v2105, 112
  %v2107 = vpop.permute.xlu0 %2106
  %vm2109 = vcmask 1045376
  %2110 = vst.msk [vmem:[#allocation2] sm:$0x1f] %vm2109, %v2107
  %v2111 = vrot.slane %v1478, 6
  %2112 = vrot.lane.b32.xlu0 %v2111, 112
  %v2113 = vpop.permute.xlu0 %2112
  %vm2115 = vcmask 1048453
  %2116 = vst.msk [vmem:[#allocation2] sm:$0xe0] %vm2115, %v2113
  %vm2117 = vcmask 1042304
  %2118 = vst.msk [vmem:[#allocation2 + $0x10] sm:$0x3] %vm2117, %v2113
  %2119 = vrot.lane.b32.xlu0 %v1479, 112
  %v2120 = vpop.permute.xlu0 %2119
  %vm2122 = vcmask 1047426
  %2123 = vst.msk [vmem:[#allocation2 + $0x10] sm:$0x7c] %vm2122, %v2120
  %v2124 = vrot.slane %v1480, 2
  %2125 = vrot.lane.b32.xlu0 %v2124, 112
  %v2126 = vpop.permute.xlu0 %2125
  %vm2128 = vcmask 1048455
  %2129 = vst.msk [vmem:[#allocation2 + $0x10] sm:$0x80] %vm2128, %v2126
  %vm2130 = vcmask 1044352
  %2131 = vst.msk [vmem:[#allocation2 + $0x20] sm:$0xf] %vm2130, %v2126
  %v2132 = vrot.slane %v1481, 4
  %2133 = vrot.lane.b32.xlu0 %v2132, 112
  %v2134 = vpop.permute.xlu0 %2133
  %vm2136 = vcmask 1048452
  %2137 = vst.msk [vmem:[#allocation2 + $0x20] sm:$0xf0] %vm2136, %v2134
  %vm2138 = vcmask 1041280
  %2139 = vst.msk [vmem:[#allocation2 + $0x30] sm:$0x1] %vm2138, %v2134
  %v2140 = vrot.slane %v1502, 7
  %2141 = vrot.lane.b32.xlu0 %v2140, 112
  %v2142 = vpop.permute.xlu0 %2141
  %vm2144 = vcmask 1046401
  %2145 = vst.msk [vmem:[#allocation2 + $0x30] sm:$0x3e] %vm2144, %v2142
  %v2146 = vrot.slane %v1502, 1
  %v2147 = vrot.slane %v1503, 1
  %v2148 = vsel %vm1615, %v2146, %v2147
  %2149 = vrot.lane.b32.xlu0 %v2148, 112
  %v2150 = vpop.permute.xlu0 %2149
  %2151 = vrot.lane.b32.xlu0 %v2147, 112
  %v2152 = vpop.permute.xlu0 %2151
  %vm2155 = vcmask 1048454
  %2156 = vst.msk [vmem:[#allocation2 + $0x30] sm:$0xc0] %vm2155, %v2150
  %vm2157 = vcmask 1043328
  %2158 = vst.msk [vmem:[#allocation2 + $0x40] sm:$0x7] %vm2157, %v2152
  %v2159 = vrot.slane %v1503, 3
  %v2160 = vrot.slane %v1504, 3
  %v2161 = vsel %vm1546, %v2159, %v2160
  %2162 = vrot.lane.b32.xlu0 %v2161, 112
  %v2163 = vpop.permute.xlu0 %2162
  %vm2165 = vcmask 1048451
  %2166 = vst.msk [vmem:[#allocation2 + $0x40] sm:$0xf8] %vm2165, %v2163
  %v2167 = vrot.slane %v1504, 5
  %v2168 = vrot.slane %v1505, 5
  %v2169 = vsel %vm1590, %v2167, %v2168
  %2170 = vrot.lane.b32.xlu0 %v2169, 112
  %v2171 = vpop.permute.xlu0 %2170
  %2173 = vst.msk [vmem:[#allocation2 + $0x50] sm:$0x1f] %vm2109, %v2171
  %v2175 = vrot.slane %v1505, 7
  %v2176 = vrot.slane %v1506, 7
  %v2177 = vsel %vm1600, %v2175, %v2176
  %2178 = vrot.lane.b32.xlu0 %v2175, 112
  %v2179 = vpop.permute.xlu0 %2178
  %2180 = vrot.lane.b32.xlu0 %v2177, 112
  %v2181 = vpop.permute.xlu0 %2180
  %2184 = vst.msk [vmem:[#allocation2 + $0x50] sm:$0xe0] %vm2115, %v2179
  %2185 = vst.msk [vmem:[#allocation2 + $0x60] sm:$0x3] %vm2117, %v2181
  %v2186 = vrot.slane %v1459, 7
  %v2187 = vrot.slane %v1460, 7
  %v2188 = vsel %vm1600, %v2186, %v2187
  %2190 = vst.msk [vmem:[#allocation2 + $0x8] sm:$0x1f] %vm1507, %v2188
  %v2191 = vrot.slane %v1460, 1
  %v2192 = vrot.slane %v1461, 1
  %v2193 = vsel %vm1615, %v2191, %v2192
  %2196 = vst.msk [vmem:[#allocation2 + $0x8] sm:$0xe0] %vm1517, %v2193
  %2197 = vst.msk [vmem:[#allocation2 + $0x18] sm:$0x3] %vm1519, %v2192
  %v2198 = vrot.slane %v1461, 3
  %v2199 = vrot.slane %v1462, 3
  %v2200 = vsel %vm1546, %v2198, %v2199
  %2202 = vst.msk [vmem:[#allocation2 + $0x18] sm:$0x7c] %vm1527, %v2200
  %v2203 = vrot.slane %v1462, 5
  %v2204 = vrot.slane %v1463, 5
  %v2205 = vsel %vm1590, %v2203, %v2204
  %2208 = vst.msk [vmem:[#allocation2 + $0x18] sm:$0x80] %vm1536, %v2203
  %2209 = vst.msk [vmem:[#allocation2 + $0x28] sm:$0xf] %vm1538, %v2205
  %v2210 = vrot.slane %v1463, 7
  %2212 = vst.msk [vmem:[#allocation2 + $0x28] sm:$0xf0] %vm1540, %v2210
  %2213 = vst.msk [vmem:[#allocation2 + $0x38] sm:$0x1] %vm1542, %v2210
  %v2214 = vrot.slane %v1484, 2
  %2216 = vst.msk [vmem:[#allocation2 + $0x38] sm:$0x3e] %vm1551, %v2214
  %v2217 = vrot.slane %v1485, 4
  %2219 = vst.msk [vmem:[#allocation2 + $0x38] sm:$0xc0] %vm1555, %v2217
  %2220 = vst.msk [vmem:[#allocation2 + $0x48] sm:$0x7] %vm1557, %v2217
  %v2221 = vrot.slane %v1486, 6
  %2223 = vst.msk [vmem:[#allocation2 + $0x48] sm:$0xf8] %vm1562, %v2221
  %2224 = vst.msk [vmem:[#allocation2 + $0x58] sm:$0x1f] %vm1507, %v1487
  %v2226 = vrot.slane %v1487, 2
  %v2227 = vrot.slane %v1488, 2
  %v2228 = vsel %vm1511, %v2226, %v2227
  %2231 = vst.msk [vmem:[#allocation2 + $0x58] sm:$0xe0] %vm1517, %v2228
  %2232 = vst.msk [vmem:[#allocation2 + $0x68] sm:$0x3] %vm1519, %v2227
  %2233 = vrot.lane.b32.xlu0 %v1466, 16
  %v2234 = vpop.permute.xlu0 %2233
  %2236 = vst.msk [vmem:[#allocation2 + $0x8] sm:$0x1f] %vm1578, %v2234
  %v2237 = vrot.slane %v1466, 2
  %v2238 = vrot.slane %v1467, 2
  %v2239 = vsel %vm1511, %v2237, %v2238
  %2240 = vrot.lane.b32.xlu0 %v2239, 16
  %v2241 = vpop.permute.xlu0 %2240
  %2242 = vrot.lane.b32.xlu0 %v2238, 16
  %v2243 = vpop.permute.xlu0 %2242
  %2246 = vst.msk [vmem:[#allocation2 + $0x8] sm:$0xe0] %vm1585, %v2241
  %2247 = vst.msk [vmem:[#allocation2 + $0x18] sm:$0x3] %vm1587, %v2243
  %v2248 = vrot.slane %v1467, 4
  %v2249 = vrot.slane %v1468, 4
  %v2250 = vsel %vm1522, %v2248, %v2249
  %2251 = vrot.lane.b32.xlu0 %v2250, 16
  %v2252 = vpop.permute.xlu0 %2251
  %2254 = vst.msk [vmem:[#allocation2 + $0x18] sm:$0x7c] %vm1597, %v2252
  %v2255 = vrot.slane %v1468, 6
  %v2256 = vrot.slane %v1469, 6
  %v2257 = vsel %vm1530, %v2255, %v2256
  %2258 = vrot.lane.b32.xlu0 %v2255, 16
  %v2259 = vpop.permute.xlu0 %2258
  %2260 = vrot.lane.b32.xlu0 %v2257, 16
  %v2261 = vpop.permute.xlu0 %2260
  %2264 = vst.msk [vmem:[#allocation2 + $0x18] sm:$0x80] %vm1610, %v2259
  %2265 = vst.msk [vmem:[#allocation2 + $0x28] sm:$0xf] %vm1612, %v2261
  %2267 = vrot.lane.b32.xlu0 %v1469, 16
  %v2268 = vpop.permute.xlu0 %2267
  %2269 = vrot.lane.b32.xlu0 %v1470, 16
  %v2270 = vpop.permute.xlu0 %2269
  %2273 = vst.msk [vmem:[#allocation2 + $0x28] sm:$0xf0] %vm1625, %v2268
  %2274 = vst.msk [vmem:[#allocation2 + $0x38] sm:$0x1] %vm1627, %v2270
  %v2275 = vrot.slane %v1490, 3
  %v2276 = vrot.slane %v1491, 3
  %v2277 = vsel %vm1546, %v2275, %v2276
  %2278 = vrot.lane.b32.xlu0 %v2277, 16
  %v2279 = vpop.permute.xlu0 %2278
  %2281 = vst.msk [vmem:[#allocation2 + $0x38] sm:$0x3e] %vm1637, %v2279
  %v2282 = vrot.slane %v1491, 5
  %2283 = vrot.lane.b32.xlu0 %v2282, 16
  %v2284 = vpop.permute.xlu0 %2283
  %2286 = vst.msk [vmem:[#allocation2 + $0x38] sm:$0xc0] %vm1649, %v2284
  %2287 = vst.msk [vmem:[#allocation2 + $0x48] sm:$0x7] %vm1651, %v2284
  %v2288 = vrot.slane %v1492, 7
  %2289 = vrot.lane.b32.xlu0 %v2288, 16
  %v2290 = vpop.permute.xlu0 %2289
  %2292 = vst.msk [vmem:[#allocation2 + $0x48] sm:$0xf8] %vm1656, %v2290
  %v2293 = vrot.slane %v1493, 1
  %2294 = vrot.lane.b32.xlu0 %v2293, 16
  %v2295 = vpop.permute.xlu0 %2294
  %2297 = vst.msk [vmem:[#allocation2 + $0x58] sm:$0x1f] %vm1578, %v2295
  %v2299 = vrot.slane %v1494, 3
  %2300 = vrot.lane.b32.xlu0 %v2299, 16
  %v2301 = vpop.permute.xlu0 %2300
  %2303 = vst.msk [vmem:[#allocation2 + $0x58] sm:$0xe0] %vm1585, %v2301
  %2304 = vst.msk [vmem:[#allocation2 + $0x68] sm:$0x3] %vm1587, %v2301
  %2305 = vrot.lane.b32.xlu0 %v1460, 32
  %v2306 = vpop.permute.xlu0 %2305
  %2308 = vst.msk [vmem:[#allocation2 + $0x8] sm:$0x1f] %vm1675, %v2306
  %v2309 = vrot.slane %v1461, 2
  %v2310 = vsel %vm1511, %v1513, %v2309
  %2311 = vrot.lane.b32.xlu0 %v2310, 32
  %v2312 = vpop.permute.xlu0 %2311
  %2313 = vrot.lane.b32.xlu0 %v2309, 32
  %v2314 = vpop.permute.xlu0 %2313
  %2317 = vst.msk [vmem:[#allocation2 + $0x8] sm:$0xe0] %vm1681, %v2312
  %2318 = vst.msk [vmem:[#allocation2 + $0x18] sm:$0x3] %vm1683, %v2314
  %v2319 = vrot.slane %v1462, 4
  %v2320 = vsel %vm1522, %v1524, %v2319
  %2321 = vrot.lane.b32.xlu0 %v2320, 32
  %v2322 = vpop.permute.xlu0 %2321
  %2324 = vst.msk [vmem:[#allocation2 + $0x18] sm:$0x7c] %vm1691, %v2322
  %v2325 = vrot.slane %v1463, 6
  %v2326 = vsel %vm1530, %v1532, %v2325
  %2327 = vrot.lane.b32.xlu0 %v1532, 32
  %v2328 = vpop.permute.xlu0 %2327
  %2329 = vrot.lane.b32.xlu0 %v2326, 32
  %v2330 = vpop.permute.xlu0 %2329
  %2333 = vst.msk [vmem:[#allocation2 + $0x18] sm:$0x80] %vm1702, %v2328
  %2334 = vst.msk [vmem:[#allocation2 + $0x28] sm:$0xf] %vm1704, %v2330
  %2336 = vrot.lane.b32.xlu0 %v1463, 32
  %v2337 = vpop.permute.xlu0 %2336
  %2338 = vrot.lane.b32.xlu0 %v1464, 32
  %v2339 = vpop.permute.xlu0 %2338
  %2342 = vst.msk [vmem:[#allocation2 + $0x28] sm:$0xf0] %vm1716, %v2337
  %2343 = vst.msk [vmem:[#allocation2 + $0x38] sm:$0x1] %vm1718, %v2339
  %v2344 = vrot.slane %v1485, 3
  %v2345 = vsel %vm1546, %v1548, %v2344
  %2346 = vrot.lane.b32.xlu0 %v2345, 32
  %v2347 = vpop.permute.xlu0 %2346
  %2349 = vst.msk [vmem:[#allocation2 + $0x38] sm:$0x3e] %vm1726, %v2347
  %v2350 = vrot.slane %v1485, 5
  %2351 = vrot.lane.b32.xlu0 %v2350, 32
  %v2352 = vpop.permute.xlu0 %2351
  %2354 = vst.msk [vmem:[#allocation2 + $0x38] sm:$0xc0] %vm1737, %v2352
  %2355 = vst.msk [vmem:[#allocation2 + $0x48] sm:$0x7] %vm1739, %v2352
  %v2356 = vrot.slane %v1486, 7
  %2357 = vrot.lane.b32.xlu0 %v2356, 32
  %v2358 = vpop.permute.xlu0 %2357
  %2360 = vst.msk [vmem:[#allocation2 + $0x48] sm:$0xf8] %vm1744, %v2358
  %v2361 = vrot.slane %v1487, 1
  %2362 = vrot.lane.b32.xlu0 %v2361, 32
  %v2363 = vpop.permute.xlu0 %2362
  %2365 = vst.msk [vmem:[#allocation2 + $0x58] sm:$0x1f] %vm1675, %v2363
  %v2366 = vrot.slane %v1488, 3
  %2367 = vrot.lane.b32.xlu0 %v2366, 32
  %v2368 = vpop.permute.xlu0 %2367
  %2370 = vst.msk [vmem:[#allocation2 + $0x58] sm:$0xe0] %vm1681, %v2368
  %2371 = vst.msk [vmem:[#allocation2 + $0x68] sm:$0x3] %vm1683, %v2368
  %v2372 = vrot.slane %v1466, 1
  %2373 = vrot.lane.b32.xlu0 %v2372, 48
  %v2374 = vpop.permute.xlu0 %2373
  %2376 = vst.msk [vmem:[#allocation2 + $0x8] sm:$0x1f] %vm1761, %v2374
  %v2377 = vrot.slane %v1467, 3
  %2378 = vrot.lane.b32.xlu0 %v2377, 48
  %v2379 = vpop.permute.xlu0 %2378
  %2381 = vst.msk [vmem:[#allocation2 + $0x8] sm:$0xe0] %vm1767, %v2379
  %2382 = vst.msk [vmem:[#allocation2 + $0x18] sm:$0x3] %vm1769, %v2379
  %v2383 = vrot.slane %v1468, 5
  %v2384 = vsel %vm1590, %v1592, %v2383
  %2385 = vrot.lane.b32.xlu0 %v2384, 48
  %v2386 = vpop.permute.xlu0 %2385
  %2388 = vst.msk [vmem:[#allocation2 + $0x18] sm:$0x7c] %vm1775, %v2386
  %v2389 = vrot.slane %v1469, 7
  %v2390 = vsel %vm1600, %v1602, %v2389
  %2391 = vrot.lane.b32.xlu0 %v1602, 48
  %v2392 = vpop.permute.xlu0 %2391
  %2393 = vrot.lane.b32.xlu0 %v2390, 48
  %v2394 = vpop.permute.xlu0 %2393
  %2397 = vst.msk [vmem:[#allocation2 + $0x18] sm:$0x80] %vm1783, %v2392
  %2398 = vst.msk [vmem:[#allocation2 + $0x28] sm:$0xf] %vm1785, %v2394
  %v2399 = vrot.slane %v1470, 1
  %v2400 = vsel %vm1615, %v1617, %v2399
  %2401 = vrot.lane.b32.xlu0 %v2400, 48
  %v2402 = vpop.permute.xlu0 %2401
  %2403 = vrot.lane.b32.xlu0 %v2399, 48
  %v2404 = vpop.permute.xlu0 %2403
  %2407 = vst.msk [vmem:[#allocation2 + $0x28] sm:$0xf0] %vm1796, %v2402
  %2408 = vst.msk [vmem:[#allocation2 + $0x38] sm:$0x1] %vm1798, %v2404
  %v2409 = vrot.slane %v1491, 4
  %v2410 = vsel %vm1522, %v1632, %v2409
  %2411 = vrot.lane.b32.xlu0 %v2410, 48
  %v2412 = vpop.permute.xlu0 %2411
  %2414 = vst.msk [vmem:[#allocation2 + $0x38] sm:$0x3e] %vm1806, %v2412
  %v2415 = vrot.slane %v1492, 6
  %v2416 = vsel %vm1530, %v1641, %v2415
  %2417 = vrot.lane.b32.xlu0 %v1641, 48
  %v2418 = vpop.permute.xlu0 %2417
  %2419 = vrot.lane.b32.xlu0 %v2416, 48
  %v2420 = vpop.permute.xlu0 %2419
  %2423 = vst.msk [vmem:[#allocation2 + $0x38] sm:$0xc0] %vm1817, %v2418
  %2424 = vst.msk [vmem:[#allocation2 + $0x48] sm:$0x7] %vm1819, %v2420
  %2425 = vrot.lane.b32.xlu0 %v1492, 48
  %v2426 = vpop.permute.xlu0 %2425
  %2428 = vst.msk [vmem:[#allocation2 + $0x48] sm:$0xf8] %vm1827, %v2426
  %v2429 = vrot.slane %v1493, 2
  %2430 = vrot.lane.b32.xlu0 %v2429, 48
  %v2431 = vpop.permute.xlu0 %2430
  %2433 = vst.msk [vmem:[#allocation2 + $0x58] sm:$0x1f] %vm1761, %v2431
  %v2434 = vrot.slane %v1494, 4
  %2435 = vrot.lane.b32.xlu0 %v2434, 48
  %v2436 = vpop.permute.xlu0 %2435
  %2438 = vst.msk [vmem:[#allocation2 + $0x58] sm:$0xe0] %vm1767, %v2436
  %2439 = vst.msk [vmem:[#allocation2 + $0x68] sm:$0x3] %vm1769, %v2436
  %v2440 = vrot.slane %v1472, 1
  %2441 = vrot.lane.b32.xlu0 %v2440, 64
  %v2442 = vpop.permute.xlu0 %2441
  %2444 = vst.msk [vmem:[#allocation2 + $0x8] sm:$0x1f] %vm1845, %v2442
  %v2445 = vrot.slane %v1473, 3
  %2446 = vrot.lane.b32.xlu0 %v2445, 64
  %v2447 = vpop.permute.xlu0 %2446
  %2449 = vst.msk [vmem:[#allocation2 + $0x8] sm:$0xe0] %vm1852, %v2447
  %2450 = vst.msk [vmem:[#allocation2 + $0x18] sm:$0x3] %vm1854, %v2447
  %v2451 = vrot.slane %v1473, 5
  %v2452 = vrot.slane %v1474, 5
  %v2453 = vsel %vm1590, %v2451, %v2452
  %2454 = vrot.lane.b32.xlu0 %v2453, 64
  %v2455 = vpop.permute.xlu0 %2454
  %2457 = vst.msk [vmem:[#allocation2 + $0x18] sm:$0x7c] %vm1861, %v2455
  %v2458 = vrot.slane %v1474, 7
  %v2459 = vrot.slane %v1475, 7
  %v2460 = vsel %vm1600, %v2458, %v2459
  %2461 = vrot.lane.b32.xlu0 %v2458, 64
  %v2462 = vpop.permute.xlu0 %2461
  %2463 = vrot.lane.b32.xlu0 %v2460, 64
  %v2464 = vpop.permute.xlu0 %2463
  %2467 = vst.msk [vmem:[#allocation2 + $0x18] sm:$0x80] %vm1870, %v2462
  %2468 = vst.msk [vmem:[#allocation2 + $0x28] sm:$0xf] %vm1872, %v2464
  %v2470 = vrot.slane %v1475, 1
  %v2471 = vrot.slane %v1476, 1
  %v2472 = vsel %vm1615, %v2470, %v2471
  %2473 = vrot.lane.b32.xlu0 %v2472, 64
  %v2474 = vpop.permute.xlu0 %2473
  %2475 = vrot.lane.b32.xlu0 %v2471, 64
  %v2476 = vpop.permute.xlu0 %2475
  %2479 = vst.msk [vmem:[#allocation2 + $0x28] sm:$0xf0] %vm1884, %v2474
  %2480 = vst.msk [vmem:[#allocation2 + $0x38] sm:$0x1] %vm1886, %v2476
  %v2481 = vrot.slane %v1496, 4
  %v2482 = vrot.slane %v1497, 4
  %v2483 = vsel %vm1522, %v2481, %v2482
  %2484 = vrot.lane.b32.xlu0 %v2483, 64
  %v2485 = vpop.permute.xlu0 %2484
  %2487 = vst.msk [vmem:[#allocation2 + $0x38] sm:$0x3e] %vm1896, %v2485
  %v2488 = vrot.slane %v1497, 6
  %v2489 = vrot.slane %v1498, 6
  %v2490 = vsel %vm1530, %v2488, %v2489
  %2491 = vrot.lane.b32.xlu0 %v2488, 64
  %v2492 = vpop.permute.xlu0 %2491
  %2493 = vrot.lane.b32.xlu0 %v2490, 64
  %v2494 = vpop.permute.xlu0 %2493
  %2497 = vst.msk [vmem:[#allocation2 + $0x38] sm:$0xc0] %vm1908, %v2492
  %2498 = vst.msk [vmem:[#allocation2 + $0x48] sm:$0x7] %vm1910, %v2494
  %2499 = vrot.lane.b32.xlu0 %v1498, 64
  %v2500 = vpop.permute.xlu0 %2499
  %2502 = vst.msk [vmem:[#allocation2 + $0x48] sm:$0xf8] %vm1919, %v2500
  %v2503 = vrot.slane %v1499, 2
  %2504 = vrot.lane.b32.xlu0 %v2503, 64
  %v2505 = vpop.permute.xlu0 %2504
  %2507 = vst.msk [vmem:[#allocation2 + $0x58] sm:$0x1f] %vm1845, %v2505
  %v2509 = vrot.slane %v1500, 4
  %2510 = vrot.lane.b32.xlu0 %v2509, 64
  %v2511 = vpop.permute.xlu0 %2510
  %2513 = vst.msk [vmem:[#allocation2 + $0x58] sm:$0xe0] %vm1852, %v2511
  %2514 = vst.msk [vmem:[#allocation2 + $0x68] sm:$0x3] %vm1854, %v2511
  %v2515 = vrot.slane %v1478, 2
  %2516 = vrot.lane.b32.xlu0 %v2515, 80
  %v2517 = vpop.permute.xlu0 %2516
  %2519 = vst.msk [vmem:[#allocation2 + $0x8] sm:$0x1f] %vm1938, %v2517
  %v2520 = vrot.slane %v1479, 4
  %2521 = vrot.lane.b32.xlu0 %v2520, 80
  %v2522 = vpop.permute.xlu0 %2521
  %2524 = vst.msk [vmem:[#allocation2 + $0x8] sm:$0xe0] %vm1945, %v2522
  %2525 = vst.msk [vmem:[#allocation2 + $0x18] sm:$0x3] %vm1947, %v2522
  %v2526 = vrot.slane %v1480, 6
  %2527 = vrot.lane.b32.xlu0 %v2526, 80
  %v2528 = vpop.permute.xlu0 %2527
  %2530 = vst.msk [vmem:[#allocation2 + $0x18] sm:$0x7c] %vm1954, %v2528
  %2531 = vrot.lane.b32.xlu0 %v1480, 80
  %v2532 = vpop.permute.xlu0 %2531
  %2533 = vrot.lane.b32.xlu0 %v1481, 80
  %v2534 = vpop.permute.xlu0 %2533
  %2537 = vst.msk [vmem:[#allocation2 + $0x18] sm:$0x80] %vm1961, %v2532
  %2538 = vst.msk [vmem:[#allocation2 + $0x28] sm:$0xf] %vm1963, %v2534
  %v2540 = vrot.slane %v1481, 2
  %v2541 = vrot.slane %v1482, 2
  %v2542 = vsel %vm1511, %v2540, %v2541
  %2543 = vrot.lane.b32.xlu0 %v2542, 80
  %v2544 = vpop.permute.xlu0 %2543
  %2545 = vrot.lane.b32.xlu0 %v2541, 80
  %v2546 = vpop.permute.xlu0 %2545
  %2549 = vst.msk [vmem:[#allocation2 + $0x28] sm:$0xf0] %vm1975, %v2544
  %2550 = vst.msk [vmem:[#allocation2 + $0x38] sm:$0x1] %vm1977, %v2546
  %v2551 = vrot.slane %v1502, 5
  %v2552 = vrot.slane %v1503, 5
  %v2553 = vsel %vm1590, %v2551, %v2552
  %2554 = vrot.lane.b32.xlu0 %v2553, 80
  %v2555 = vpop.permute.xlu0 %2554
  %2557 = vst.msk [vmem:[#allocation2 + $0x38] sm:$0x3e] %vm1987, %v2555
  %v2558 = vrot.slane %v1503, 7
  %v2559 = vrot.slane %v1504, 7
  %v2560 = vsel %vm1600, %v2558, %v2559
  %2561 = vrot.lane.b32.xlu0 %v2558, 80
  %v2562 = vpop.permute.xlu0 %2561
  %2563 = vrot.lane.b32.xlu0 %v2560, 80
  %v2564 = vpop.permute.xlu0 %2563
  %2567 = vst.msk [vmem:[#allocation2 + $0x38] sm:$0xc0] %vm1996, %v2562
  %2568 = vst.msk [vmem:[#allocation2 + $0x48] sm:$0x7] %vm1998, %v2564
  %v2569 = vrot.slane %v1504, 1
  %v2570 = vrot.slane %v1505, 1
  %v2571 = vsel %vm1615, %v2569, %v2570
  %2572 = vrot.lane.b32.xlu0 %v2571, 80
  %v2573 = vpop.permute.xlu0 %2572
  %2575 = vst.msk [vmem:[#allocation2 + $0x48] sm:$0xf8] %vm2007, %v2573
  %v2576 = vrot.slane %v1505, 3
  %2577 = vrot.lane.b32.xlu0 %v2576, 80
  %v2578 = vpop.permute.xlu0 %2577
  %2580 = vst.msk [vmem:[#allocation2 + $0x58] sm:$0x1f] %vm1938, %v2578
  %v2581 = vrot.slane %v1506, 5
  %2582 = vrot.lane.b32.xlu0 %v2581, 80
  %v2583 = vpop.permute.xlu0 %2582
  %2585 = vst.msk [vmem:[#allocation2 + $0x58] sm:$0xe0] %vm1945, %v2583
  %2586 = vst.msk [vmem:[#allocation2 + $0x68] sm:$0x3] %vm1947, %v2583
  %v2587 = vrot.slane %v1472, 2
  %2588 = vrot.lane.b32.xlu0 %v2587, 96
  %v2589 = vpop.permute.xlu0 %2588
  %2591 = vst.msk [vmem:[#allocation2 + $0x8] sm:$0x1f] %vm2027, %v2589
  %v2592 = vrot.slane %v1473, 4
  %2593 = vrot.lane.b32.xlu0 %v2592, 96
  %v2594 = vpop.permute.xlu0 %2593
  %2596 = vst.msk [vmem:[#allocation2 + $0x8] sm:$0xe0] %vm2033, %v2594
  %2597 = vst.msk [vmem:[#allocation2 + $0x18] sm:$0x3] %vm2035, %v2594
  %v2598 = vrot.slane %v1474, 6
  %2599 = vrot.lane.b32.xlu0 %v2598, 96
  %v2600 = vpop.permute.xlu0 %2599
  %2602 = vst.msk [vmem:[#allocation2 + $0x18] sm:$0x7c] %vm2041, %v2600
  %2603 = vrot.lane.b32.xlu0 %v1474, 96
  %v2604 = vpop.permute.xlu0 %2603
  %2605 = vrot.lane.b32.xlu0 %v1475, 96
  %v2606 = vpop.permute.xlu0 %2605
  %2609 = vst.msk [vmem:[#allocation2 + $0x18] sm:$0x80] %vm2047, %v2604
  %2610 = vst.msk [vmem:[#allocation2 + $0x28] sm:$0xf] %vm2049, %v2606
  %v2611 = vrot.slane %v1476, 2
  %v2612 = vsel %vm1511, %v1876, %v2611
  %2613 = vrot.lane.b32.xlu0 %v2612, 96
  %v2614 = vpop.permute.xlu0 %2613
  %2615 = vrot.lane.b32.xlu0 %v2611, 96
  %v2616 = vpop.permute.xlu0 %2615
  %2619 = vst.msk [vmem:[#allocation2 + $0x28] sm:$0xf0] %vm2060, %v2614
  %2620 = vst.msk [vmem:[#allocation2 + $0x38] sm:$0x1] %vm2062, %v2616
  %v2621 = vrot.slane %v1497, 5
  %v2622 = vsel %vm1590, %v1891, %v2621
  %2623 = vrot.lane.b32.xlu0 %v2622, 96
  %v2624 = vpop.permute.xlu0 %2623
  %2626 = vst.msk [vmem:[#allocation2 + $0x38] sm:$0x3e] %vm2070, %v2624
  %v2627 = vrot.slane %v1498, 7
  %v2628 = vsel %vm1600, %v1900, %v2627
  %2629 = vrot.lane.b32.xlu0 %v1900, 96
  %v2630 = vpop.permute.xlu0 %2629
  %2631 = vrot.lane.b32.xlu0 %v2628, 96
  %v2632 = vpop.permute.xlu0 %2631
  %2635 = vst.msk [vmem:[#allocation2 + $0x38] sm:$0xc0] %vm2078, %v2630
  %2636 = vst.msk [vmem:[#allocation2 + $0x48] sm:$0x7] %vm2080, %v2632
  %v2637 = vrot.slane %v1499, 1
  %v2638 = vsel %vm1615, %v1914, %v2637
  %2639 = vrot.lane.b32.xlu0 %v2638, 96
  %v2640 = vpop.permute.xlu0 %2639
  %2642 = vst.msk [vmem:[#allocation2 + $0x48] sm:$0xf8] %vm2088, %v2640
  %v2643 = vrot.slane %v1499, 3
  %2644 = vrot.lane.b32.xlu0 %v2643, 96
  %v2645 = vpop.permute.xlu0 %2644
  %2647 = vst.msk [vmem:[#allocation2 + $0x58] sm:$0x1f] %vm2027, %v2645
  %v2648 = vrot.slane %v1500, 5
  %2649 = vrot.lane.b32.xlu0 %v2648, 96
  %v2650 = vpop.permute.xlu0 %2649
  %2652 = vst.msk [vmem:[#allocation2 + $0x58] sm:$0xe0] %vm2033, %v2650
  %2653 = vst.msk [vmem:[#allocation2 + $0x68] sm:$0x3] %vm2035, %v2650
  %v2654 = vrot.slane %v1478, 3
  %2655 = vrot.lane.b32.xlu0 %v2654, 112
  %v2656 = vpop.permute.xlu0 %2655
  %2658 = vst.msk [vmem:[#allocation2 + $0x8] sm:$0x1f] %vm2109, %v2656
  %v2659 = vrot.slane %v1479, 5
  %2660 = vrot.lane.b32.xlu0 %v2659, 112
  %v2661 = vpop.permute.xlu0 %2660
  %2663 = vst.msk [vmem:[#allocation2 + $0x8] sm:$0xe0] %vm2115, %v2661
  %2664 = vst.msk [vmem:[#allocation2 + $0x18] sm:$0x3] %vm2117, %v2661
  %v2665 = vrot.slane %v1480, 7
  %2666 = vrot.lane.b32.xlu0 %v2665, 112
  %v2667 = vpop.permute.xlu0 %2666
  %2669 = vst.msk [vmem:[#allocation2 + $0x18] sm:$0x7c] %vm2122, %v2667
  %v2670 = vrot.slane %v1481, 1
  %2671 = vrot.lane.b32.xlu0 %v2670, 112
  %v2672 = vpop.permute.xlu0 %2671
  %2674 = vst.msk [vmem:[#allocation2 + $0x18] sm:$0x80] %vm2128, %v2672
  %2675 = vst.msk [vmem:[#allocation2 + $0x28] sm:$0xf] %vm2130, %v2672
  %v2676 = vrot.slane %v1482, 3
  %v2677 = vsel %vm1546, %v1967, %v2676
  %2678 = vrot.lane.b32.xlu0 %v2677, 112
  %v2679 = vpop.permute.xlu0 %2678
  %2680 = vrot.lane.b32.xlu0 %v2676, 112
  %v2681 = vpop.permute.xlu0 %2680
  %2684 = vst.msk [vmem:[#allocation2 + $0x28] sm:$0xf0] %vm2136, %v2679
  %2685 = vst.msk [vmem:[#allocation2 + $0x38] sm:$0x1] %vm2138, %v2681
  %v2686 = vrot.slane %v1503, 6
  %v2687 = vsel %vm1530, %v1982, %v2686
  %2688 = vrot.lane.b32.xlu0 %v2687, 112
  %v2689 = vpop.permute.xlu0 %2688
  %2691 = vst.msk [vmem:[#allocation2 + $0x38] sm:$0x3e] %vm2144, %v2689
  %2692 = vrot.lane.b32.xlu0 %v1503, 112
  %v2693 = vpop.permute.xlu0 %2692
  %2694 = vrot.lane.b32.xlu0 %v1504, 112
  %v2695 = vpop.permute.xlu0 %2694
  %2698 = vst.msk [vmem:[#allocation2 + $0x38] sm:$0xc0] %vm2155, %v2693
  %2699 = vst.msk [vmem:[#allocation2 + $0x48] sm:$0x7] %vm2157, %v2695
  %v2700 = vrot.slane %v1505, 2
  %v2701 = vsel %vm1511, %v2002, %v2700
  %2702 = vrot.lane.b32.xlu0 %v2701, 112
  %v2703 = vpop.permute.xlu0 %2702
  %2705 = vst.msk [vmem:[#allocation2 + $0x48] sm:$0xf8] %vm2165, %v2703
  %v2706 = vrot.slane %v1506, 4
  %v2707 = vsel %vm1522, %v2011, %v2706
  %2708 = vrot.lane.b32.xlu0 %v2707, 112
  %v2709 = vpop.permute.xlu0 %2708
  %2711 = vst.msk [vmem:[#allocation2 + $0x58] sm:$0x1f] %vm2109, %v2709
  %v2712 = vrot.slane %v1506, 6
  %2713 = vrot.lane.b32.xlu0 %v2712, 112
  %v2714 = vpop.permute.xlu0 %2713
  %2716 = vst.msk [vmem:[#allocation2 + $0x58] sm:$0xe0] %vm2115, %v2714
  %2717 = vst.msk [vmem:[#allocation2 + $0x68] sm:$0x3] %vm2117, %v2714
  %v2718 = vld [vmem:[#allocation2] sm:$0xff]
  %v2719 = vld [vmem:[#allocation2 + $0x8] sm:$0xff]
  %v2720 = vld [vmem:[#allocation2 + $0x10] sm:$0xff]
  %v2721 = vld [vmem:[#allocation2 + $0x18] sm:$0xff]
  %v2722 = vld [vmem:[#allocation2 + $0x20] sm:$0xff]
  %v2723 = vld [vmem:[#allocation2 + $0x28] sm:$0xff]
  %v2724 = vld [vmem:[#allocation2 + $0x30] sm:$0xff]
  %v2725 = vld [vmem:[#allocation2 + $0x38] sm:$0xff]
  %v2726 = vld [vmem:[#allocation2 + $0x40] sm:$0xff]
  %v2727 = vld [vmem:[#allocation2 + $0x48] sm:$0xff]
  %v2728 = vld [vmem:[#allocation2 + $0x50] sm:$0xff]
  %v2729 = vld [vmem:[#allocation2 + $0x58] sm:$0xff]
  %v2730 = vld [vmem:[#allocation2 + $0x60] sm:$0x3]
  %v2731 = vld [vmem:[#allocation2 + $0x68] sm:$0x3]
  %v2732 = vld [vmem:[%s5] sm:$0xff]
  %v2733 = vld [vmem:[%s5 + $0x8] sm:$0xff]
  %v2734 = vld [vmem:[%s5 + $0x10] sm:$0xff]
  %v2735 = vld [vmem:[%s5 + $0x18] sm:$0xff]
  %v2736 = vld [vmem:[%s5 + $0x20] sm:$0xff]
  %v2737 = vld [vmem:[%s5 + $0x28] sm:$0xff]
  %v2738 = vld [vmem:[%s5 + $0x30] sm:$0xff]
  %v2739 = vld [vmem:[%s5 + $0x38] sm:$0xff]
  %v2740 = vld [vmem:[%s5 + $0x40] sm:$0xff]
  %v2741 = vld [vmem:[%s5 + $0x48] sm:$0xff]
  %v2742 = vld [vmem:[%s5 + $0x50] sm:$0xff]
  %v2743 = vld [vmem:[%s5 + $0x58] sm:$0xff]
  %v2744 = vld [vmem:[%s5 + $0x60] sm:$0xff]
  %v2745 = vld [vmem:[%s5 + $0x68] sm:$0xff]
  %v2746 = vld [vmem:[%s5 + $0x70] sm:$0xff]
  %v2747 = vld [vmem:[%s5 + $0x78] sm:$0xff]
  %v2748 = vld [vmem:[%s5 + $0x80] sm:$0xff]
  %v2749 = vld [vmem:[%s5 + $0x88] sm:$0xff]
  %v2750 = vld [vmem:[%s5 + $0x90] sm:$0xff]
  %v2751 = vld [vmem:[%s5 + $0x98] sm:$0xff]
  %v2752 = vld [vmem:[%s5 + $0xa0] sm:$0xff]
  %v2753 = vld [vmem:[%s5 + $0xa8] sm:$0xff]
  %v2754 = vld [vmem:[%s5 + $0xb0] sm:$0xff]
  %v2755 = vld [vmem:[%s5 + $0xb8] sm:$0xff]
  %v2756 = vld [vmem:[%s5 + $0xc0] sm:$0xff]
  %v2757 = vld [vmem:[%s5 + $0xc8] sm:$0xff]
  %v2758 = vld [vmem:[%s5 + $0xd0] sm:$0xff]
  %v2759 = vld [vmem:[%s5 + $0xd8] sm:$0xff]
  %v2760 = vld [vmem:[%s5 + $0xe0] sm:$0xff]
  %v2761 = vld [vmem:[%s5 + $0xe8] sm:$0xff]
  %v2762 = vld [vmem:[%s5 + $0xf0] sm:$0xff]
  %v2763 = vld [vmem:[%s5 + $0xf8] sm:$0xff]
  %2764 = vmatprep.subr.mxu0 0.0
  %2765 = vmatpush1.msra.mxu0 %v2747
  %2766 = vmatprep.subr.mxu0 0.0
  %2767 = vmatpush1.msra.mxu0 %v2746
  %2768 = vmatprep.subr.mxu0 0.0
  %2769 = vmatpush1.msra.mxu0 %v2745
  %2770 = vmatprep.subr.mxu0 0.0
  %2771 = vmatpush1.msra.mxu0 %v2744
  %2772 = vmatprep.subr.mxu0 0.0
  %2773 = vmatpush1.msra.mxu0 %v2743
  %2774 = vmatprep.subr.mxu0 0.0
  %2775 = vmatpush1.msra.mxu0 %v2742
  %2776 = vmatprep.subr.mxu0 0.0
  %2777 = vmatpush1.msra.mxu0 %v2741
  %2778 = vmatprep.subr.mxu0 0.0
  %2779 = vmatpush1.msra.mxu0 %v2740
  %2780 = vmatprep.subr.mxu0 0.0
  %2781 = vmatpush1.msra.mxu0 %v2739
  %2782 = vmatprep.subr.mxu0 0.0
  %2783 = vmatpush1.msra.mxu0 %v2738
  %2784 = vmatprep.subr.mxu0 0.0
  %2785 = vmatpush1.msra.mxu0 %v2737
  %2786 = vmatprep.subr.mxu0 0.0
  %2787 = vmatpush1.msra.mxu0 %v2736
  %2788 = vmatprep.subr.mxu0 0.0
  %2789 = vmatpush1.msra.mxu0 %v2735
  %2790 = vmatprep.subr.mxu0 0.0
  %2791 = vmatpush1.msra.mxu0 %v2734
  %2792 = vmatprep.subr.mxu0 0.0
  %2793 = vmatpush1.msra.mxu0 %v2733
  %2794 = vmatprep.subr.mxu0 0.0
  %2795 = vmatpush1.msra.mxu0 %v2732
  %2796 = vmatprep.subr.mxu0 0.0
  %2797 = vmatpush2.msra.mxu0 %v2763
  %2798 = vmatprep.subr.mxu0 0.0
  %2799 = vmatpush2.msra.mxu0 %v2762
  %2800 = vmatprep.subr.mxu0 0.0
  %2801 = vmatpush2.msra.mxu0 %v2761
  %2802 = vmatprep.subr.mxu0 0.0
  %2803 = vmatpush2.msra.mxu0 %v2760
  %2804 = vmatprep.subr.mxu0 0.0
  %2805 = vmatpush2.msra.mxu0 %v2759
  %2806 = vmatprep.subr.mxu0 0.0
  %2807 = vmatpush2.msra.mxu0 %v2758
  %2808 = vmatprep.subr.mxu0 0.0
  %2809 = vmatpush2.msra.mxu0 %v2757
  %2810 = vmatprep.subr.mxu0 0.0
  %2811 = vmatpush2.msra.mxu0 %v2756
  %2812 = vmatprep.subr.mxu0 0.0
  %2813 = vmatpush2.msra.mxu0 %v2755
  %2814 = vmatprep.subr.mxu0 0.0
  %2815 = vmatpush2.msra.mxu0 %v2754
  %2816 = vmatprep.subr.mxu0 0.0
  %2817 = vmatpush2.msra.mxu0 %v2753
  %2818 = vmatprep.subr.mxu0 0.0
  %2819 = vmatpush2.msra.mxu0 %v2752
  %2820 = vmatprep.subr.mxu0 0.0
  %2821 = vmatpush2.msra.mxu0 %v2751
  %2822 = vmatprep.subr.mxu0 0.0
  %2823 = vmatpush2.msra.mxu0 %v2750
  %2824 = vmatprep.subr.mxu0 0.0
  %2825 = vmatpush2.msra.mxu0 %v2749
  %2826 = vmatprep.subr.mxu0 0.0
  %2827 = vmatpush2.msra.mxu0 %v2748
  %2828 = vmatprep.mubr.f32.mxu0 %v2719
  %2829 = vmatmul.mubr.f32.gmra.mxu0 %v2718
  %v2830 = vpop.f32.mrf.mxu0
  %v2831 = vadd.f32 0.0, %v2830
  %v2832 = vpop.f32.mrf.mxu0
  %2833 = vmatprep.mubr.f32.mxu0 %v2721
  %2834 = vmatmul.mubr.f32.gmra.mxu0 %v2720
  %v2835 = vpop.f32.mrf.mxu0
  %v2836 = vadd.f32 0.0, %v2835
  %v2837 = vpop.f32.mrf.mxu0
  %2838 = vmatprep.mubr.f32.mxu0 %v2723
  %2839 = vmatmul.mubr.f32.gmra.mxu0 %v2722
  %v2840 = vpop.f32.mrf.mxu0
  %v2841 = vadd.f32 0.0, %v2840
  %v2842 = vpop.f32.mrf.mxu0
  %2843 = vmatprep.mubr.f32.mxu0 %v2725
  %2844 = vmatmul.mubr.f32.gmra.mxu0 %v2724
  %v2845 = vpop.f32.mrf.mxu0
  %v2846 = vadd.f32 0.0, %v2845
  %v2847 = vpop.f32.mrf.mxu0
  %2848 = vmatprep.mubr.f32.mxu0 %v2727
  %2849 = vmatmul.mubr.f32.gmra.mxu0 %v2726
  %v2850 = vpop.f32.mrf.mxu0
  %v2851 = vadd.f32 0.0, %v2850
  %v2852 = vpop.f32.mrf.mxu0
  %2853 = vmatprep.mubr.f32.mxu0 %v2729
  %2854 = vmatmul.mubr.f32.gmra.mxu0 %v2728
  %v2855 = vpop.f32.mrf.mxu0
  %v2856 = vadd.f32 0.0, %v2855
  %v2857 = vpop.f32.mrf.mxu0
  %2858 = vmatprep.mubr.f32.mxu0 %v2731
  %2859 = vmatmul.mubr.f32.gmra.mxu0 %v2730
  %v2860 = vpop.f32.mrf.mxu0
  %v2861 = vadd.f32 0.0, %v2860
  %v2862 = vpop.f32.mrf.mxu0
  %2863 = vdwg.mxu0
  %vm2864 = vcmask 261120
  %v2865 = vsel %vm2864, %v2831, 0.0
  %v2866 = vsel %vm2864, %v2836, 0.0
  %v2867 = vadd.f32 %v2865, %v2866
  %v2868 = vsel %vm2864, %v2841, 0.0
  %v2869 = vadd.f32 %v2867, %v2868
  %v2870 = vsel %vm2864, %v2846, 0.0
  %v2871 = vadd.f32 %v2869, %v2870
  %v2872 = vsel %vm2864, %v2851, 0.0
  %v2873 = vadd.f32 %v2871, %v2872
  %v2874 = vsel %vm2864, %v2856, 0.0
  %v2875 = vadd.f32 %v2873, %v2874
  %vm2876 = vcmask 254976
  %v2877 = vsel %vm2876, %v2861, 0.0
  %v2878 = vadd.f32 %v2875, %v2877
  %v2879 = vrot.slane %v2878, 4
  %v2880 = vadd.f32 %v2878, %v2879
  %v2881 = vrot.slane %v2880, 2
  %v2882 = vadd.f32 %v2880, %v2881
  %v2883 = vrot.slane %v2882, 1
  %v2884 = vadd.f32 %v2882, %v2883
  %v2885 = vrcp.pop 50.0
  %v2886 = vmul.f32 %v2884, %v2885
  %v2887 = vsub.f32 %v2831, %v2886
  %v2888 = vsub.f32 %v2836, %v2886
  %v2889 = vsub.f32 %v2841, %v2886
  %v2890 = vsub.f32 %v2846, %v2886
  %v2891 = vsub.f32 %v2851, %v2886
  %v2892 = vsub.f32 %v2856, %v2886
  %v2893 = vsub.f32 %v2861, %v2886
  %v2894 = vmul.f32 %v2887, %v2887
  %v2895 = vmul.f32 %v2888, %v2888
  %v2896 = vmul.f32 %v2889, %v2889
  %v2897 = vmul.f32 %v2890, %v2890
  %v2898 = vmul.f32 %v2891, %v2891
  %v2899 = vmul.f32 %v2892, %v2892
  %v2900 = vmul.f32 %v2893, %v2893
  %v2901 = vsel %vm2864, %v2894, 0.0
  %v2902 = vsel %vm2864, %v2895, 0.0
  %v2903 = vadd.f32 %v2901, %v2902
  %v2904 = vsel %vm2864, %v2896, 0.0
  %v2905 = vadd.f32 %v2903, %v2904
  %v2906 = vsel %vm2864, %v2897, 0.0
  %v2907 = vadd.f32 %v2905, %v2906
  %v2908 = vsel %vm2864, %v2898, 0.0
  %v2909 = vadd.f32 %v2907, %v2908
  %v2910 = vsel %vm2864, %v2899, 0.0
  %v2911 = vadd.f32 %v2909, %v2910
  %v2912 = vsel %vm2876, %v2900, 0.0
  %v2913 = vadd.f32 %v2911, %v2912
  %v2914 = vrot.slane %v2913, 4
  %v2915 = vadd.f32 %v2913, %v2914
  %v2916 = vrot.slane %v2915, 2
  %v2917 = vadd.f32 %v2915, %v2916
  %v2918 = vrot.slane %v2917, 1
  %v2919 = vadd.f32 %v2917, %v2918
  %v2920 = vmul.f32 %v2919, %v2885
  %v2921 = vld [vmem:[%s6] sm:$0x1]
  %v2922 = vadd.f32 %v2920, 1e-05
  %v2923 = vrsqrt.pop %v2922
  %v2924 = vmul.f32 %v2921, %v2923
  %v2925 = vld [vmem:[%s7] sm:$0x1]
  %v2926 = vmul.f32 %v2886, %v2924
  %v2927 = vsub.f32 %v2925, %v2926
  %v2929 = vlaneseq
  %v2930 = vshrl.u32 %v2929, 7
  %v2931 = vsub.s32 0, %v2930
  %v2932 = vrot.slane %v2924, %v2931
  %v2934 = vmul.f32 %v2831, %v2932
  %v2935 = vmul.f32 %v2836, %v2932
  %v2936 = vmul.f32 %v2841, %v2932
  %v2937 = vmul.f32 %v2846, %v2932
  %v2938 = vmul.f32 %v2851, %v2932
  %v2939 = vmul.f32 %v2856, %v2932
  %v2940 = vmul.f32 %v2861, %v2932
  %v2942 = vlaneseq
  %v2943 = vshrl.u32 %v2942, 7
  %v2944 = vsub.s32 0, %v2943
  %v2945 = vrot.slane %v2927, %v2944
  %v2947 = vadd.f32 %v2934, %v2945
  %v2948 = vadd.f32 %v2935, %v2945
  %v2949 = vadd.f32 %v2936, %v2945
  %v2950 = vadd.f32 %v2937, %v2945
  %v2951 = vadd.f32 %v2938, %v2945
  %v2952 = vadd.f32 %v2939, %v2945
  %v2953 = vadd.f32 %v2940, %v2945
  %vm2954 = vcmp.ge.f32.partialorder %v2947, 0.0
  %vm2955 = vcmp.ge.f32.partialorder %v2948, 0.0
  %vm2956 = vcmp.ge.f32.partialorder %v2949, 0.0
  %vm2957 = vcmp.ge.f32.partialorder %v2950, 0.0
  %vm2958 = vcmp.ge.f32.partialorder %v2951, 0.0
  %vm2959 = vcmp.ge.f32.partialorder %v2952, 0.0
  %vm2960 = vcmp.ge.f32.partialorder %v2953, 0.0
  %v2961 = vmul.f32 %v2947, 0.2
  %v2962 = vmul.f32 %v2948, 0.2
  %v2963 = vmul.f32 %v2949, 0.2
  %v2964 = vmul.f32 %v2950, 0.2
  %v2965 = vmul.f32 %v2951, 0.2
  %v2966 = vmul.f32 %v2952, 0.2
  %v2967 = vmul.f32 %v2953, 0.2
  %v2968 = vsel %vm2954, %v2947, %v2961
  %v2969 = vsel %vm2955, %v2948, %v2962
  %v2970 = vsel %vm2956, %v2949, %v2963
  %v2971 = vsel %vm2957, %v2950, %v2964
  %v2972 = vsel %vm2958, %v2951, %v2965
  %v2973 = vsel %vm2959, %v2952, %v2966
  %v2974 = vsel %vm2960, %v2953, %v2967
  %v2975 = vld [vmem:[%s8] sm:$0xff]
  %v2976 = vld [vmem:[%s8 + $0x8] sm:$0xff]
  %v2977 = vld [vmem:[%s8 + $0x10] sm:$0xff]
  %v2978 = vld [vmem:[%s8 + $0x18] sm:$0xff]
  %v2979 = vld [vmem:[%s8 + $0x20] sm:$0xff]
  %v2980 = vld [vmem:[%s8 + $0x28] sm:$0xff]
  %v2981 = vld [vmem:[%s8 + $0x30] sm:$0x3]
  %v2982 = vmul.f32 %v2968, %v2975
  %v2983 = vmul.f32 %v2969, %v2976
  %v2984 = vmul.f32 %v2970, %v2977
  %v2985 = vmul.f32 %v2971, %v2978
  %v2986 = vmul.f32 %v2972, %v2979
  %v2987 = vmul.f32 %v2973, %v2980
  %v2988 = vmul.f32 %v2974, %v2981
  %v2989 = vld [vmem:[%s9] sm:$0x3]
  %vm2990 = vcmask 408576
  %v2992 = vsel %vm2990, %v2989, 0
  %v2995 = vsel %vm1530, %v2988, 0
  %2997 = vmatprep.subr.mxu0 0.0
  %2998 = vmatpush1.msra.mxu0 0.0
  %2999 = vmatprep.subr.mxu0 0.0
  %3000 = vmatpush1.msra.mxu0 0.0
  %3001 = vmatprep.subr.mxu0 0.0
  %3002 = vmatpush1.msra.mxu0 0.0
  %3003 = vmatprep.subr.mxu0 0.0
  %3004 = vmatpush1.msra.mxu0 0.0
  %3005 = vmatprep.subr.mxu0 0.0
  %3006 = vmatpush1.msra.mxu0 0.0
  %3007 = vmatprep.subr.mxu0 0.0
  %3008 = vmatpush1.msra.mxu0 0.0
  %3009 = vmatprep.subr.mxu0 0.0
  %3010 = vmatpush1.msra.mxu0 0.0
  %3011 = vmatprep.subr.mxu0 0.0
  %3012 = vmatpush1.msra.mxu0 0.0
  %3013 = vmatprep.subr.mxu0 0.0
  %3014 = vmatpush1.msra.mxu0 0.0
  %3015 = vmatprep.subr.mxu0 0.0
  %3016 = vmatpush1.msra.mxu0 %v2995
  %3017 = vmatprep.subr.mxu0 0.0
  %3018 = vmatpush1.msra.mxu0 %v2987
  %3019 = vmatprep.subr.mxu0 0.0
  %3020 = vmatpush1.msra.mxu0 %v2986
  %3021 = vmatprep.subr.mxu0 0.0
  %3022 = vmatpush1.msra.mxu0 %v2985
  %3023 = vmatprep.subr.mxu0 0.0
  %3024 = vmatpush1.msra.mxu0 %v2984
  %3025 = vmatprep.subr.mxu0 0.0
  %3026 = vmatpush1.msra.mxu0 %v2983
  %3027 = vmatprep.subr.mxu0 0.0
  %3028 = vmatpush1.msra.mxu0 %v2982
  %3029 = vmatprep.subr.mxu0 0.0
  %3030 = vmatpush2.msra.mxu0 0.0
  %3031 = vmatprep.subr.mxu0 0.0
  %3032 = vmatpush2.msra.mxu0 0.0
  %3033 = vmatprep.subr.mxu0 0.0
  %3034 = vmatpush2.msra.mxu0 0.0
  %3035 = vmatprep.subr.mxu0 0.0
  %3036 = vmatpush2.msra.mxu0 0.0
  %3037 = vmatprep.subr.mxu0 0.0
  %3038 = vmatpush2.msra.mxu0 0.0
  %3039 = vmatprep.subr.mxu0 0.0
  %3040 = vmatpush2.msra.mxu0 0.0
  %3041 = vmatprep.subr.mxu0 0.0
  %3042 = vmatpush2.msra.mxu0 0.0
  %3043 = vmatprep.subr.mxu0 0.0
  %3044 = vmatpush2.msra.mxu0 0.0
  %3045 = vmatprep.subr.mxu0 0.0
  %3046 = vmatpush2.msra.mxu0 0.0
  %3047 = vmatprep.subr.mxu0 0.0
  %3048 = vmatpush2.msra.mxu0 0.0
  %3049 = vmatprep.subr.mxu0 0.0
  %3050 = vmatpush2.msra.mxu0 0.0
  %3051 = vmatprep.subr.mxu0 0.0
  %3052 = vmatpush2.msra.mxu0 0.0
  %3053 = vmatprep.subr.mxu0 0.0
  %3054 = vmatpush2.msra.mxu0 0.0
  %3055 = vmatprep.subr.mxu0 0.0
  %3056 = vmatpush2.msra.mxu0 0.0
  %3057 = vmatprep.subr.mxu0 0.0
  %3058 = vmatpush2.msra.mxu0 0.0
  %3059 = vmatprep.subr.mxu0 0.0
  %3060 = vmatpush2.msra.mxu0 0.0
  %3061 = vmatprep.mubr.f32.mxu0 0.0
  %3062 = vmatmul.mubr.f32.gmra.mxu0 %v2992
  %v3063 = vpop.f32.mrf.mxu0
  %v3064 = vadd.f32 0.0, %v3063
  %v3065 = vpop.f32.mrf.mxu0
  %3066 = vdwg.mxu0
  %v3067 = vsel %vm2876, %v3064, 0.0
  %3068 = vadd.xlane.f32.xlu0 %v3067
  %v3069 = vpop.xlane.xlu0 %3068
  %v3070 = vld [vmem:[#allocation3] sm:$0x1]
  %v3072 = vlaneseq
  %v3073 = vshrl.u32 %v3072, 7
  %v3074 = vsub.s32 0, %v3073
  %v3075 = vrot.slane %v3070, %v3074
  %v3077 = vadd.f32 %v3069, %v3075
  %vm3078 = vcmask 1024
  %3079 = vst.msk [vmem:[%s11] sm:$0x3] %vm3078, %v3077
  // Predicated region
  $region46: #{discriminator_forward.1} parent=0 // pred_check
    _
  $region47: #{discriminator_forward.1} parent=0 // pred_check_branch
    %3081 = sbr.rel (0) target = $region49
  $region48: #{discriminator_forward.1} parent=0 // pred_region
    _
  $region49: #{discriminator_forward.1} parent=0 // pred_fallthru
    _
  // Predicated region
  $region50: #{discriminator_forward.1} parent=0 // pred_check
    _
  $region51: #{discriminator_forward.1} parent=0 // pred_check_branch
    %3083 = sbr.rel (0) target = $region53
  $region52: #{discriminator_forward.1} parent=0 // pred_region
    _
  $region53: #{discriminator_forward.1} parent=0 // pred_fallthru
    _

</llo_original>
